<compile_context>
chip_gen: v7x
topology: tpu7x:2x2x1
jax: 0.10.0
libtpu: 0.0.40
codegen_flags: <defaults>
</compile_context>

<pallas_src>
import functools

import jax
import jax.numpy as jnp
from jax.experimental import pallas as pl
from jax.experimental.pallas import tpu as pltpu


def _swish(x, beta):
    return x * jax.nn.sigmoid(beta * x)


def egnn_kernel(
    oh_src_ref, oh_tgt_ref, gslab_ref, nf_ref, coord_ref, vel_ref, invdeg_ref,
    w_ts_ref, w_ed_ref, b_e1_ref,
    w_e2_ref, b_e2_ref,
    w_c1_ref, b_c1_ref, w_c2_ref, b_c2_ref,
    w_nf_ref, w_na_ref, b_n1_ref, w_n2_ref, b_n2_ref,
    w_v1_ref, b_v1_ref, w_v2_ref, b_v2_ref,
    coord_out_ref, node_out_ref, vel_out_ref,
    acc_coord_ref, acc_msg_ref,
    *, beta, n_dims, in_dim,
):
    f32 = jnp.float32
    bf16 = jnp.bfloat16
    n = n_dims
    D = in_dim
    Hp = b_e1_ref.shape[-1]
    Eb = oh_src_ref.shape[0]
    blk = pl.program_id(0)

    @pl.when(blk == 0)
    def _init():
        acc_coord_ref[...] = jnp.zeros_like(acc_coord_ref)
        acc_msg_ref[...] = jnp.zeros_like(acc_msg_ref)

    # ---- hoisted loads (Mosaic does not CSE repeated ref loads) ----
    oh_s = oh_src_ref[...]                                     # bf16 [Eb, N]
    oh_t = oh_tgt_ref[...]                                     # bf16 [Eb, N]
    gslab = gslab_ref[...]                                     # bf16 [N, n + n*D]
    w_ts = w_ts_ref[...]                                       # bf16 [2D, Hp]
    w_ed = w_ed_ref[...]                                       # f32  [1, Hp]
    b_e1 = b_e1_ref[...]
    w_e2 = w_e2_ref[...]                                       # bf16 [Hp, Hp]
    b_e2 = b_e2_ref[...]
    w_c1 = w_c1_ref[...]                                       # bf16 [Hp, Hp]
    b_c1 = b_c1_ref[...]
    w_c2_row = w_c2_ref[...]                                   # f32  [1, Hp]
    b_c2 = b_c2_ref[...]

    # ---- fused gathers: one native-bf16 MXU matmul per one-hot matrix ----
    g_t = jnp.dot(oh_t, gslab, preferred_element_type=f32)     # [Eb, n + n*D]
    g_s = jnp.dot(oh_s, gslab, preferred_element_type=f32)

    c_tgt = g_t[:, :n]
    c_src = g_s[:, :n]
    rel = c_tgt - c_src                                        # [Eb, n]
    dist = jnp.sum(rel * rel, axis=-1, keepdims=True)          # [Eb, 1]

    # ---- edge MLP: sublane-stack the n spatial dims, lane-concat tgt/src (K = 2D) ----
    edge_in = jnp.concatenate(
        [jnp.concatenate([g_t[:, n + d * D:n + (d + 1) * D],
                          g_s[:, n + d * D:n + (d + 1) * D]], axis=-1)
         for d in range(n)], axis=0).astype(bf16)              # [n*Eb, 2D]
    dist_stk = jnp.concatenate([dist] * n, axis=0)             # [n*Eb, 1]
    dist_h = dist_stk * w_ed                                   # [n*Eb, Hp] (VPU)

    h = _swish(jnp.dot(edge_in, w_ts, preferred_element_type=f32) + dist_h + b_e1, beta)
    msg = _swish(jnp.dot(h.astype(bf16), w_e2, preferred_element_type=f32) + b_e2, beta)
    msg_b = msg.astype(bf16)                                   # [n*Eb, Hp]

    # coordinate_function: Linear -> swish -> Linear(Hp->1) as VPU mul + lane reduction.
    ch = _swish(jnp.dot(msg_b, w_c1, preferred_element_type=f32) + b_c1, beta)
    c_all = jnp.sum(ch * w_c2_row, axis=-1, keepdims=True) + b_c2     # [n*Eb, 1]

    coord_msg = jnp.concatenate(
        [rel[:, d:d + 1] * c_all[d * Eb:(d + 1) * Eb] for d in range(n)],
        axis=-1)                                               # [Eb, n]
    msg_lane = jnp.concatenate(
        [msg_b[d * Eb:(d + 1) * Eb] for d in range(n)], axis=-1)       # [Eb, n*Hp] bf16

    # scatter_add over target nodes == oh_tgt^T @ (...) : contract the edge axis.
    scatter_dims = (((0,), (0,)), ((), ()))
    acc_coord_ref[...] = acc_coord_ref[...] + jax.lax.dot_general(
        oh_t, coord_msg.astype(bf16), scatter_dims, preferred_element_type=f32)
    acc_msg_ref[...] = acc_msg_ref[...] + jax.lax.dot_general(
        oh_t, msg_lane, scatter_dims, preferred_element_type=f32)

    @pl.when(blk == pl.num_programs(0) - 1)
    def _finalize():
        vel = vel_ref[...]                                     # [N, n]
        inv_deg = invdeg_ref[...]                              # [N, 1]
        coord = coord_ref[...]                                 # [N, n] f32 (exact base)
        w_v1 = w_v1_ref[...]
        b_v1 = b_v1_ref[...]
        w_v2_row = w_v2_ref[...]
        b_v2 = b_v2_ref[...]
        w_nf = w_nf_ref[...]
        w_na = w_na_ref[...]
        b_n1 = b_n1_ref[...]
        w_n2 = w_n2_ref[...]
        b_n2 = b_n2_ref[...]

        vel_cols = []
        for d in range(n):
            nf_d = nf_ref[d]                                   # [N, D] f32
            nf_d_b = nf_d.astype(bf16)

            # velocity_function: Linear -> swish -> Linear(Hp->1) via VPU reduce.
            vh = _swish(jnp.dot(nf_d_b, w_v1, preferred_element_type=f32) + b_v1, beta)
            v_d = jnp.sum(vh * w_v2_row, axis=-1, keepdims=True) + b_v2
            vel_cols.append(vel[:, d:d + 1] * v_d)

            # node_function on cat([node_feat, aggregated_message]) via split weights.
            agg_d = acc_msg_ref[:, d * Hp:(d + 1) * Hp].astype(bf16)
            u = _swish(jnp.dot(nf_d_b, w_nf, preferred_element_type=f32)
                       + jnp.dot(agg_d, w_na, preferred_element_type=f32)
                       + b_n1, beta)
            u2 = jnp.dot(u.astype(bf16), w_n2, preferred_element_type=f32) + b_n2
            node_out_ref[d] = nf_d + u2

        vel_new = jnp.concatenate(vel_cols, axis=-1)           # [N, n]
        coord_out_ref[...] = coord + inv_deg * acc_coord_ref[...] + vel_new
        vel_out_ref[...] = vel_new


def xavier_uniform(key, fan_in, fan_out):
    bound = (6.0 / (fan_in + fan_out)) ** 0.5
    # stored as [in, out] so forward is x @ W (== torch x @ W^T with W [out, in])
    return jax.random.uniform(key, (fan_in, fan_out), jnp.float32, -bound, bound)


def make_params(key, in_dim, hidden_dim):
    ks = jax.random.split(key, 8)
    D, H = in_dim, hidden_dim
    return [
        xavier_uniform(ks[0], 2 * D + 1, H), jnp.zeros((1, H), jnp.float32),   # edge_function[0]
        xavier_uniform(ks[1], H, H),         jnp.zeros((1, H), jnp.float32),   # edge_function[2]
        xavier_uniform(ks[2], H, H),         jnp.zeros((1, H), jnp.float32),   # coordinate_function[0]
        xavier_uniform(ks[3], H, 1),         jnp.zeros((1, 1), jnp.float32),   # coordinate_function[2]
        xavier_uniform(ks[4], D + H, H),     jnp.zeros((1, H), jnp.float32),   # node_function[0]
        xavier_uniform(ks[5], H, D),         jnp.zeros((1, D), jnp.float32),   # node_function[2]
        xavier_uniform(ks[6], D, H),         jnp.zeros((1, H), jnp.float32),   # velocity_function[0]
        xavier_uniform(ks[7], H, 1),         jnp.zeros((1, 1), jnp.float32),   # velocity_function[2]
    ]


def _plan_edge_tiling(N, n, D, H_pad, resident_bytes, e_block_req):
    """Pick e_block / vmem_limit from the chip's actual VMEM capacity (v5e/v6e: 128 MiB,
    v7x: 64 MiB per TensorCore), leaving headroom for Mosaic internal scratch."""
    try:
        phys = int(pltpu.get_tpu_info().vmem_capacity_bytes)
    except Exception:
        phys = 64 * 1024 * 1024                    # conservative default (v7x per-TC)
    cap = (phys * 3) // 4

    # fixed: resident inputs + f32 accumulators + resident outputs
    fixed = (resident_bytes
             + N * n * 4 + N * n * H_pad * 4       # acc_coord, acc_msg
             + 2 * N * n * 4 + n * N * D * 4)      # coord/vel/node outputs
    # per edge row: 2 double-buffered bf16 one-hot tiles + f32 gather/MLP temporaries
    per_row = (2 * 2 * N * 2) + 2 * (n + n * D) * 4 + 5 * n * H_pad * 4

    e_block = max(16, ((int(e_block_req) + 15) // 16) * 16)
    while e_block > 16 and fixed + e_block * per_row > cap:
        e_block = max(16, ((e_block // 2) // 16) * 16)
    vmem_limit = int(min(phys, max(32 * 1024 * 1024,
                                   fixed + e_block * per_row + (8 << 20))))
    return e_block, vmem_limit


def egnn_forward(node_feat, degree, coordinate, edge_index, velocity_vector,
                 params, swish_beta, *, e_block=512):
    N, n, D = node_feat.shape
    E = edge_index.shape[-1]
    (w_e1, b_e1, w_e2, b_e2, w_c1, b_c1, w_c2, b_c2,
     w_n1, b_n1, w_n2, b_n2, w_v1, b_v1, w_v2, b_v2) = params
    H = w_e1.shape[1]
    H_pad = ((H + 127) // 128) * 128                      # lane-dense hidden dim
    bf16 = jnp.bfloat16
    f32 = jnp.float32

    def pad_cols(w):
        return jnp.pad(w, ((0, 0), (0, H_pad - w.shape[1])))

    def pad_rows(w):
        return jnp.pad(w, ((0, H_pad - w.shape[0]), (0, 0)))

    # split + zero-pad weights (exact: padded hidden lanes stay 0 through every layer);
    # MXU weights travel as bf16, biases / VPU-reduce rows stay f32.
    weights = [
        jnp.concatenate([pad_cols(w_e1[:D]), pad_cols(w_e1[D:2 * D])], axis=0).astype(bf16),  # w_ts
        pad_cols(w_e1[2 * D:]).astype(f32),                                                    # w_ed
        pad_cols(b_e1).astype(f32),
        pad_cols(pad_rows(w_e2)).astype(bf16), pad_cols(b_e2).astype(f32),
        pad_cols(pad_rows(w_c1)).astype(bf16), pad_cols(b_c1).astype(f32),
        pad_cols(w_c2.T).astype(f32), b_c2.astype(f32),
        pad_cols(w_n1[:D]).astype(bf16), pad_cols(pad_rows(w_n1[D:])).astype(bf16),
        pad_cols(b_n1).astype(f32),
        pad_rows(w_n2).astype(bf16), b_n2.astype(f32),
        pad_cols(w_v1).astype(bf16), pad_cols(b_v1).astype(f32),
        pad_cols(w_v2.T).astype(f32), b_v2.astype(f32),
    ]

    # Resident node-side data:
    #  * bf16 gather slab [N, n + n*D]: coordinates then the n node-feature slices,
    #    so each edge block does exactly two gather matmuls.
    #  * f32 [n, N, D] node features for the exact residual in finalize.
    node_feat = node_feat.astype(f32)
    coordinate = coordinate.astype(f32)
    velocity_vector = velocity_vector.astype(f32)
    gslab = jnp.concatenate(
        [coordinate] + [node_feat[:, d, :] for d in range(n)], axis=-1).astype(bf16)
    nf_dims = jnp.transpose(node_feat, (1, 0, 2))                                   # [n, N, D]
    inv_degree = (1.0 / degree.astype(f32)).reshape(N, 1)                            # host precompute

    resident_inputs = [gslab, nf_dims, coordinate, velocity_vector, inv_degree] + weights
    resident_bytes = sum(int(a.size) * a.dtype.itemsize for a in resident_inputs)
    e_block, vmem_limit = _plan_edge_tiling(N, n, D, H_pad, resident_bytes, e_block)

    # Edge tiling: pad E with all-zero one-hot rows (index -1 -> zero row), which contribute
    # nothing to either scatter, so the result is exact.
    num_blocks = -(-E // e_block)
    E_pad = num_blocks * e_block
    src = edge_index[0].astype(jnp.int32)
    tgt = edge_index[1].astype(jnp.int32)
    pad_idx = jnp.full((E_pad - E,), -1, jnp.int32)
    oh_src = jax.nn.one_hot(jnp.concatenate([src, pad_idx]), N, dtype=bf16)          # [E_pad, N]
    oh_tgt = jax.nn.one_hot(jnp.concatenate([tgt, pad_idx]), N, dtype=bf16)          # [E_pad, N]

    inputs = [oh_src, oh_tgt] + resident_inputs

    def resident(arr):
        zero = (0,) * arr.ndim
        return pl.BlockSpec(arr.shape, lambda i, z=zero: z)

    edge_spec = pl.BlockSpec((e_block, N), lambda i: (i, 0))
    in_specs = [edge_spec, edge_spec] + [resident(a) for a in resident_inputs]

    out_shape = (
        jax.ShapeDtypeStruct((N, n), f32),            # coordinate
        jax.ShapeDtypeStruct((n, N, D), f32),         # node features (dim-major; transposed back)
        jax.ShapeDtypeStruct((N, n), f32),            # velocity
    )
    out_specs = (
        pl.BlockSpec((N, n), lambda i: (0, 0)),
        pl.BlockSpec((n, N, D), lambda i: (0, 0, 0)),
        pl.BlockSpec((N, n), lambda i: (0, 0)),
    )

    grid_spec = pltpu.PrefetchScalarGridSpec(
        num_scalar_prefetch=0,
        grid=(num_blocks,),
        in_specs=in_specs,
        out_specs=out_specs,
        scratch_shapes=[
            pltpu.VMEM((N, n), f32),                  # scatter-add accumulator: coordinate update
            pltpu.VMEM((N, n * H_pad), f32),          # scatter-add accumulator: aggregated messages
        ],
    )

    coord_out, node_dims_out, vel_out = pl.pallas_call(
        functools.partial(egnn_kernel, beta=swish_beta, n_dims=n, in_dim=D),
        out_shape=out_shape,
        grid_spec=grid_spec,
        compiler_params=pltpu.CompilerParams(
            dimension_semantics=("arbitrary",),       # scatter accumulates across edge blocks
            vmem_limit_bytes=vmem_limit,
        ),
    )(*inputs)

    return coord_out, jnp.transpose(node_dims_out, (1, 0, 2)), vel_out


def egnn_reference(node_feat, degree, coordinate, edge_index, velocity_vector, params, beta):
    """Pure-JAX mirror of the PyTorch forward (for a sanity check)."""
    (w_e1, b_e1, w_e2, b_e2, w_c1, b_c1, w_c2, b_c2,
     w_n1, b_n1, w_n2, b_n2, w_v1, b_v1, w_v2, b_v2) = params
    N, n, _ = node_feat.shape
    E = edge_index.shape[-1]
    src, tgt = edge_index[0], edge_index[1]
    swish = lambda x: x * jax.nn.sigmoid(beta * x)

    rel = coordinate[tgt] - coordinate[src]                           # [E, n]
    dist = jnp.sum(rel * rel, axis=-1)                                # [E]
    dist_lift = jnp.broadcast_to(dist[:, None, None], (E, n, 1))
    msg_in = jnp.concatenate([node_feat[tgt], node_feat[src], dist_lift], axis=-1)
    message = swish(swish(msg_in @ w_e1 + b_e1) @ w_e2 + b_e2)        # [E, n, H]

    c = swish(message @ w_c1 + b_c1) @ w_c2 + b_c2                    # [E, n, 1]
    coord_msg = rel * c[..., 0]
    upd_coord = jnp.zeros((N, n), jnp.float32).at[tgt].add(coord_msg)
    coord_new = coordinate + (1.0 / degree)[:, None] * upd_coord

    v = swish(node_feat @ w_v1 + b_v1) @ w_v2 + b_v2                  # [N, n, 1]
    vel_new = velocity_vector * v[..., 0]
    coord_new = coord_new + vel_new

    agg = jnp.zeros((N, n, w_e2.shape[1]), jnp.float32).at[tgt].add(message)
    u = swish(jnp.concatenate([node_feat, agg], axis=-1) @ w_n1 + b_n1) @ w_n2 + b_n2
    return coord_new, node_feat + u, vel_new


if __name__ == "__main__":
    N, n, in_dim, hidden_dim, E = 8, 3, 8, 32, 48
    swish_beta = 1.0

    key = jax.random.PRNGKey(0)
    k_nf, k_c, k_v, k_p = jax.random.split(key, 4)
    node_feat = jax.random.normal(k_nf, (N, n, in_dim), jnp.float32)
    coordinate = jax.random.normal(k_c, (N, n), jnp.float32)
    velocity_vector = jax.random.normal(k_v, (N, n), jnp.float32)

    # deterministic edges: every node is the target of exactly E // N = 6 edges
    target = jnp.arange(E, dtype=jnp.int32) % N
    source = (jnp.arange(E, dtype=jnp.int32) * 3 + 1) % N
    edge_index = jnp.stack([source, target], axis=0)                  # [2, E]
    degree = jnp.full((N,), float(E // N), jnp.float32)               # in-degree per node

    params = make_params(k_p, in_dim, hidden_dim)

    coord_out, node_out, vel_out = egnn_forward(
        node_feat, degree, coordinate, edge_index, velocity_vector,
        params, swish_beta, e_block=16)                               # 3 edge blocks -> exercises accumulation
    jax.block_until_ready((coord_out, node_out, vel_out))

    assert coord_out.shape == (N, n)
    assert node_out.shape == (N, n, in_dim)
    assert vel_out.shape == (N, n)

    ref_coord, ref_node, ref_vel = egnn_reference(
        node_feat, degree, coordinate, edge_index, velocity_vector, params, swish_beta)
    # Tolerance bounds the intended bf16-operand rounding (f32 accumulation everywhere).
    for name, got, ref in (("coordinate", coord_out, ref_coord),
                           ("node_feat", node_out, ref_node),
                           ("velocity", vel_out, ref_vel)):
        assert bool(jnp.all(jnp.isfinite(got))), f"{name}: non-finite output"
        assert bool(jnp.allclose(got, ref, rtol=5e-2, atol=1.5e-1)), (
            f"{name}: max |diff| = {float(jnp.max(jnp.abs(got - ref)))}")

    print("KERNEL_OK")
</pallas_src>

<mosaic_0001>
module attributes {stable_mosaic.version = 11 : i64} {
  func.func @egnn_kernel(%arg0: i32, %arg1: memref<16x8xbf16, #tpu.memory_space<vmem>>, %arg2: memref<16x8xbf16, #tpu.memory_space<vmem>>, %arg3: memref<8x27xbf16, #tpu.memory_space<vmem>>, %arg4: memref<3x8x8xf32, #tpu.memory_space<vmem>>, %arg5: memref<8x3xf32, #tpu.memory_space<vmem>>, %arg6: memref<8x3xf32, #tpu.memory_space<vmem>>, %arg7: memref<8x1xf32, #tpu.memory_space<vmem>>, %arg8: memref<16x128xbf16, #tpu.memory_space<vmem>>, %arg9: memref<1x128xf32, #tpu.memory_space<vmem>>, %arg10: memref<1x128xf32, #tpu.memory_space<vmem>>, %arg11: memref<128x128xbf16, #tpu.memory_space<vmem>>, %arg12: memref<1x128xf32, #tpu.memory_space<vmem>>, %arg13: memref<128x128xbf16, #tpu.memory_space<vmem>>, %arg14: memref<1x128xf32, #tpu.memory_space<vmem>>, %arg15: memref<1x128xf32, #tpu.memory_space<vmem>>, %arg16: memref<1x1xf32, #tpu.memory_space<vmem>>, %arg17: memref<8x128xbf16, #tpu.memory_space<vmem>>, %arg18: memref<128x128xbf16, #tpu.memory_space<vmem>>, %arg19: memref<1x128xf32, #tpu.memory_space<vmem>>, %arg20: memref<128x8xbf16, #tpu.memory_space<vmem>>, %arg21: memref<1x8xf32, #tpu.memory_space<vmem>>, %arg22: memref<8x128xbf16, #tpu.memory_space<vmem>>, %arg23: memref<1x128xf32, #tpu.memory_space<vmem>>, %arg24: memref<1x128xf32, #tpu.memory_space<vmem>>, %arg25: memref<1x1xf32, #tpu.memory_space<vmem>>, %arg26: memref<8x3xf32, #tpu.memory_space<vmem>>, %arg27: memref<3x8x8xf32, #tpu.memory_space<vmem>>, %arg28: memref<8x3xf32, #tpu.memory_space<vmem>>, %arg29: memref<8x3xf32, #tpu.memory_space<vmem>>, %arg30: memref<8x384xf32, #tpu.memory_space<vmem>>) attributes {dimension_semantics = [#tpu.dimension_semantics<arbitrary>], iteration_bounds = array<i64: 3>, scalar_prefetch = 0 : i64, scratch_operands = 2 : i64, tpu.core_type = #tpu.core_type<tc>, window_params = [{transform_indices = @transform_0, window_bounds = array<i64: 16, 8>}, {transform_indices = @transform_1, window_bounds = array<i64: 16, 8>}, {pipeline_mode = #tpu.pipeline_mode<synchronous>, transform_indices = @transform_2, window_bounds = array<i64: 8, 27>}, {pipeline_mode = #tpu.pipeline_mode<synchronous>, transform_indices = @transform_3, window_bounds = array<i64: 3, 8, 8>}, {pipeline_mode = #tpu.pipeline_mode<synchronous>, transform_indices = @transform_4, window_bounds = array<i64: 8, 3>}, {pipeline_mode = #tpu.pipeline_mode<synchronous>, transform_indices = @transform_5, window_bounds = array<i64: 8, 3>}, {pipeline_mode = #tpu.pipeline_mode<synchronous>, transform_indices = @transform_6, window_bounds = array<i64: 8, 1>}, {pipeline_mode = #tpu.pipeline_mode<synchronous>, transform_indices = @transform_7, window_bounds = array<i64: 16, 128>}, {pipeline_mode = #tpu.pipeline_mode<synchronous>, transform_indices = @transform_8, window_bounds = array<i64: 1, 128>}, {pipeline_mode = #tpu.pipeline_mode<synchronous>, transform_indices = @transform_9, window_bounds = array<i64: 1, 128>}, {pipeline_mode = #tpu.pipeline_mode<synchronous>, transform_indices = @transform_10, window_bounds = array<i64: 128, 128>}, {pipeline_mode = #tpu.pipeline_mode<synchronous>, transform_indices = @transform_11, window_bounds = array<i64: 1, 128>}, {pipeline_mode = #tpu.pipeline_mode<synchronous>, transform_indices = @transform_12, window_bounds = array<i64: 128, 128>}, {pipeline_mode = #tpu.pipeline_mode<synchronous>, transform_indices = @transform_13, window_bounds = array<i64: 1, 128>}, {pipeline_mode = #tpu.pipeline_mode<synchronous>, transform_indices = @transform_14, window_bounds = array<i64: 1, 128>}, {pipeline_mode = #tpu.pipeline_mode<synchronous>, transform_indices = @transform_15, window_bounds = array<i64: 1, 1>}, {pipeline_mode = #tpu.pipeline_mode<synchronous>, transform_indices = @transform_16, window_bounds = array<i64: 8, 128>}, {pipeline_mode = #tpu.pipeline_mode<synchronous>, transform_indices = @transform_17, window_bounds = array<i64: 128, 128>}, {pipeline_mode = #tpu.pipeline_mode<synchronous>, transform_indices = @transform_18, window_bounds = array<i64: 1, 128>}, {pipeline_mode = #tpu.pipeline_mode<synchronous>, transform_indices = @transform_19, window_bounds = array<i64: 128, 8>}, {pipeline_mode = #tpu.pipeline_mode<synchronous>, transform_indices = @transform_20, window_bounds = array<i64: 1, 8>}, {pipeline_mode = #tpu.pipeline_mode<synchronous>, transform_indices = @transform_21, window_bounds = array<i64: 8, 128>}, {pipeline_mode = #tpu.pipeline_mode<synchronous>, transform_indices = @transform_22, window_bounds = array<i64: 1, 128>}, {pipeline_mode = #tpu.pipeline_mode<synchronous>, transform_indices = @transform_23, window_bounds = array<i64: 1, 128>}, {pipeline_mode = #tpu.pipeline_mode<synchronous>, transform_indices = @transform_24, window_bounds = array<i64: 1, 1>}, {pipeline_mode = #tpu.pipeline_mode<synchronous>, transform_indices = @transform_25, window_bounds = array<i64: 8, 3>}, {pipeline_mode = #tpu.pipeline_mode<synchronous>, transform_indices = @transform_26, window_bounds = array<i64: 3, 8, 8>}, {pipeline_mode = #tpu.pipeline_mode<synchronous>, transform_indices = @transform_27, window_bounds = array<i64: 8, 3>}]} {
    %c0_i32 = arith.constant 0 : i32
    %0 = arith.cmpi eq, %arg0, %c0_i32 : i32
    %1 = arith.extui %0 : i1 to i32
    %c0_i32_0 = arith.constant 0 : i32
    %2 = arith.cmpi ne, %1, %c0_i32_0 : i32
    scf.if %2 {
      %cst_47 = arith.constant 0.000000e+00 : f32
      %106 = vector.broadcast %cst_47 : f32 to vector<8x3xf32>
      %c0_48 = arith.constant 0 : index
      %c0_49 = arith.constant 0 : index
      %107 = vector.load %arg29[%c0_48, %c0_49] : memref<8x3xf32, #tpu.memory_space<vmem>>, vector<8x3xf32>
      tpu.vector_store %arg29[%c0_48, %c0_49], %106 {strides = array<i32>} : memref<8x3xf32, #tpu.memory_space<vmem>>, vector<8x3xf32>,
      %cst_50 = arith.constant 0.000000e+00 : f32
      %108 = vector.broadcast %cst_50 : f32 to vector<8x384xf32>
      %c0_51 = arith.constant 0 : index
      %c0_52 = arith.constant 0 : index
      %109 = vector.load %arg30[%c0_51, %c0_52] : memref<8x384xf32, #tpu.memory_space<vmem>>, vector<8x384xf32>
      tpu.vector_store %arg30[%c0_51, %c0_52], %108 {strides = array<i32>} : memref<8x384xf32, #tpu.memory_space<vmem>>, vector<8x384xf32>,
    } else {
    }
    %c0 = arith.constant 0 : index
    %c0_1 = arith.constant 0 : index
    %3 = vector.load %arg1[%c0, %c0_1] : memref<16x8xbf16, #tpu.memory_space<vmem>>, vector<16x8xbf16>
    %c0_2 = arith.constant 0 : index
    %c0_3 = arith.constant 0 : index
    %4 = vector.load %arg2[%c0_2, %c0_3] : memref<16x8xbf16, #tpu.memory_space<vmem>>, vector<16x8xbf16>
    %c0_4 = arith.constant 0 : index
    %c0_5 = arith.constant 0 : index
    %5 = vector.load %arg3[%c0_4, %c0_5] : memref<8x27xbf16, #tpu.memory_space<vmem>>, vector<8x27xbf16>
    %c0_6 = arith.constant 0 : index
    %c0_7 = arith.constant 0 : index
    %6 = vector.load %arg8[%c0_6, %c0_7] : memref<16x128xbf16, #tpu.memory_space<vmem>>, vector<16x128xbf16>
    %c0_8 = arith.constant 0 : index
    %c0_9 = arith.constant 0 : index
    %7 = vector.load %arg9[%c0_8, %c0_9] : memref<1x128xf32, #tpu.memory_space<vmem>>, vector<1x128xf32>
    %c0_10 = arith.constant 0 : index
    %c0_11 = arith.constant 0 : index
    %8 = vector.load %arg10[%c0_10, %c0_11] : memref<1x128xf32, #tpu.memory_space<vmem>>, vector<1x128xf32>
    %c0_12 = arith.constant 0 : index
    %c0_13 = arith.constant 0 : index
    %9 = vector.load %arg11[%c0_12, %c0_13] : memref<128x128xbf16, #tpu.memory_space<vmem>>, vector<128x128xbf16>
    %c0_14 = arith.constant 0 : index
    %c0_15 = arith.constant 0 : index
    %10 = vector.load %arg12[%c0_14, %c0_15] : memref<1x128xf32, #tpu.memory_space<vmem>>, vector<1x128xf32>
    %c0_16 = arith.constant 0 : index
    %c0_17 = arith.constant 0 : index
    %11 = vector.load %arg13[%c0_16, %c0_17] : memref<128x128xbf16, #tpu.memory_space<vmem>>, vector<128x128xbf16>
    %c0_18 = arith.constant 0 : index
    %c0_19 = arith.constant 0 : index
    %12 = vector.load %arg14[%c0_18, %c0_19] : memref<1x128xf32, #tpu.memory_space<vmem>>, vector<1x128xf32>
    %c0_20 = arith.constant 0 : index
    %c0_21 = arith.constant 0 : index
    %13 = vector.load %arg15[%c0_20, %c0_21] : memref<1x128xf32, #tpu.memory_space<vmem>>, vector<1x128xf32>
    %c0_22 = arith.constant 0 : index
    %c0_23 = arith.constant 0 : index
    %14 = vector.load %arg16[%c0_22, %c0_23] : memref<1x1xf32, #tpu.memory_space<vmem>>, vector<1x1xf32>
    %cst = arith.constant dense<0.000000e+00> : vector<16x27xf32>
    %15 = tpu.matmul %4, %5, %cst {dimension_numbers = #tpu.dot_dimension_numbers<[1], [0], [0], [1], [0, 0, 1, 1], [], []>} : vector<16x8xbf16>, vector<8x27xbf16>, vector<16x27xf32> -> vector<16x27xf32>
    %cst_24 = arith.constant dense<0.000000e+00> : vector<16x27xf32>
    %16 = tpu.matmul %3, %5, %cst_24 {dimension_numbers = #tpu.dot_dimension_numbers<[1], [0], [0], [1], [0, 0, 1, 1], [], []>} : vector<16x8xbf16>, vector<8x27xbf16>, vector<16x27xf32> -> vector<16x27xf32>
    %17 = vector.extract_strided_slice %15 {offsets = [0, 0], sizes = [16, 3], strides = [1, 1]} : vector<16x27xf32> to vector<16x3xf32>
    %18 = vector.extract_strided_slice %16 {offsets = [0, 0], sizes = [16, 3], strides = [1, 1]} : vector<16x27xf32> to vector<16x3xf32>
    %19 = arith.subf %17, %18 : vector<16x3xf32>
    %20 = arith.mulf %19, %19 : vector<16x3xf32>
    %cst_25 = arith.constant dense<0.000000e+00> : vector<16xf32>
    %21 = vector.multi_reduction <add>, %20, %cst_25 [1] : vector<16x3xf32> to vector<16xf32>
    %22 = vector.shape_cast %21 : vector<16xf32> to vector<16x1xf32>
    %23 = vector.extract_strided_slice %15 {offsets = [0, 3], sizes = [16, 8], strides = [1, 1]} : vector<16x27xf32> to vector<16x8xf32>
    %24 = vector.extract_strided_slice %16 {offsets = [0, 3], sizes = [16, 8], strides = [1, 1]} : vector<16x27xf32> to vector<16x8xf32>
    %25 = tpu.concatenate %23, %24 in 1 : vector<16x8xf32>, vector<16x8xf32> -> vector<16x16xf32>
    %26 = vector.extract_strided_slice %15 {offsets = [0, 11], sizes = [16, 8], strides = [1, 1]} : vector<16x27xf32> to vector<16x8xf32>
    %27 = vector.extract_strided_slice %16 {offsets = [0, 11], sizes = [16, 8], strides = [1, 1]} : vector<16x27xf32> to vector<16x8xf32>
    %28 = tpu.concatenate %26, %27 in 1 : vector<16x8xf32>, vector<16x8xf32> -> vector<16x16xf32>
    %29 = vector.extract_strided_slice %15 {offsets = [0, 19], sizes = [16, 8], strides = [1, 1]} : vector<16x27xf32> to vector<16x8xf32>
    %30 = vector.extract_strided_slice %16 {offsets = [0, 19], sizes = [16, 8], strides = [1, 1]} : vector<16x27xf32> to vector<16x8xf32>
    %31 = tpu.concatenate %29, %30 in 1 : vector<16x8xf32>, vector<16x8xf32> -> vector<16x16xf32>
    %32 = tpu.concatenate %25, %28, %31 in 0 : vector<16x16xf32>, vector<16x16xf32>, vector<16x16xf32> -> vector<48x16xf32>
    %33 = arith.truncf %32 : vector<48x16xf32> to vector<48x16xbf16>
    %34 = tpu.concatenate %22, %22, %22 in 0 : vector<16x1xf32>, vector<16x1xf32>, vector<16x1xf32> -> vector<48x1xf32>
    %35 = vector.broadcast %34 : vector<48x1xf32> to vector<48x128xf32>
    %36 = vector.broadcast %7 : vector<1x128xf32> to vector<48x128xf32>
    %37 = arith.mulf %35, %36 : vector<48x128xf32>
    %cst_26 = arith.constant dense<0.000000e+00> : vector<48x128xf32>
    %38 = tpu.matmul %33, %6, %cst_26 {dimension_numbers = #tpu.dot_dimension_numbers<[1], [0], [0], [1], [0, 0, 1, 1], [], []>} : vector<48x16xbf16>, vector<16x128xbf16>, vector<48x128xf32> -> vector<48x128xf32>
    %39 = arith.addf %38, %37 : vector<48x128xf32>
    %40 = vector.broadcast %8 : vector<1x128xf32> to vector<48x128xf32>
    %41 = arith.addf %39, %40 : vector<48x128xf32>
    %cst_27 = arith.constant 1.000000e+00 : f32
    %42 = vector.broadcast %cst_27 : f32 to vector<48x128xf32>
    %43 = arith.mulf %42, %41 : vector<48x128xf32>
    %44 = arith.negf %43 : vector<48x128xf32>
    %45 = math.exp %44 : vector<48x128xf32>
    %cst_28 = arith.constant 1.000000e+00 : f32
    %46 = vector.broadcast %cst_28 : f32 to vector<48x128xf32>
    %47 = arith.addf %46, %45 : vector<48x128xf32>
    %48 = arith.divf %46, %47 : vector<48x128xf32>
    %49 = arith.mulf %41, %48 : vector<48x128xf32>
    %50 = arith.truncf %49 : vector<48x128xf32> to vector<48x128xbf16>
    %cst_29 = arith.constant dense<0.000000e+00> : vector<48x128xf32>
    %51 = tpu.matmul %50, %9, %cst_29 {dimension_numbers = #tpu.dot_dimension_numbers<[1], [0], [0], [1], [0, 0, 1, 1], [], []>} : vector<48x128xbf16>, vector<128x128xbf16>, vector<48x128xf32> -> vector<48x128xf32>
    %52 = vector.broadcast %10 : vector<1x128xf32> to vector<48x128xf32>
    %53 = arith.addf %51, %52 : vector<48x128xf32>
    %cst_30 = arith.constant 1.000000e+00 : f32
    %54 = vector.broadcast %cst_30 : f32 to vector<48x128xf32>
    %55 = arith.mulf %54, %53 : vector<48x128xf32>
    %56 = arith.negf %55 : vector<48x128xf32>
    %57 = math.exp %56 : vector<48x128xf32>
    %cst_31 = arith.constant 1.000000e+00 : f32
    %58 = vector.broadcast %cst_31 : f32 to vector<48x128xf32>
    %59 = arith.addf %58, %57 : vector<48x128xf32>
    %60 = arith.divf %58, %59 : vector<48x128xf32>
    %61 = arith.mulf %53, %60 : vector<48x128xf32>
    %62 = arith.truncf %61 : vector<48x128xf32> to vector<48x128xbf16>
    %cst_32 = arith.constant dense<0.000000e+00> : vector<48x128xf32>
    %63 = tpu.matmul %62, %11, %cst_32 {dimension_numbers = #tpu.dot_dimension_numbers<[1], [0], [0], [1], [0, 0, 1, 1], [], []>} : vector<48x128xbf16>, vector<128x128xbf16>, vector<48x128xf32> -> vector<48x128xf32>
    %64 = vector.broadcast %12 : vector<1x128xf32> to vector<48x128xf32>
    %65 = arith.addf %63, %64 : vector<48x128xf32>
    %cst_33 = arith.constant 1.000000e+00 : f32
    %66 = vector.broadcast %cst_33 : f32 to vector<48x128xf32>
    %67 = arith.mulf %66, %65 : vector<48x128xf32>
    %68 = arith.negf %67 : vector<48x128xf32>
    %69 = math.exp %68 : vector<48x128xf32>
    %cst_34 = arith.constant 1.000000e+00 : f32
    %70 = vector.broadcast %cst_34 : f32 to vector<48x128xf32>
    %71 = arith.addf %70, %69 : vector<48x128xf32>
    %72 = arith.divf %70, %71 : vector<48x128xf32>
    %73 = arith.mulf %65, %72 : vector<48x128xf32>
    %74 = vector.broadcast %13 : vector<1x128xf32> to vector<48x128xf32>
    %75 = arith.mulf %73, %74 : vector<48x128xf32>
    %cst_35 = arith.constant dense<0.000000e+00> : vector<48xf32>
    %76 = vector.multi_reduction <add>, %75, %cst_35 [1] : vector<48x128xf32> to vector<48xf32>
    %77 = vector.shape_cast %76 : vector<48xf32> to vector<48x1xf32>
    %78 = vector.broadcast %14 : vector<1x1xf32> to vector<48x1xf32>
    %79 = arith.addf %77, %78 : vector<48x1xf32>
    %80 = vector.extract_strided_slice %19 {offsets = [0, 0], sizes = [16, 1], strides = [1, 1]} : vector<16x3xf32> to vector<16x1xf32>
    %81 = vector.extract_strided_slice %79 {offsets = [0, 0], sizes = [16, 1], strides = [1, 1]} : vector<48x1xf32> to vector<16x1xf32>
    %82 = arith.mulf %80, %81 : vector<16x1xf32>
    %83 = vector.extract_strided_slice %19 {offsets = [0, 1], sizes = [16, 1], strides = [1, 1]} : vector<16x3xf32> to vector<16x1xf32>
    %84 = vector.extract_strided_slice %79 {offsets = [16, 0], sizes = [16, 1], strides = [1, 1]} : vector<48x1xf32> to vector<16x1xf32>
    %85 = arith.mulf %83, %84 : vector<16x1xf32>
    %86 = vector.extract_strided_slice %19 {offsets = [0, 2], sizes = [16, 1], strides = [1, 1]} : vector<16x3xf32> to vector<16x1xf32>
    %87 = vector.extract_strided_slice %79 {offsets = [32, 0], sizes = [16, 1], strides = [1, 1]} : vector<48x1xf32> to vector<16x1xf32>
    %88 = arith.mulf %86, %87 : vector<16x1xf32>
    %89 = tpu.concatenate %82, %85, %88 in 1 : vector<16x1xf32>, vector<16x1xf32>, vector<16x1xf32> -> vector<16x3xf32>
    %90 = vector.extract_strided_slice %62 {offsets = [0, 0], sizes = [16, 128], strides = [1, 1]} : vector<48x128xbf16> to vector<16x128xbf16>
    %91 = vector.extract_strided_slice %62 {offsets = [16, 0], sizes = [16, 128], strides = [1, 1]} : vector<48x128xbf16> to vector<16x128xbf16>
    %92 = vector.extract_strided_slice %62 {offsets = [32, 0], sizes = [16, 128], strides = [1, 1]} : vector<48x128xbf16> to vector<16x128xbf16>
    %93 = tpu.concatenate %90, %91, %92 in 1 : vector<16x128xbf16>, vector<16x128xbf16>, vector<16x128xbf16> -> vector<16x384xbf16>
    %c0_36 = arith.constant 0 : index
    %c0_37 = arith.constant 0 : index
    %94 = vector.load %arg29[%c0_36, %c0_37] : memref<8x3xf32, #tpu.memory_space<vmem>>, vector<8x3xf32>
    %95 = arith.truncf %89 : vector<16x3xf32> to vector<16x3xbf16>
    %cst_38 = arith.constant dense<0.000000e+00> : vector<8x3xf32>
    %96 = tpu.matmul %4, %95, %cst_38 {dimension_numbers = #tpu.dot_dimension_numbers<[0], [0], [1], [1], [0, 1, 1, 1], [], []>} : vector<16x8xbf16>, vector<16x3xbf16>, vector<8x3xf32> -> vector<8x3xf32>
    %97 = arith.addf %94, %96 : vector<8x3xf32>
    %c0_39 = arith.constant 0 : index
    %c0_40 = arith.constant 0 : index
    %98 = vector.load %arg29[%c0_39, %c0_40] : memref<8x3xf32, #tpu.memory_space<vmem>>, vector<8x3xf32>
    tpu.vector_store %arg29[%c0_39, %c0_40], %97 {strides = array<i32>} : memref<8x3xf32, #tpu.memory_space<vmem>>, vector<8x3xf32>,
    %c0_41 = arith.constant 0 : index
    %c0_42 = arith.constant 0 : index
    %99 = vector.load %arg30[%c0_41, %c0_42] : memref<8x384xf32, #tpu.memory_space<vmem>>, vector<8x384xf32>
    %cst_43 = arith.constant dense<0.000000e+00> : vector<8x384xf32>
    %100 = tpu.matmul %4, %93, %cst_43 {dimension_numbers = #tpu.dot_dimension_numbers<[0], [0], [1], [1], [0, 1, 1, 1], [], []>} : vector<16x8xbf16>, vector<16x384xbf16>, vector<8x384xf32> -> vector<8x384xf32>
    %101 = arith.addf %99, %100 : vector<8x384xf32>
    %c0_44 = arith.constant 0 : index
    %c0_45 = arith.constant 0 : index
    %102 = vector.load %arg30[%c0_44, %c0_45] : memref<8x384xf32, #tpu.memory_space<vmem>>, vector<8x384xf32>
    tpu.vector_store %arg30[%c0_44, %c0_45], %101 {strides = array<i32>} : memref<8x384xf32, #tpu.memory_space<vmem>>, vector<8x384xf32>,
    %c2_i32 = arith.constant 2 : i32
    %103 = arith.cmpi eq, %arg0, %c2_i32 : i32
    %104 = arith.extui %103 : i1 to i32
    %c0_i32_46 = arith.constant 0 : i32
    %105 = arith.cmpi ne, %104, %c0_i32_46 : i32
    scf.if %105 {
      %c0_47 = arith.constant 0 : index
      %c0_48 = arith.constant 0 : index
      %106 = vector.load %arg6[%c0_47, %c0_48] : memref<8x3xf32, #tpu.memory_space<vmem>>, vector<8x3xf32>
      %c0_49 = arith.constant 0 : index
      %c0_50 = arith.constant 0 : index
      %107 = vector.load %arg7[%c0_49, %c0_50] : memref<8x1xf32, #tpu.memory_space<vmem>>, vector<8x1xf32>
      %c0_51 = arith.constant 0 : index
      %c0_52 = arith.constant 0 : index
      %108 = vector.load %arg5[%c0_51, %c0_52] : memref<8x3xf32, #tpu.memory_space<vmem>>, vector<8x3xf32>
      %c0_53 = arith.constant 0 : index
      %c0_54 = arith.constant 0 : index
      %109 = vector.load %arg22[%c0_53, %c0_54] : memref<8x128xbf16, #tpu.memory_space<vmem>>, vector<8x128xbf16>
      %c0_55 = arith.constant 0 : index
      %c0_56 = arith.constant 0 : index
      %110 = vector.load %arg23[%c0_55, %c0_56] : memref<1x128xf32, #tpu.memory_space<vmem>>, vector<1x128xf32>
      %c0_57 = arith.constant 0 : index
      %c0_58 = arith.constant 0 : index
      %111 = vector.load %arg24[%c0_57, %c0_58] : memref<1x128xf32, #tpu.memory_space<vmem>>, vector<1x128xf32>
      %c0_59 = arith.constant 0 : index
      %c0_60 = arith.constant 0 : index
      %112 = vector.load %arg25[%c0_59, %c0_60] : memref<1x1xf32, #tpu.memory_space<vmem>>, vector<1x1xf32>
      %c0_61 = arith.constant 0 : index
      %c0_62 = arith.constant 0 : index
      %113 = vector.load %arg17[%c0_61, %c0_62] : memref<8x128xbf16, #tpu.memory_space<vmem>>, vector<8x128xbf16>
      %c0_63 = arith.constant 0 : index
      %c0_64 = arith.constant 0 : index
      %114 = vector.load %arg18[%c0_63, %c0_64] : memref<128x128xbf16, #tpu.memory_space<vmem>>, vector<128x128xbf16>
      %c0_65 = arith.constant 0 : index
      %c0_66 = arith.constant 0 : index
      %115 = vector.load %arg19[%c0_65, %c0_66] : memref<1x128xf32, #tpu.memory_space<vmem>>, vector<1x128xf32>
      %c0_67 = arith.constant 0 : index
      %c0_68 = arith.constant 0 : index
      %116 = vector.load %arg20[%c0_67, %c0_68] : memref<128x8xbf16, #tpu.memory_space<vmem>>, vector<128x8xbf16>
      %c0_69 = arith.constant 0 : index
      %c0_70 = arith.constant 0 : index
      %117 = vector.load %arg21[%c0_69, %c0_70] : memref<1x8xf32, #tpu.memory_space<vmem>>, vector<1x8xf32>
      %c0_71 = arith.constant 0 : index
      %c0_72 = arith.constant 0 : index
      %c0_73 = arith.constant 0 : index
      %118 = vector.load %arg4[%c0_71, %c0_72, %c0_73] : memref<3x8x8xf32, #tpu.memory_space<vmem>>, vector<1x8x8xf32>
      %119 = vector.shape_cast %118 : vector<1x8x8xf32> to vector<8x8xf32>
      %120 = arith.truncf %119 : vector<8x8xf32> to vector<8x8xbf16>
      %cst_74 = arith.constant dense<0.000000e+00> : vector<8x128xf32>
      %121 = tpu.matmul %120, %109, %cst_74 {dimension_numbers = #tpu.dot_dimension_numbers<[1], [0], [0], [1], [0, 0, 1, 1], [], []>} : vector<8x8xbf16>, vector<8x128xbf16>, vector<8x128xf32> -> vector<8x128xf32>
      %122 = vector.broadcast %110 : vector<1x128xf32> to vector<8x128xf32>
      %123 = arith.addf %121, %122 : vector<8x128xf32>
      %cst_75 = arith.constant 1.000000e+00 : f32
      %124 = vector.broadcast %cst_75 : f32 to vector<8x128xf32>
      %125 = arith.mulf %124, %123 : vector<8x128xf32>
      %126 = arith.negf %125 : vector<8x128xf32>
      %127 = math.exp %126 : vector<8x128xf32>
      %cst_76 = arith.constant 1.000000e+00 : f32
      %128 = vector.broadcast %cst_76 : f32 to vector<8x128xf32>
      %129 = arith.addf %128, %127 : vector<8x128xf32>
      %130 = arith.divf %128, %129 : vector<8x128xf32>
      %131 = arith.mulf %123, %130 : vector<8x128xf32>
      %132 = vector.broadcast %111 : vector<1x128xf32> to vector<8x128xf32>
      %133 = arith.mulf %131, %132 : vector<8x128xf32>
      %cst_77 = arith.constant dense<0.000000e+00> : vector<8xf32>
      %134 = vector.multi_reduction <add>, %133, %cst_77 [1] : vector<8x128xf32> to vector<8xf32>
      %135 = vector.shape_cast %134 : vector<8xf32> to vector<8x1xf32>
      %136 = vector.broadcast %112 : vector<1x1xf32> to vector<8x1xf32>
      %137 = arith.addf %135, %136 : vector<8x1xf32>
      %138 = vector.extract_strided_slice %106 {offsets = [0, 0], sizes = [8, 1], strides = [1, 1]} : vector<8x3xf32> to vector<8x1xf32>
      %139 = arith.mulf %138, %137 : vector<8x1xf32>
      %c0_78 = arith.constant 0 : index
      %c0_79 = arith.constant 0 : index
      %140 = vector.load %arg30[%c0_78, %c0_79] : memref<8x384xf32, #tpu.memory_space<vmem>>, vector<8x128xf32>
      %141 = arith.truncf %140 : vector<8x128xf32> to vector<8x128xbf16>
      %cst_80 = arith.constant dense<0.000000e+00> : vector<8x128xf32>
      %142 = tpu.matmul %120, %113, %cst_80 {dimension_numbers = #tpu.dot_dimension_numbers<[1], [0], [0], [1], [0, 0, 1, 1], [], []>} : vector<8x8xbf16>, vector<8x128xbf16>, vector<8x128xf32> -> vector<8x128xf32>
      %cst_81 = arith.constant dense<0.000000e+00> : vector<8x128xf32>
      %143 = tpu.matmul %141, %114, %cst_81 {dimension_numbers = #tpu.dot_dimension_numbers<[1], [0], [0], [1], [0, 0, 1, 1], [], []>} : vector<8x128xbf16>, vector<128x128xbf16>, vector<8x128xf32> -> vector<8x128xf32>
      %144 = arith.addf %142, %143 : vector<8x128xf32>
      %145 = vector.broadcast %115 : vector<1x128xf32> to vector<8x128xf32>
      %146 = arith.addf %144, %145 : vector<8x128xf32>
      %cst_82 = arith.constant 1.000000e+00 : f32
      %147 = vector.broadcast %cst_82 : f32 to vector<8x128xf32>
      %148 = arith.mulf %147, %146 : vector<8x128xf32>
      %149 = arith.negf %148 : vector<8x128xf32>
      %150 = math.exp %149 : vector<8x128xf32>
      %cst_83 = arith.constant 1.000000e+00 : f32
      %151 = vector.broadcast %cst_83 : f32 to vector<8x128xf32>
      %152 = arith.addf %151, %150 : vector<8x128xf32>
      %153 = arith.divf %151, %152 : vector<8x128xf32>
      %154 = arith.mulf %146, %153 : vector<8x128xf32>
      %155 = arith.truncf %154 : vector<8x128xf32> to vector<8x128xbf16>
      %cst_84 = arith.constant dense<0.000000e+00> : vector<8x8xf32>
      %156 = tpu.matmul %155, %116, %cst_84 {dimension_numbers = #tpu.dot_dimension_numbers<[1], [0], [0], [1], [0, 0, 1, 1], [], []>} : vector<8x128xbf16>, vector<128x8xbf16>, vector<8x8xf32> -> vector<8x8xf32>
      %157 = vector.broadcast %117 : vector<1x8xf32> to vector<8x8xf32>
      %158 = arith.addf %156, %157 : vector<8x8xf32>
      %159 = arith.addf %119, %158 : vector<8x8xf32>
      %c0_85 = arith.constant 0 : index
      %c0_86 = arith.constant 0 : index
      %c0_87 = arith.constant 0 : index
      %160 = vector.load %arg27[%c0_85, %c0_86, %c0_87] : memref<3x8x8xf32, #tpu.memory_space<vmem>>, vector<1x8x8xf32>
      %161 = vector.shape_cast %160 : vector<1x8x8xf32> to vector<8x8xf32>
      %162 = vector.shape_cast %159 : vector<8x8xf32> to vector<1x8x8xf32>
      tpu.vector_store %arg27[%c0_85, %c0_86, %c0_87], %162 {strides = array<i32>} : memref<3x8x8xf32, #tpu.memory_space<vmem>>, vector<1x8x8xf32>,
      %c1 = arith.constant 1 : index
      %c0_88 = arith.constant 0 : index
      %c0_89 = arith.constant 0 : index
      %163 = vector.load %arg4[%c1, %c0_88, %c0_89] : memref<3x8x8xf32, #tpu.memory_space<vmem>>, vector<1x8x8xf32>
      %164 = vector.shape_cast %163 : vector<1x8x8xf32> to vector<8x8xf32>
      %165 = arith.truncf %164 : vector<8x8xf32> to vector<8x8xbf16>
      %cst_90 = arith.constant dense<0.000000e+00> : vector<8x128xf32>
      %166 = tpu.matmul %165, %109, %cst_90 {dimension_numbers = #tpu.dot_dimension_numbers<[1], [0], [0], [1], [0, 0, 1, 1], [], []>} : vector<8x8xbf16>, vector<8x128xbf16>, vector<8x128xf32> -> vector<8x128xf32>
      %167 = vector.broadcast %110 : vector<1x128xf32> to vector<8x128xf32>
      %168 = arith.addf %166, %167 : vector<8x128xf32>
      %cst_91 = arith.constant 1.000000e+00 : f32
      %169 = vector.broadcast %cst_91 : f32 to vector<8x128xf32>
      %170 = arith.mulf %169, %168 : vector<8x128xf32>
      %171 = arith.negf %170 : vector<8x128xf32>
      %172 = math.exp %171 : vector<8x128xf32>
      %cst_92 = arith.constant 1.000000e+00 : f32
      %173 = vector.broadcast %cst_92 : f32 to vector<8x128xf32>
      %174 = arith.addf %173, %172 : vector<8x128xf32>
      %175 = arith.divf %173, %174 : vector<8x128xf32>
      %176 = arith.mulf %168, %175 : vector<8x128xf32>
      %177 = vector.broadcast %111 : vector<1x128xf32> to vector<8x128xf32>
      %178 = arith.mulf %176, %177 : vector<8x128xf32>
      %cst_93 = arith.constant dense<0.000000e+00> : vector<8xf32>
      %179 = vector.multi_reduction <add>, %178, %cst_93 [1] : vector<8x128xf32> to vector<8xf32>
      %180 = vector.shape_cast %179 : vector<8xf32> to vector<8x1xf32>
      %181 = vector.broadcast %112 : vector<1x1xf32> to vector<8x1xf32>
      %182 = arith.addf %180, %181 : vector<8x1xf32>
      %183 = vector.extract_strided_slice %106 {offsets = [0, 1], sizes = [8, 1], strides = [1, 1]} : vector<8x3xf32> to vector<8x1xf32>
      %184 = arith.mulf %183, %182 : vector<8x1xf32>
      %c0_94 = arith.constant 0 : index
      %c128 = arith.constant 128 : index
      %185 = vector.load %arg30[%c0_94, %c128] : memref<8x384xf32, #tpu.memory_space<vmem>>, vector<8x128xf32>
      %186 = arith.truncf %185 : vector<8x128xf32> to vector<8x128xbf16>
      %cst_95 = arith.constant dense<0.000000e+00> : vector<8x128xf32>
      %187 = tpu.matmul %165, %113, %cst_95 {dimension_numbers = #tpu.dot_dimension_numbers<[1], [0], [0], [1], [0, 0, 1, 1], [], []>} : vector<8x8xbf16>, vector<8x128xbf16>, vector<8x128xf32> -> vector<8x128xf32>
      %cst_96 = arith.constant dense<0.000000e+00> : vector<8x128xf32>
      %188 = tpu.matmul %186, %114, %cst_96 {dimension_numbers = #tpu.dot_dimension_numbers<[1], [0], [0], [1], [0, 0, 1, 1], [], []>} : vector<8x128xbf16>, vector<128x128xbf16>, vector<8x128xf32> -> vector<8x128xf32>
      %189 = arith.addf %187, %188 : vector<8x128xf32>
      %190 = vector.broadcast %115 : vector<1x128xf32> to vector<8x128xf32>
      %191 = arith.addf %189, %190 : vector<8x128xf32>
      %cst_97 = arith.constant 1.000000e+00 : f32
      %192 = vector.broadcast %cst_97 : f32 to vector<8x128xf32>
      %193 = arith.mulf %192, %191 : vector<8x128xf32>
      %194 = arith.negf %193 : vector<8x128xf32>
      %195 = math.exp %194 : vector<8x128xf32>
      %cst_98 = arith.constant 1.000000e+00 : f32
      %196 = vector.broadcast %cst_98 : f32 to vector<8x128xf32>
      %197 = arith.addf %196, %195 : vector<8x128xf32>
      %198 = arith.divf %196, %197 : vector<8x128xf32>
      %199 = arith.mulf %191, %198 : vector<8x128xf32>
      %200 = arith.truncf %199 : vector<8x128xf32> to vector<8x128xbf16>
      %cst_99 = arith.constant dense<0.000000e+00> : vector<8x8xf32>
      %201 = tpu.matmul %200, %116, %cst_99 {dimension_numbers = #tpu.dot_dimension_numbers<[1], [0], [0], [1], [0, 0, 1, 1], [], []>} : vector<8x128xbf16>, vector<128x8xbf16>, vector<8x8xf32> -> vector<8x8xf32>
      %202 = vector.broadcast %117 : vector<1x8xf32> to vector<8x8xf32>
      %203 = arith.addf %201, %202 : vector<8x8xf32>
      %204 = arith.addf %164, %203 : vector<8x8xf32>
      %c1_100 = arith.constant 1 : index
      %c0_101 = arith.constant 0 : index
      %c0_102 = arith.constant 0 : index
      %205 = vector.load %arg27[%c1_100, %c0_101, %c0_102] : memref<3x8x8xf32, #tpu.memory_space<vmem>>, vector<1x8x8xf32>
      %206 = vector.shape_cast %205 : vector<1x8x8xf32> to vector<8x8xf32>
      %207 = vector.shape_cast %204 : vector<8x8xf32> to vector<1x8x8xf32>
      tpu.vector_store %arg27[%c1_100, %c0_101, %c0_102], %207 {strides = array<i32>} : memref<3x8x8xf32, #tpu.memory_space<vmem>>, vector<1x8x8xf32>,
      %c2 = arith.constant 2 : index
      %c0_103 = arith.constant 0 : index
      %c0_104 = arith.constant 0 : index
      %208 = vector.load %arg4[%c2, %c0_103, %c0_104] : memref<3x8x8xf32, #tpu.memory_space<vmem>>, vector<1x8x8xf32>
      %209 = vector.shape_cast %208 : vector<1x8x8xf32> to vector<8x8xf32>
      %210 = arith.truncf %209 : vector<8x8xf32> to vector<8x8xbf16>
      %cst_105 = arith.constant dense<0.000000e+00> : vector<8x128xf32>
      %211 = tpu.matmul %210, %109, %cst_105 {dimension_numbers = #tpu.dot_dimension_numbers<[1], [0], [0], [1], [0, 0, 1, 1], [], []>} : vector<8x8xbf16>, vector<8x128xbf16>, vector<8x128xf32> -> vector<8x128xf32>
      %212 = vector.broadcast %110 : vector<1x128xf32> to vector<8x128xf32>
      %213 = arith.addf %211, %212 : vector<8x128xf32>
      %cst_106 = arith.constant 1.000000e+00 : f32
      %214 = vector.broadcast %cst_106 : f32 to vector<8x128xf32>
      %215 = arith.mulf %214, %213 : vector<8x128xf32>
      %216 = arith.negf %215 : vector<8x128xf32>
      %217 = math.exp %216 : vector<8x128xf32>
      %cst_107 = arith.constant 1.000000e+00 : f32
      %218 = vector.broadcast %cst_107 : f32 to vector<8x128xf32>
      %219 = arith.addf %218, %217 : vector<8x128xf32>
      %220 = arith.divf %218, %219 : vector<8x128xf32>
      %221 = arith.mulf %213, %220 : vector<8x128xf32>
      %222 = vector.broadcast %111 : vector<1x128xf32> to vector<8x128xf32>
      %223 = arith.mulf %221, %222 : vector<8x128xf32>
      %cst_108 = arith.constant dense<0.000000e+00> : vector<8xf32>
      %224 = vector.multi_reduction <add>, %223, %cst_108 [1] : vector<8x128xf32> to vector<8xf32>
      %225 = vector.shape_cast %224 : vector<8xf32> to vector<8x1xf32>
      %226 = vector.broadcast %112 : vector<1x1xf32> to vector<8x1xf32>
      %227 = arith.addf %225, %226 : vector<8x1xf32>
      %228 = vector.extract_strided_slice %106 {offsets = [0, 2], sizes = [8, 1], strides = [1, 1]} : vector<8x3xf32> to vector<8x1xf32>
      %229 = arith.mulf %228, %227 : vector<8x1xf32>
      %c0_109 = arith.constant 0 : index
      %c256 = arith.constant 256 : index
      %230 = vector.load %arg30[%c0_109, %c256] : memref<8x384xf32, #tpu.memory_space<vmem>>, vector<8x128xf32>
      %231 = arith.truncf %230 : vector<8x128xf32> to vector<8x128xbf16>
      %cst_110 = arith.constant dense<0.000000e+00> : vector<8x128xf32>
      %232 = tpu.matmul %210, %113, %cst_110 {dimension_numbers = #tpu.dot_dimension_numbers<[1], [0], [0], [1], [0, 0, 1, 1], [], []>} : vector<8x8xbf16>, vector<8x128xbf16>, vector<8x128xf32> -> vector<8x128xf32>
      %cst_111 = arith.constant dense<0.000000e+00> : vector<8x128xf32>
      %233 = tpu.matmul %231, %114, %cst_111 {dimension_numbers = #tpu.dot_dimension_numbers<[1], [0], [0], [1], [0, 0, 1, 1], [], []>} : vector<8x128xbf16>, vector<128x128xbf16>, vector<8x128xf32> -> vector<8x128xf32>
      %234 = arith.addf %232, %233 : vector<8x128xf32>
      %235 = vector.broadcast %115 : vector<1x128xf32> to vector<8x128xf32>
      %236 = arith.addf %234, %235 : vector<8x128xf32>
      %cst_112 = arith.constant 1.000000e+00 : f32
      %237 = vector.broadcast %cst_112 : f32 to vector<8x128xf32>
      %238 = arith.mulf %237, %236 : vector<8x128xf32>
      %239 = arith.negf %238 : vector<8x128xf32>
      %240 = math.exp %239 : vector<8x128xf32>
      %cst_113 = arith.constant 1.000000e+00 : f32
      %241 = vector.broadcast %cst_113 : f32 to vector<8x128xf32>
      %242 = arith.addf %241, %240 : vector<8x128xf32>
      %243 = arith.divf %241, %242 : vector<8x128xf32>
      %244 = arith.mulf %236, %243 : vector<8x128xf32>
      %245 = arith.truncf %244 : vector<8x128xf32> to vector<8x128xbf16>
      %cst_114 = arith.constant dense<0.000000e+00> : vector<8x8xf32>
      %246 = tpu.matmul %245, %116, %cst_114 {dimension_numbers = #tpu.dot_dimension_numbers<[1], [0], [0], [1], [0, 0, 1, 1], [], []>} : vector<8x128xbf16>, vector<128x8xbf16>, vector<8x8xf32> -> vector<8x8xf32>
      %247 = vector.broadcast %117 : vector<1x8xf32> to vector<8x8xf32>
      %248 = arith.addf %246, %247 : vector<8x8xf32>
      %249 = arith.addf %209, %248 : vector<8x8xf32>
      %c2_115 = arith.constant 2 : index
      %c0_116 = arith.constant 0 : index
      %c0_117 = arith.constant 0 : index
      %250 = vector.load %arg27[%c2_115, %c0_116, %c0_117] : memref<3x8x8xf32, #tpu.memory_space<vmem>>, vector<1x8x8xf32>
      %251 = vector.shape_cast %250 : vector<1x8x8xf32> to vector<8x8xf32>
      %252 = vector.shape_cast %249 : vector<8x8xf32> to vector<1x8x8xf32>
      tpu.vector_store %arg27[%c2_115, %c0_116, %c0_117], %252 {strides = array<i32>} : memref<3x8x8xf32, #tpu.memory_space<vmem>>, vector<1x8x8xf32>,
      %253 = tpu.concatenate %139, %184, %229 in 1 : vector<8x1xf32>, vector<8x1xf32>, vector<8x1xf32> -> vector<8x3xf32>
      %c0_118 = arith.constant 0 : index
      %c0_119 = arith.constant 0 : index
      %254 = vector.load %arg29[%c0_118, %c0_119] : memref<8x3xf32, #tpu.memory_space<vmem>>, vector<8x3xf32>
      %255 = vector.broadcast %107 : vector<8x1xf32> to vector<8x3xf32>
      %256 = arith.mulf %255, %254 : vector<8x3xf32>
      %257 = arith.addf %108, %256 : vector<8x3xf32>
      %258 = arith.addf %257, %253 : vector<8x3xf32>
      %c0_120 = arith.constant 0 : index
      %c0_121 = arith.constant 0 : index
      %259 = vector.load %arg26[%c0_120, %c0_121] : memref<8x3xf32, #tpu.memory_space<vmem>>, vector<8x3xf32>
      tpu.vector_store %arg26[%c0_120, %c0_121], %258 {strides = array<i32>} : memref<8x3xf32, #tpu.memory_space<vmem>>, vector<8x3xf32>,
      %c0_122 = arith.constant 0 : index
      %c0_123 = arith.constant 0 : index
      %260 = vector.load %arg28[%c0_122, %c0_123] : memref<8x3xf32, #tpu.memory_space<vmem>>, vector<8x3xf32>
      tpu.vector_store %arg28[%c0_122, %c0_123], %253 {strides = array<i32>} : memref<8x3xf32, #tpu.memory_space<vmem>>, vector<8x3xf32>,
    } else {
    }
    return
  }
  func.func @transform_0(%arg0: i32) -> (i32, i32) {
    %c0_i32 = arith.constant 0 : i32
    %c0_i32_0 = arith.constant 0 : i32
    return %arg0, %c0_i32 : i32, i32
  }
  func.func @transform_1(%arg0: i32) -> (i32, i32) {
    %c0_i32 = arith.constant 0 : i32
    %c0_i32_0 = arith.constant 0 : i32
    return %arg0, %c0_i32 : i32, i32
  }
  func.func @transform_2(%arg0: i32) -> (i32, i32) {
    %c0_i32 = arith.constant 0 : i32
    %c0_i32_0 = arith.constant 0 : i32
    %c0_i32_1 = arith.constant 0 : i32
    return %c0_i32, %c0_i32_0 : i32, i32
  }
  func.func @transform_3(%arg0: i32) -> (i32, i32, i32) {
    %c0_i32 = arith.constant 0 : i32
    %c0_i32_0 = arith.constant 0 : i32
    %c0_i32_1 = arith.constant 0 : i32
    %c0_i32_2 = arith.constant 0 : i32
    return %c0_i32, %c0_i32_0, %c0_i32_1 : i32, i32, i32
  }
  func.func @transform_4(%arg0: i32) -> (i32, i32) {
    %c0_i32 = arith.constant 0 : i32
    %c0_i32_0 = arith.constant 0 : i32
    %c0_i32_1 = arith.constant 0 : i32
    return %c0_i32, %c0_i32_0 : i32, i32
  }
  func.func @transform_5(%arg0: i32) -> (i32, i32) {
    %c0_i32 = arith.constant 0 : i32
    %c0_i32_0 = arith.constant 0 : i32
    %c0_i32_1 = arith.constant 0 : i32
    return %c0_i32, %c0_i32_0 : i32, i32
  }
  func.func @transform_6(%arg0: i32) -> (i32, i32) {
    %c0_i32 = arith.constant 0 : i32
    %c0_i32_0 = arith.constant 0 : i32
    %c0_i32_1 = arith.constant 0 : i32
    return %c0_i32, %c0_i32_0 : i32, i32
  }
  func.func @transform_7(%arg0: i32) -> (i32, i32) {
    %c0_i32 = arith.constant 0 : i32
    %c0_i32_0 = arith.constant 0 : i32
    %c0_i32_1 = arith.constant 0 : i32
    return %c0_i32, %c0_i32_0 : i32, i32
  }
  func.func @transform_8(%arg0: i32) -> (i32, i32) {
    %c0_i32 = arith.constant 0 : i32
    %c0_i32_0 = arith.constant 0 : i32
    %c0_i32_1 = arith.constant 0 : i32
    return %c0_i32, %c0_i32_0 : i32, i32
  }
  func.func @transform_9(%arg0: i32) -> (i32, i32) {
    %c0_i32 = arith.constant 0 : i32
    %c0_i32_0 = arith.constant 0 : i32
    %c0_i32_1 = arith.constant 0 : i32
    return %c0_i32, %c0_i32_0 : i32, i32
  }
  func.func @transform_10(%arg0: i32) -> (i32, i32) {
    %c0_i32 = arith.constant 0 : i32
    %c0_i32_0 = arith.constant 0 : i32
    %c0_i32_1 = arith.constant 0 : i32
    return %c0_i32, %c0_i32_0 : i32, i32
  }
  func.func @transform_11(%arg0: i32) -> (i32, i32) {
    %c0_i32 = arith.constant 0 : i32
    %c0_i32_0 = arith.constant 0 : i32
    %c0_i32_1 = arith.constant 0 : i32
    return %c0_i32, %c0_i32_0 : i32, i32
  }
  func.func @transform_12(%arg0: i32) -> (i32, i32) {
    %c0_i32 = arith.constant 0 : i32
    %c0_i32_0 = arith.constant 0 : i32
    %c0_i32_1 = arith.constant 0 : i32
    return %c0_i32, %c0_i32_0 : i32, i32
  }
  func.func @transform_13(%arg0: i32) -> (i32, i32) {
    %c0_i32 = arith.constant 0 : i32
    %c0_i32_0 = arith.constant 0 : i32
    %c0_i32_1 = arith.constant 0 : i32
    return %c0_i32, %c0_i32_0 : i32, i32
  }
  func.func @transform_14(%arg0: i32) -> (i32, i32) {
    %c0_i32 = arith.constant 0 : i32
    %c0_i32_0 = arith.constant 0 : i32
    %c0_i32_1 = arith.constant 0 : i32
    return %c0_i32, %c0_i32_0 : i32, i32
  }
  func.func @transform_15(%arg0: i32) -> (i32, i32) {
    %c0_i32 = arith.constant 0 : i32
    %c0_i32_0 = arith.constant 0 : i32
    %c0_i32_1 = arith.constant 0 : i32
    return %c0_i32, %c0_i32_0 : i32, i32
  }
  func.func @transform_16(%arg0: i32) -> (i32, i32) {
    %c0_i32 = arith.constant 0 : i32
    %c0_i32_0 = arith.constant 0 : i32
    %c0_i32_1 = arith.constant 0 : i32
    return %c0_i32, %c0_i32_0 : i32, i32
  }
  func.func @transform_17(%arg0: i32) -> (i32, i32) {
    %c0_i32 = arith.constant 0 : i32
    %c0_i32_0 = arith.constant 0 : i32
    %c0_i32_1 = arith.constant 0 : i32
    return %c0_i32, %c0_i32_0 : i32, i32
  }
  func.func @transform_18(%arg0: i32) -> (i32, i32) {
    %c0_i32 = arith.constant 0 : i32
    %c0_i32_0 = arith.constant 0 : i32
    %c0_i32_1 = arith.constant 0 : i32
    return %c0_i32, %c0_i32_0 : i32, i32
  }
  func.func @transform_19(%arg0: i32) -> (i32, i32) {
    %c0_i32 = arith.constant 0 : i32
    %c0_i32_0 = arith.constant 0 : i32
    %c0_i32_1 = arith.constant 0 : i32
    return %c0_i32, %c0_i32_0 : i32, i32
  }
  func.func @transform_20(%arg0: i32) -> (i32, i32) {
    %c0_i32 = arith.constant 0 : i32
    %c0_i32_0 = arith.constant 0 : i32
    %c0_i32_1 = arith.constant 0 : i32
    return %c0_i32, %c0_i32_0 : i32, i32
  }
  func.func @transform_21(%arg0: i32) -> (i32, i32) {
    %c0_i32 = arith.constant 0 : i32
    %c0_i32_0 = arith.constant 0 : i32
    %c0_i32_1 = arith.constant 0 : i32
    return %c0_i32, %c0_i32_0 : i32, i32
  }
  func.func @transform_22(%arg0: i32) -> (i32, i32) {
    %c0_i32 = arith.constant 0 : i32
    %c0_i32_0 = arith.constant 0 : i32
    %c0_i32_1 = arith.constant 0 : i32
    return %c0_i32, %c0_i32_0 : i32, i32
  }
  func.func @transform_23(%arg0: i32) -> (i32, i32) {
    %c0_i32 = arith.constant 0 : i32
    %c0_i32_0 = arith.constant 0 : i32
    %c0_i32_1 = arith.constant 0 : i32
    return %c0_i32, %c0_i32_0 : i32, i32
  }
  func.func @transform_24(%arg0: i32) -> (i32, i32) {
    %c0_i32 = arith.constant 0 : i32
    %c0_i32_0 = arith.constant 0 : i32
    %c0_i32_1 = arith.constant 0 : i32
    return %c0_i32, %c0_i32_0 : i32, i32
  }
  func.func @transform_25(%arg0: i32) -> (i32, i32) {
    %c0_i32 = arith.constant 0 : i32
    %c0_i32_0 = arith.constant 0 : i32
    %c0_i32_1 = arith.constant 0 : i32
    return %c0_i32, %c0_i32_0 : i32, i32
  }
  func.func @transform_26(%arg0: i32) -> (i32, i32, i32) {
    %c0_i32 = arith.constant 0 : i32
    %c0_i32_0 = arith.constant 0 : i32
    %c0_i32_1 = arith.constant 0 : i32
    %c0_i32_2 = arith.constant 0 : i32
    return %c0_i32, %c0_i32_0, %c0_i32_1 : i32, i32, i32
  }
  func.func @transform_27(%arg0: i32) -> (i32, i32) {
    %c0_i32 = arith.constant 0 : i32
    %c0_i32_0 = arith.constant 0 : i32
    %c0_i32_1 = arith.constant 0 : i32
    return %c0_i32, %c0_i32_0 : i32, i32
  }
}

</mosaic_0001>

<llo_original>
// kernel: tpu_custom_call.1
$region0: #{tpu_custom_call.1}
  #allocation0 [shape = 'u32[]', space=smem, size = 0x4, offset = 0x4, fixed_abs, tag = 'smem constant byte address 0x4 - core index']
  #allocation1 [shape = 'u32[144,128]{1,0:T(1,128)}', space=vmem, size = 0x12000, scoped, tag = 'internal scratch']
  #allocation2 [shape = 'f32[8,3]{1,0:T(8,128)}', space=vmem, size = 0x1000, scoped, tag = 'scratch operand']
  #allocation3 [shape = 'f32[8,384]{1,0:T(8,128)}', space=vmem, size = 0x3000, scoped, tag = 'scratch operand']
  #allocation4 [shape = 'f32[1,1]{1,0:T(1,128)S(1)}', space=vmem, size = 0x200, scoped, tag = 'scoped memory for tpu_custom_call.1']
  #allocation5 [shape = 'f32[1,1]{1,0:T(1,128)S(1)}', space=vmem, size = 0x200, scoped, tag = 'scoped memory for tpu_custom_call.1']
  %s0 = inlined_call_operand.vmem [shape: bf16[48,8], index: 0, kind: input, shape index: {}]
  %s1 = inlined_call_operand.vmem [shape: bf16[48,8], index: 1, kind: input, shape index: {}]
  %s2 = inlined_call_operand.hbm [shape: bf16[8,27], index: 2, kind: input, shape index: {}]
  %s3 = inlined_call_operand.hbm [shape: f32[3,8,8], index: 3, kind: input, shape index: {}]
  %s4 = inlined_call_operand.vmem [shape: f32[8,3], index: 4, kind: input, shape index: {}]
  %s5 = inlined_call_operand.vmem [shape: f32[8,3], index: 5, kind: input, shape index: {}]
  %s6 = inlined_call_operand.vmem [shape: f32[8,1], index: 6, kind: input, shape index: {}]
  %s7 = inlined_call_operand.hbm [shape: bf16[16,128], index: 7, kind: input, shape index: {}]
  %s8 = inlined_call_operand.vmem [shape: f32[1,128], index: 8, kind: input, shape index: {}]
  %s9 = inlined_call_operand.vmem [shape: f32[1,128], index: 9, kind: input, shape index: {}]
  %s10 = inlined_call_operand.vmem [shape: bf16[128,128], index: 10, kind: input, shape index: {}]
  %s11 = inlined_call_operand.hbm [shape: f32[1,128], index: 11, kind: input, shape index: {}]
  %s12 = inlined_call_operand.vmem [shape: bf16[128,128], index: 12, kind: input, shape index: {}]
  %s13 = inlined_call_operand.vmem [shape: f32[1,128], index: 13, kind: input, shape index: {}]
  %s14 = inlined_call_operand.vmem [shape: f32[1,128], index: 14, kind: input, shape index: {}]
  %s15 = inlined_call_operand.<no memory space> [shape: f32[1,1], index: 15, kind: input, shape index: {}]
  %s16 = inlined_call_operand.vmem [shape: bf16[8,128], index: 16, kind: input, shape index: {}]
  %s17 = inlined_call_operand.vmem [shape: bf16[128,128], index: 17, kind: input, shape index: {}]
  %s18 = inlined_call_operand.vmem [shape: f32[1,128], index: 18, kind: input, shape index: {}]
  %s19 = inlined_call_operand.vmem [shape: bf16[128,8], index: 19, kind: input, shape index: {}]
  %s20 = inlined_call_operand.vmem [shape: f32[1,8], index: 20, kind: input, shape index: {}]
  %s21 = inlined_call_operand.vmem [shape: bf16[8,128], index: 21, kind: input, shape index: {}]
  %s22 = inlined_call_operand.vmem [shape: f32[1,128], index: 22, kind: input, shape index: {}]
  %s23 = inlined_call_operand.vmem [shape: f32[1,128], index: 23, kind: input, shape index: {}]
  %s24 = inlined_call_operand.<no memory space> [shape: f32[1,1], index: 24, kind: input, shape index: {}]
  %s25 = inlined_call_operand.vmem [shape: f32[8,3], index: 25, kind: output, shape index: {0}]
  %s26 = inlined_call_operand.hbm [shape: f32[3,8,8], index: 26, kind: output, shape index: {1}]
  %s27 = inlined_call_operand.vmem [shape: f32[8,3], index: 27, kind: output, shape index: {2}]
  %28 = xla_tuple %s25, %s26, %s27
  %s29 = sld [smem:[#allocation0]]
  $region173: #{tpu_custom_call.1} parent=0
    _
  %s31 = ssub.s32 1, %s29
  %s32 = scalar_select 0, %s31, %s29
  %v33 = vstv %s15
  %34 = vst [vmem:[#allocation4] sm:$0x1] %v33
  %v35 = vstv %s24
  %36 = vst [vmem:[#allocation5] sm:$0x1] %v35
  $region1: #{tpu_custom_call.1} parent=0
    #allocation6 [shape = 'u8[2048]{0}', space=vmem, size = 0x800, scoped, tag = 'input window, operand 2, single buffered']
    #allocation7 [shape = 's32[2]{0}', space=sflag, size = 0x8, scoped, tag = 'scoped memory for tpu_custom_call.1']
    #allocation8 [shape = 's32[2]{0}', space=sflag, size = 0x8, scoped, tag = 'scoped memory for tpu_custom_call.1']
    #allocation9 [shape = 'u8[12288]{0}', space=vmem, size = 0x3000, scoped, tag = 'input window, operand 3, single buffered']
    #allocation10 [shape = 's32[1]{0}', space=sflag, size = 0x4, scoped, tag = 'scoped memory for tpu_custom_call.1']
    #allocation11 [shape = 'u8[4096]{0}', space=vmem, size = 0x1000, scoped, tag = 'input window, operand 7, single buffered']
    #allocation12 [shape = 'u8[512]{0}', space=vmem, size = 0x400, scoped, tag = 'input window, operand 11, single buffered']
    #allocation13 [shape = 's32[1]{0}', space=sflag, size = 0x4, scoped, tag = 'scoped memory for tpu_custom_call.1']
    #allocation14 [shape = 'u8[12288]{0}', space=vmem, size = 0x3000, scoped, tag = 'output window, operand 1, single buffered']
    %37 = vsyncpa [#allocation7], 0
    %38 = vsyncpa [#allocation10], 0
    %39 = vsyncpa [#allocation13], 0
    %40 = vsyncpa [#allocation8], 0
    loop: start=0, step=1, limit=5
    $region2: #{tpu_custom_call.1} parent=1 // loop_pre_header
      _
    $region3: #{tpu_custom_call.1} parent=1 // loop_header
      %s42 = sphi 0, %s46
      %p43 = scmp.ge.s32.totalorder %s42, 5
      %s52 = sphi 0, %s54
      %s55 = sphi 0, %s52
      %s56 = sphi 0, %s55
      %s72 = sphi 0, %s56
      %s78 = sphi 0, %s80
      %s81 = sphi 0, %s78
      %s82 = sphi 0, %s81
      %s98 = sphi 0, %s82
      %s102 = sphi 0, %s102
      %s104 = sphi 0, %s102
      %s105 = sphi 0, %s104
      %s119 = sphi 0, %s105
      %s123 = sphi 0, %s123
      %s125 = sphi 0, %s123
      %s126 = sphi 0, %s125
      %s140 = sphi 0, %s126
      %s144 = sphi 0, %s144
      %s146 = sphi 0, %s144
      %s147 = sphi 0, %s146
      %s161 = sphi 0, %s147
      %s165 = sphi 0, %s165
      %s167 = sphi 0, %s165
      %s168 = sphi 0, %s167
      %s182 = sphi 0, %s168
      %s186 = sphi 0, %s186
      %s188 = sphi 0, %s186
      %s189 = sphi 0, %s188
      %s203 = sphi 0, %s189
      %s207 = sphi 0, %s207
      %s209 = sphi 0, %s207
      %s210 = sphi 0, %s209
      %s224 = sphi 0, %s210
      %s228 = sphi 0, %s228
      %s230 = sphi 0, %s228
      %s231 = sphi 0, %s230
      %s245 = sphi 0, %s231
      %s249 = sphi 0, %s249
      %s251 = sphi 0, %s249
      %s252 = sphi 0, %s251
      %s266 = sphi 0, %s252
      %s270 = sphi 0, %s270
      %s272 = sphi 0, %s270
      %s273 = sphi 0, %s272
      %s287 = sphi 0, %s273
      %s291 = sphi 0, %s291
      %s293 = sphi 0, %s291
      %s294 = sphi 0, %s293
      %s308 = sphi 0, %s294
      %s312 = sphi 0, %s312
      %s314 = sphi 0, %s312
      %s315 = sphi 0, %s314
      %s329 = sphi 0, %s315
      %s333 = sphi 0, %s333
      %s335 = sphi 0, %s333
      %s336 = sphi 0, %s335
      %s350 = sphi 0, %s336
      %s354 = sphi 0, %s354
      %s356 = sphi 0, %s354
      %s357 = sphi 0, %s356
      %s371 = sphi 0, %s357
      %s375 = sphi 0, %s375
      %s377 = sphi 0, %s375
      %s378 = sphi 0, %s377
      %s392 = sphi 0, %s378
      %s396 = sphi 0, %s396
      %s398 = sphi 0, %s396
      %s399 = sphi 0, %s398
      %s413 = sphi 0, %s399
      %s417 = sphi 0, %s417
      %s419 = sphi 0, %s417
      %s420 = sphi 0, %s419
      %s434 = sphi 0, %s420
      %s438 = sphi 0, %s438
      %s440 = sphi 0, %s438
      %s441 = sphi 0, %s440
      %s455 = sphi 0, %s441
      %s459 = sphi 0, %s459
      %s461 = sphi 0, %s459
      %s462 = sphi 0, %s461
      %s476 = sphi 0, %s462
      %s480 = sphi 0, %s480
      %s482 = sphi 0, %s480
      %s483 = sphi 0, %s482
      %s497 = sphi 0, %s483
      %s501 = sphi 0, %s501
      %s503 = sphi 0, %s501
      %s504 = sphi 0, %s503
      %s518 = sphi 0, %s504
      %s522 = sphi 0, %s522
      %s524 = sphi 0, %s522
      %s525 = sphi 0, %s524
      %s539 = sphi 0, %s525
      %s543 = sphi 0, %s543
      %s545 = sphi 0, %s543
      %s546 = sphi 0, %s545
      %s560 = sphi 0, %s546
      %s564 = sphi 0, %s564
      %s566 = sphi 0, %s564
      %s567 = sphi 0, %s566
      %s581 = sphi 0, %s567
      %s585 = sphi 0, %s585
      %s587 = sphi 0, %s585
      %s588 = sphi 0, %s587
      %s602 = sphi 0, %s588
      %s606 = sphi 0, %s606
      %s608 = sphi 0, %s606
      %s609 = sphi 0, %s608
      %s623 = sphi 0, %s609
      %s627 = sphi 0, %s627
      %s629 = sphi 0, %s627
      %s630 = sphi 0, %s629
      %s644 = sphi 0, %s630
    $region4: #{tpu_custom_call.1} parent=1 // loop_header_branch
      %45 = sbr.rel (%p43) target = $region8
    $region5: #{tpu_custom_call.1} parent=1 // loop_body
      %s47 = ssub.s32 %s42, 1
      %s48 = ssub.s32 %s42, 2
      %s49 = sadd.s32 %s42, 1
      %s50 = ssub.s32 %s42, %s49
      %p51 = scmp.eq.s32.totalorder %s50, 0
      %s53 = sadd.s32 %s52, 1
      %s54 = scalar_select %p51, %s52, %s53
      %p57 = pneg %p51
      %p58 = scmp.eq.s32.totalorder %s42, 2
      %p59 = por %p57, %p58
      %p60 = scmp.ne.s32.totalorder %s52, %s55
      %p61 = scmp.eq.s32.totalorder %s42, 0
      %p62 = por %p60, %p61
      %p63 = scmp.ne.s32.totalorder %s52, %s55
      %p64 = scmp.eq.s32.totalorder %s47, 2
      %p65 = por %p63, %p64
      %p66 = scmp.ne.s32.totalorder %s55, %s56
      %p67 = scmp.eq.s32.totalorder %s47, 0
      %p68 = por %p66, %p67
      %p69 = scmp.ne.s32.totalorder %s55, %s56
      %p70 = scmp.eq.s32.totalorder %s48, 2
      %p71 = por %p69, %p70
      %p73 = scmp.ne.s32.totalorder %s56, %s72
      %p74 = scmp.eq.s32.totalorder %s48, 0
      %p75 = por %p73, %p74
      %s76 = ssub.s32 %s42, %s49
      %p77 = scmp.eq.s32.totalorder %s76, 0
      %s79 = sadd.s32 %s78, 1
      %s80 = scalar_select %p77, %s78, %s79
      %p83 = pneg %p77
      %p84 = scmp.eq.s32.totalorder %s42, 2
      %p85 = por %p83, %p84
      %p86 = scmp.ne.s32.totalorder %s78, %s81
      %p87 = scmp.eq.s32.totalorder %s42, 0
      %p88 = por %p86, %p87
      %p89 = scmp.ne.s32.totalorder %s78, %s81
      %p90 = scmp.eq.s32.totalorder %s47, 2
      %p91 = por %p89, %p90
      %p92 = scmp.ne.s32.totalorder %s81, %s82
      %p93 = scmp.eq.s32.totalorder %s47, 0
      %p94 = por %p92, %p93
      %p95 = scmp.ne.s32.totalorder %s81, %s82
      %p96 = scmp.eq.s32.totalorder %s48, 2
      %p97 = por %p95, %p96
      %p99 = scmp.ne.s32.totalorder %s82, %s98
      %p100 = scmp.eq.s32.totalorder %s48, 0
      %p101 = por %p99, %p100
      %s103 = sadd.s32 %s102, 1
      %p106 = scmp.eq.s32.totalorder %s42, 2
      %p107 = scmp.ne.s32.totalorder %s102, %s104
      %p108 = scmp.eq.s32.totalorder %s42, 0
      %p109 = por %p107, %p108
      %p110 = scmp.ne.s32.totalorder %s102, %s104
      %p111 = scmp.eq.s32.totalorder %s47, 2
      %p112 = por %p110, %p111
      %p113 = scmp.ne.s32.totalorder %s104, %s105
      %p114 = scmp.eq.s32.totalorder %s47, 0
      %p115 = por %p113, %p114
      %p116 = scmp.ne.s32.totalorder %s104, %s105
      %p117 = scmp.eq.s32.totalorder %s48, 2
      %p118 = por %p116, %p117
      %p120 = scmp.ne.s32.totalorder %s105, %s119
      %p121 = scmp.eq.s32.totalorder %s48, 0
      %p122 = por %p120, %p121
      %s124 = sadd.s32 %s123, 1
      %p127 = scmp.eq.s32.totalorder %s42, 2
      %p128 = scmp.ne.s32.totalorder %s123, %s125
      %p129 = scmp.eq.s32.totalorder %s42, 0
      %p130 = por %p128, %p129
      %p131 = scmp.ne.s32.totalorder %s123, %s125
      %p132 = scmp.eq.s32.totalorder %s47, 2
      %p133 = por %p131, %p132
      %p134 = scmp.ne.s32.totalorder %s125, %s126
      %p135 = scmp.eq.s32.totalorder %s47, 0
      %p136 = por %p134, %p135
      %p137 = scmp.ne.s32.totalorder %s125, %s126
      %p138 = scmp.eq.s32.totalorder %s48, 2
      %p139 = por %p137, %p138
      %p141 = scmp.ne.s32.totalorder %s126, %s140
      %p142 = scmp.eq.s32.totalorder %s48, 0
      %p143 = por %p141, %p142
      %s145 = sadd.s32 %s144, 1
      %p148 = scmp.eq.s32.totalorder %s42, 2
      %p149 = scmp.ne.s32.totalorder %s144, %s146
      %p150 = scmp.eq.s32.totalorder %s42, 0
      %p151 = por %p149, %p150
      %p152 = scmp.ne.s32.totalorder %s144, %s146
      %p153 = scmp.eq.s32.totalorder %s47, 2
      %p154 = por %p152, %p153
      %p155 = scmp.ne.s32.totalorder %s146, %s147
      %p156 = scmp.eq.s32.totalorder %s47, 0
      %p157 = por %p155, %p156
      %p158 = scmp.ne.s32.totalorder %s146, %s147
      %p159 = scmp.eq.s32.totalorder %s48, 2
      %p160 = por %p158, %p159
      %p162 = scmp.ne.s32.totalorder %s147, %s161
      %p163 = scmp.eq.s32.totalorder %s48, 0
      %p164 = por %p162, %p163
      %s166 = sadd.s32 %s165, 1
      %p169 = scmp.eq.s32.totalorder %s42, 2
      %p170 = scmp.ne.s32.totalorder %s165, %s167
      %p171 = scmp.eq.s32.totalorder %s42, 0
      %p172 = por %p170, %p171
      %p173 = scmp.ne.s32.totalorder %s165, %s167
      %p174 = scmp.eq.s32.totalorder %s47, 2
      %p175 = por %p173, %p174
      %p176 = scmp.ne.s32.totalorder %s167, %s168
      %p177 = scmp.eq.s32.totalorder %s47, 0
      %p178 = por %p176, %p177
      %p179 = scmp.ne.s32.totalorder %s167, %s168
      %p180 = scmp.eq.s32.totalorder %s48, 2
      %p181 = por %p179, %p180
      %p183 = scmp.ne.s32.totalorder %s168, %s182
      %p184 = scmp.eq.s32.totalorder %s48, 0
      %p185 = por %p183, %p184
      %s187 = sadd.s32 %s186, 1
      %p190 = scmp.eq.s32.totalorder %s42, 2
      %p191 = scmp.ne.s32.totalorder %s186, %s188
      %p192 = scmp.eq.s32.totalorder %s42, 0
      %p193 = por %p191, %p192
      %p194 = scmp.ne.s32.totalorder %s186, %s188
      %p195 = scmp.eq.s32.totalorder %s47, 2
      %p196 = por %p194, %p195
      %p197 = scmp.ne.s32.totalorder %s188, %s189
      %p198 = scmp.eq.s32.totalorder %s47, 0
      %p199 = por %p197, %p198
      %p200 = scmp.ne.s32.totalorder %s188, %s189
      %p201 = scmp.eq.s32.totalorder %s48, 2
      %p202 = por %p200, %p201
      %p204 = scmp.ne.s32.totalorder %s189, %s203
      %p205 = scmp.eq.s32.totalorder %s48, 0
      %p206 = por %p204, %p205
      %s208 = sadd.s32 %s207, 1
      %p211 = scmp.eq.s32.totalorder %s42, 2
      %p212 = scmp.ne.s32.totalorder %s207, %s209
      %p213 = scmp.eq.s32.totalorder %s42, 0
      %p214 = por %p212, %p213
      %p215 = scmp.ne.s32.totalorder %s207, %s209
      %p216 = scmp.eq.s32.totalorder %s47, 2
      %p217 = por %p215, %p216
      %p218 = scmp.ne.s32.totalorder %s209, %s210
      %p219 = scmp.eq.s32.totalorder %s47, 0
      %p220 = por %p218, %p219
      %p221 = scmp.ne.s32.totalorder %s209, %s210
      %p222 = scmp.eq.s32.totalorder %s48, 2
      %p223 = por %p221, %p222
      %p225 = scmp.ne.s32.totalorder %s210, %s224
      %p226 = scmp.eq.s32.totalorder %s48, 0
      %p227 = por %p225, %p226
      %s229 = sadd.s32 %s228, 1
      %p232 = scmp.eq.s32.totalorder %s42, 2
      %p233 = scmp.ne.s32.totalorder %s228, %s230
      %p234 = scmp.eq.s32.totalorder %s42, 0
      %p235 = por %p233, %p234
      %p236 = scmp.ne.s32.totalorder %s228, %s230
      %p237 = scmp.eq.s32.totalorder %s47, 2
      %p238 = por %p236, %p237
      %p239 = scmp.ne.s32.totalorder %s230, %s231
      %p240 = scmp.eq.s32.totalorder %s47, 0
      %p241 = por %p239, %p240
      %p242 = scmp.ne.s32.totalorder %s230, %s231
      %p243 = scmp.eq.s32.totalorder %s48, 2
      %p244 = por %p242, %p243
      %p246 = scmp.ne.s32.totalorder %s231, %s245
      %p247 = scmp.eq.s32.totalorder %s48, 0
      %p248 = por %p246, %p247
      %s250 = sadd.s32 %s249, 1
      %p253 = scmp.eq.s32.totalorder %s42, 2
      %p254 = scmp.ne.s32.totalorder %s249, %s251
      %p255 = scmp.eq.s32.totalorder %s42, 0
      %p256 = por %p254, %p255
      %p257 = scmp.ne.s32.totalorder %s249, %s251
      %p258 = scmp.eq.s32.totalorder %s47, 2
      %p259 = por %p257, %p258
      %p260 = scmp.ne.s32.totalorder %s251, %s252
      %p261 = scmp.eq.s32.totalorder %s47, 0
      %p262 = por %p260, %p261
      %p263 = scmp.ne.s32.totalorder %s251, %s252
      %p264 = scmp.eq.s32.totalorder %s48, 2
      %p265 = por %p263, %p264
      %p267 = scmp.ne.s32.totalorder %s252, %s266
      %p268 = scmp.eq.s32.totalorder %s48, 0
      %p269 = por %p267, %p268
      %s271 = sadd.s32 %s270, 1
      %p274 = scmp.eq.s32.totalorder %s42, 2
      %p275 = scmp.ne.s32.totalorder %s270, %s272
      %p276 = scmp.eq.s32.totalorder %s42, 0
      %p277 = por %p275, %p276
      %p278 = scmp.ne.s32.totalorder %s270, %s272
      %p279 = scmp.eq.s32.totalorder %s47, 2
      %p280 = por %p278, %p279
      %p281 = scmp.ne.s32.totalorder %s272, %s273
      %p282 = scmp.eq.s32.totalorder %s47, 0
      %p283 = por %p281, %p282
      %p284 = scmp.ne.s32.totalorder %s272, %s273
      %p285 = scmp.eq.s32.totalorder %s48, 2
      %p286 = por %p284, %p285
      %p288 = scmp.ne.s32.totalorder %s273, %s287
      %p289 = scmp.eq.s32.totalorder %s48, 0
      %p290 = por %p288, %p289
      %s292 = sadd.s32 %s291, 1
      %p295 = scmp.eq.s32.totalorder %s42, 2
      %p296 = scmp.ne.s32.totalorder %s291, %s293
      %p297 = scmp.eq.s32.totalorder %s42, 0
      %p298 = por %p296, %p297
      %p299 = scmp.ne.s32.totalorder %s291, %s293
      %p300 = scmp.eq.s32.totalorder %s47, 2
      %p301 = por %p299, %p300
      %p302 = scmp.ne.s32.totalorder %s293, %s294
      %p303 = scmp.eq.s32.totalorder %s47, 0
      %p304 = por %p302, %p303
      %p305 = scmp.ne.s32.totalorder %s293, %s294
      %p306 = scmp.eq.s32.totalorder %s48, 2
      %p307 = por %p305, %p306
      %p309 = scmp.ne.s32.totalorder %s294, %s308
      %p310 = scmp.eq.s32.totalorder %s48, 0
      %p311 = por %p309, %p310
      %s313 = sadd.s32 %s312, 1
      %p316 = scmp.eq.s32.totalorder %s42, 2
      %p317 = scmp.ne.s32.totalorder %s312, %s314
      %p318 = scmp.eq.s32.totalorder %s42, 0
      %p319 = por %p317, %p318
      %p320 = scmp.ne.s32.totalorder %s312, %s314
      %p321 = scmp.eq.s32.totalorder %s47, 2
      %p322 = por %p320, %p321
      %p323 = scmp.ne.s32.totalorder %s314, %s315
      %p324 = scmp.eq.s32.totalorder %s47, 0
      %p325 = por %p323, %p324
      %p326 = scmp.ne.s32.totalorder %s314, %s315
      %p327 = scmp.eq.s32.totalorder %s48, 2
      %p328 = por %p326, %p327
      %p330 = scmp.ne.s32.totalorder %s315, %s329
      %p331 = scmp.eq.s32.totalorder %s48, 0
      %p332 = por %p330, %p331
      %s334 = sadd.s32 %s333, 1
      %p337 = scmp.eq.s32.totalorder %s42, 2
      %p338 = scmp.ne.s32.totalorder %s333, %s335
      %p339 = scmp.eq.s32.totalorder %s42, 0
      %p340 = por %p338, %p339
      %p341 = scmp.ne.s32.totalorder %s333, %s335
      %p342 = scmp.eq.s32.totalorder %s47, 2
      %p343 = por %p341, %p342
      %p344 = scmp.ne.s32.totalorder %s335, %s336
      %p345 = scmp.eq.s32.totalorder %s47, 0
      %p346 = por %p344, %p345
      %p347 = scmp.ne.s32.totalorder %s335, %s336
      %p348 = scmp.eq.s32.totalorder %s48, 2
      %p349 = por %p347, %p348
      %p351 = scmp.ne.s32.totalorder %s336, %s350
      %p352 = scmp.eq.s32.totalorder %s48, 0
      %p353 = por %p351, %p352
      %s355 = sadd.s32 %s354, 1
      %p358 = scmp.eq.s32.totalorder %s42, 2
      %p359 = scmp.ne.s32.totalorder %s354, %s356
      %p360 = scmp.eq.s32.totalorder %s42, 0
      %p361 = por %p359, %p360
      %p362 = scmp.ne.s32.totalorder %s354, %s356
      %p363 = scmp.eq.s32.totalorder %s47, 2
      %p364 = por %p362, %p363
      %p365 = scmp.ne.s32.totalorder %s356, %s357
      %p366 = scmp.eq.s32.totalorder %s47, 0
      %p367 = por %p365, %p366
      %p368 = scmp.ne.s32.totalorder %s356, %s357
      %p369 = scmp.eq.s32.totalorder %s48, 2
      %p370 = por %p368, %p369
      %p372 = scmp.ne.s32.totalorder %s357, %s371
      %p373 = scmp.eq.s32.totalorder %s48, 0
      %p374 = por %p372, %p373
      %s376 = sadd.s32 %s375, 1
      %p379 = scmp.eq.s32.totalorder %s42, 2
      %p380 = scmp.ne.s32.totalorder %s375, %s377
      %p381 = scmp.eq.s32.totalorder %s42, 0
      %p382 = por %p380, %p381
      %p383 = scmp.ne.s32.totalorder %s375, %s377
      %p384 = scmp.eq.s32.totalorder %s47, 2
      %p385 = por %p383, %p384
      %p386 = scmp.ne.s32.totalorder %s377, %s378
      %p387 = scmp.eq.s32.totalorder %s47, 0
      %p388 = por %p386, %p387
      %p389 = scmp.ne.s32.totalorder %s377, %s378
      %p390 = scmp.eq.s32.totalorder %s48, 2
      %p391 = por %p389, %p390
      %p393 = scmp.ne.s32.totalorder %s378, %s392
      %p394 = scmp.eq.s32.totalorder %s48, 0
      %p395 = por %p393, %p394
      %s397 = sadd.s32 %s396, 1
      %p400 = scmp.eq.s32.totalorder %s42, 2
      %p401 = scmp.ne.s32.totalorder %s396, %s398
      %p402 = scmp.eq.s32.totalorder %s42, 0
      %p403 = por %p401, %p402
      %p404 = scmp.ne.s32.totalorder %s396, %s398
      %p405 = scmp.eq.s32.totalorder %s47, 2
      %p406 = por %p404, %p405
      %p407 = scmp.ne.s32.totalorder %s398, %s399
      %p408 = scmp.eq.s32.totalorder %s47, 0
      %p409 = por %p407, %p408
      %p410 = scmp.ne.s32.totalorder %s398, %s399
      %p411 = scmp.eq.s32.totalorder %s48, 2
      %p412 = por %p410, %p411
      %p414 = scmp.ne.s32.totalorder %s399, %s413
      %p415 = scmp.eq.s32.totalorder %s48, 0
      %p416 = por %p414, %p415
      %s418 = sadd.s32 %s417, 1
      %p421 = scmp.eq.s32.totalorder %s42, 2
      %p422 = scmp.ne.s32.totalorder %s417, %s419
      %p423 = scmp.eq.s32.totalorder %s42, 0
      %p424 = por %p422, %p423
      %p425 = scmp.ne.s32.totalorder %s417, %s419
      %p426 = scmp.eq.s32.totalorder %s47, 2
      %p427 = por %p425, %p426
      %p428 = scmp.ne.s32.totalorder %s419, %s420
      %p429 = scmp.eq.s32.totalorder %s47, 0
      %p430 = por %p428, %p429
      %p431 = scmp.ne.s32.totalorder %s419, %s420
      %p432 = scmp.eq.s32.totalorder %s48, 2
      %p433 = por %p431, %p432
      %p435 = scmp.ne.s32.totalorder %s420, %s434
      %p436 = scmp.eq.s32.totalorder %s48, 0
      %p437 = por %p435, %p436
      %s439 = sadd.s32 %s438, 1
      %p442 = scmp.eq.s32.totalorder %s42, 2
      %p443 = scmp.ne.s32.totalorder %s438, %s440
      %p444 = scmp.eq.s32.totalorder %s42, 0
      %p445 = por %p443, %p444
      %p446 = scmp.ne.s32.totalorder %s438, %s440
      %p447 = scmp.eq.s32.totalorder %s47, 2
      %p448 = por %p446, %p447
      %p449 = scmp.ne.s32.totalorder %s440, %s441
      %p450 = scmp.eq.s32.totalorder %s47, 0
      %p451 = por %p449, %p450
      %p452 = scmp.ne.s32.totalorder %s440, %s441
      %p453 = scmp.eq.s32.totalorder %s48, 2
      %p454 = por %p452, %p453
      %p456 = scmp.ne.s32.totalorder %s441, %s455
      %p457 = scmp.eq.s32.totalorder %s48, 0
      %p458 = por %p456, %p457
      %s460 = sadd.s32 %s459, 1
      %p463 = scmp.eq.s32.totalorder %s42, 2
      %p464 = scmp.ne.s32.totalorder %s459, %s461
      %p465 = scmp.eq.s32.totalorder %s42, 0
      %p466 = por %p464, %p465
      %p467 = scmp.ne.s32.totalorder %s459, %s461
      %p468 = scmp.eq.s32.totalorder %s47, 2
      %p469 = por %p467, %p468
      %p470 = scmp.ne.s32.totalorder %s461, %s462
      %p471 = scmp.eq.s32.totalorder %s47, 0
      %p472 = por %p470, %p471
      %p473 = scmp.ne.s32.totalorder %s461, %s462
      %p474 = scmp.eq.s32.totalorder %s48, 2
      %p475 = por %p473, %p474
      %p477 = scmp.ne.s32.totalorder %s462, %s476
      %p478 = scmp.eq.s32.totalorder %s48, 0
      %p479 = por %p477, %p478
      %s481 = sadd.s32 %s480, 1
      %p484 = scmp.eq.s32.totalorder %s42, 2
      %p485 = scmp.ne.s32.totalorder %s480, %s482
      %p486 = scmp.eq.s32.totalorder %s42, 0
      %p487 = por %p485, %p486
      %p488 = scmp.ne.s32.totalorder %s480, %s482
      %p489 = scmp.eq.s32.totalorder %s47, 2
      %p490 = por %p488, %p489
      %p491 = scmp.ne.s32.totalorder %s482, %s483
      %p492 = scmp.eq.s32.totalorder %s47, 0
      %p493 = por %p491, %p492
      %p494 = scmp.ne.s32.totalorder %s482, %s483
      %p495 = scmp.eq.s32.totalorder %s48, 2
      %p496 = por %p494, %p495
      %p498 = scmp.ne.s32.totalorder %s483, %s497
      %p499 = scmp.eq.s32.totalorder %s48, 0
      %p500 = por %p498, %p499
      %s502 = sadd.s32 %s501, 1
      %p505 = scmp.eq.s32.totalorder %s42, 2
      %p506 = scmp.ne.s32.totalorder %s501, %s503
      %p507 = scmp.eq.s32.totalorder %s42, 0
      %p508 = por %p506, %p507
      %p509 = scmp.ne.s32.totalorder %s501, %s503
      %p510 = scmp.eq.s32.totalorder %s47, 2
      %p511 = por %p509, %p510
      %p512 = scmp.ne.s32.totalorder %s503, %s504
      %p513 = scmp.eq.s32.totalorder %s47, 0
      %p514 = por %p512, %p513
      %p515 = scmp.ne.s32.totalorder %s503, %s504
      %p516 = scmp.eq.s32.totalorder %s48, 2
      %p517 = por %p515, %p516
      %p519 = scmp.ne.s32.totalorder %s504, %s518
      %p520 = scmp.eq.s32.totalorder %s48, 0
      %p521 = por %p519, %p520
      %s523 = sadd.s32 %s522, 1
      %p526 = scmp.eq.s32.totalorder %s42, 2
      %p527 = scmp.ne.s32.totalorder %s522, %s524
      %p528 = scmp.eq.s32.totalorder %s42, 0
      %p529 = por %p527, %p528
      %p530 = scmp.ne.s32.totalorder %s522, %s524
      %p531 = scmp.eq.s32.totalorder %s47, 2
      %p532 = por %p530, %p531
      %p533 = scmp.ne.s32.totalorder %s524, %s525
      %p534 = scmp.eq.s32.totalorder %s47, 0
      %p535 = por %p533, %p534
      %p536 = scmp.ne.s32.totalorder %s524, %s525
      %p537 = scmp.eq.s32.totalorder %s48, 2
      %p538 = por %p536, %p537
      %p540 = scmp.ne.s32.totalorder %s525, %s539
      %p541 = scmp.eq.s32.totalorder %s48, 0
      %p542 = por %p540, %p541
      %s544 = sadd.s32 %s543, 1
      %p547 = scmp.eq.s32.totalorder %s42, 2
      %p548 = scmp.ne.s32.totalorder %s543, %s545
      %p549 = scmp.eq.s32.totalorder %s42, 0
      %p550 = por %p548, %p549
      %p551 = scmp.ne.s32.totalorder %s543, %s545
      %p552 = scmp.eq.s32.totalorder %s47, 2
      %p553 = por %p551, %p552
      %p554 = scmp.ne.s32.totalorder %s545, %s546
      %p555 = scmp.eq.s32.totalorder %s47, 0
      %p556 = por %p554, %p555
      %p557 = scmp.ne.s32.totalorder %s545, %s546
      %p558 = scmp.eq.s32.totalorder %s48, 2
      %p559 = por %p557, %p558
      %p561 = scmp.ne.s32.totalorder %s546, %s560
      %p562 = scmp.eq.s32.totalorder %s48, 0
      %p563 = por %p561, %p562
      %s565 = sadd.s32 %s564, 1
      %p568 = scmp.eq.s32.totalorder %s42, 2
      %p569 = scmp.ne.s32.totalorder %s564, %s566
      %p570 = scmp.eq.s32.totalorder %s42, 0
      %p571 = por %p569, %p570
      %p572 = scmp.ne.s32.totalorder %s564, %s566
      %p573 = scmp.eq.s32.totalorder %s47, 2
      %p574 = por %p572, %p573
      %p575 = scmp.ne.s32.totalorder %s566, %s567
      %p576 = scmp.eq.s32.totalorder %s47, 0
      %p577 = por %p575, %p576
      %p578 = scmp.ne.s32.totalorder %s566, %s567
      %p579 = scmp.eq.s32.totalorder %s48, 2
      %p580 = por %p578, %p579
      %p582 = scmp.ne.s32.totalorder %s567, %s581
      %p583 = scmp.eq.s32.totalorder %s48, 0
      %p584 = por %p582, %p583
      %s586 = sadd.s32 %s585, 1
      %p589 = scmp.eq.s32.totalorder %s42, 2
      %p590 = scmp.ne.s32.totalorder %s585, %s587
      %p591 = scmp.eq.s32.totalorder %s42, 0
      %p592 = por %p590, %p591
      %p593 = scmp.ne.s32.totalorder %s585, %s587
      %p594 = scmp.eq.s32.totalorder %s47, 2
      %p595 = por %p593, %p594
      %p596 = scmp.ne.s32.totalorder %s587, %s588
      %p597 = scmp.eq.s32.totalorder %s47, 0
      %p598 = por %p596, %p597
      %p599 = scmp.ne.s32.totalorder %s587, %s588
      %p600 = scmp.eq.s32.totalorder %s48, 2
      %p601 = por %p599, %p600
      %p603 = scmp.ne.s32.totalorder %s588, %s602
      %p604 = scmp.eq.s32.totalorder %s48, 0
      %p605 = por %p603, %p604
      %s607 = sadd.s32 %s606, 1
      %p610 = scmp.eq.s32.totalorder %s42, 2
      %p611 = scmp.ne.s32.totalorder %s606, %s608
      %p612 = scmp.eq.s32.totalorder %s42, 0
      %p613 = por %p611, %p612
      %p614 = scmp.ne.s32.totalorder %s606, %s608
      %p615 = scmp.eq.s32.totalorder %s47, 2
      %p616 = por %p614, %p615
      %p617 = scmp.ne.s32.totalorder %s608, %s609
      %p618 = scmp.eq.s32.totalorder %s47, 0
      %p619 = por %p617, %p618
      %p620 = scmp.ne.s32.totalorder %s608, %s609
      %p621 = scmp.eq.s32.totalorder %s48, 2
      %p622 = por %p620, %p621
      %p624 = scmp.ne.s32.totalorder %s609, %s623
      %p625 = scmp.eq.s32.totalorder %s48, 0
      %p626 = por %p624, %p625
      %s628 = sadd.s32 %s627, 1
      %p631 = scmp.eq.s32.totalorder %s42, 2
      %p632 = scmp.ne.s32.totalorder %s627, %s629
      %p633 = scmp.eq.s32.totalorder %s42, 0
      %p634 = por %p632, %p633
      %p635 = scmp.ne.s32.totalorder %s627, %s629
      %p636 = scmp.eq.s32.totalorder %s47, 2
      %p637 = por %p635, %p636
      %p638 = scmp.ne.s32.totalorder %s629, %s630
      %p639 = scmp.eq.s32.totalorder %s47, 0
      %p640 = por %p638, %p639
      %p641 = scmp.ne.s32.totalorder %s629, %s630
      %p642 = scmp.eq.s32.totalorder %s48, 2
      %p643 = por %p641, %p642
      %p645 = scmp.ne.s32.totalorder %s630, %s644
      %p646 = scmp.eq.s32.totalorder %s48, 0
      %p647 = por %p645, %p646
      %p648 = scmp.le.s32.totalorder 1, %s42
      %p649 = scmp.lt.s32.totalorder %s42, 4
      %p650 = pnand %p648, %p649
      %p651 = pneg %p650
      // Predicated region
      $region9: #{tpu_custom_call.1} parent=5 // pred_check
        _
      $region10: #{tpu_custom_call.1} parent=5 // pred_check_branch
        %653 = sbr.rel (%p650) target = $region12
      $region11: #{tpu_custom_call.1} parent=5 // pred_region
        %s654 = ssub.s32 %s42, 1
        // Predicated region
        $region13: #{tpu_custom_call.1} parent=11 // pred_check
          %p655 = pneg %p115
        $region14: #{tpu_custom_call.1} parent=11 // pred_check_branch
          %657 = sbr.rel (%p655) target = $region16
        $region15: #{tpu_custom_call.1} parent=11 // pred_region
          %s659 = ssub.s32 64, 64
          %660 = vsyncadd [#allocation7], %s659
          %s662 = sshll.u32 [#allocation6], 4
          %s663 = int_to_ptr.vmem [resolvable:$true] %s662
          %665 = dma.hbm_to_vmem [thread:$0]  %s2, 64, %s663, [#allocation7]
        $region16: #{tpu_custom_call.1} parent=11 // pred_fallthru
          _
        // Predicated region
        $region17: #{tpu_custom_call.1} parent=11 // pred_check
          %p666 = pneg %p136
        $region18: #{tpu_custom_call.1} parent=11 // pred_check_branch
          %668 = sbr.rel (%p666) target = $region20
        $region19: #{tpu_custom_call.1} parent=11 // pred_region
          %s670 = ssub.s32 384, 384
          %671 = vsyncadd [#allocation10], %s670
          %s672 = sshll.u32 [#allocation9], 4
          %s673 = int_to_ptr.vmem [resolvable:$true] %s672
          %678 = dma.hbm_to_vmem [thread:$0]  %s3, 384, %s673, [#allocation10], 128, 128, 8
        $region20: #{tpu_custom_call.1} parent=11 // pred_fallthru
          _
        // Predicated region
        $region21: #{tpu_custom_call.1} parent=11 // pred_check
          %p679 = pneg %p157
        $region22: #{tpu_custom_call.1} parent=11 // pred_check_branch
          %681 = sbr.rel (%p679) target = $region24
        $region23: #{tpu_custom_call.1} parent=11 // pred_region
          _
        $region24: #{tpu_custom_call.1} parent=11 // pred_fallthru
          _
        // Predicated region
        $region25: #{tpu_custom_call.1} parent=11 // pred_check
          %p682 = pneg %p178
        $region26: #{tpu_custom_call.1} parent=11 // pred_check_branch
          %684 = sbr.rel (%p682) target = $region28
        $region27: #{tpu_custom_call.1} parent=11 // pred_region
          _
        $region28: #{tpu_custom_call.1} parent=11 // pred_fallthru
          _
        // Predicated region
        $region29: #{tpu_custom_call.1} parent=11 // pred_check
          %p685 = pneg %p199
        $region30: #{tpu_custom_call.1} parent=11 // pred_check_branch
          %687 = sbr.rel (%p685) target = $region32
        $region31: #{tpu_custom_call.1} parent=11 // pred_region
          _
        $region32: #{tpu_custom_call.1} parent=11 // pred_fallthru
          _
        // Predicated region
        $region33: #{tpu_custom_call.1} parent=11 // pred_check
          %p688 = pneg %p220
        $region34: #{tpu_custom_call.1} parent=11 // pred_check_branch
          %690 = sbr.rel (%p688) target = $region36
        $region35: #{tpu_custom_call.1} parent=11 // pred_region
          %s692 = ssub.s32 128, 128
          %693 = vsyncadd [#allocation10], %s692
          %s694 = sshll.u32 [#allocation11], 4
          %s695 = int_to_ptr.vmem [resolvable:$true] %s694
          %700 = dma.hbm_to_vmem [thread:$0]  %s7, 128, %s695, [#allocation10], 64, 64, 4
        $region36: #{tpu_custom_call.1} parent=11 // pred_fallthru
          _
        // Predicated region
        $region37: #{tpu_custom_call.1} parent=11 // pred_check
          %p701 = pneg %p241
        $region38: #{tpu_custom_call.1} parent=11 // pred_check_branch
          %703 = sbr.rel (%p701) target = $region40
        $region39: #{tpu_custom_call.1} parent=11 // pred_region
          _
        $region40: #{tpu_custom_call.1} parent=11 // pred_fallthru
          _
        // Predicated region
        $region41: #{tpu_custom_call.1} parent=11 // pred_check
          %p704 = pneg %p262
        $region42: #{tpu_custom_call.1} parent=11 // pred_check_branch
          %706 = sbr.rel (%p704) target = $region44
        $region43: #{tpu_custom_call.1} parent=11 // pred_region
          _
        $region44: #{tpu_custom_call.1} parent=11 // pred_fallthru
          _
        // Predicated region
        $region45: #{tpu_custom_call.1} parent=11 // pred_check
          %p707 = pneg %p283
        $region46: #{tpu_custom_call.1} parent=11 // pred_check_branch
          %709 = sbr.rel (%p707) target = $region48
        $region47: #{tpu_custom_call.1} parent=11 // pred_region
          _
        $region48: #{tpu_custom_call.1} parent=11 // pred_fallthru
          _
        // Predicated region
        $region49: #{tpu_custom_call.1} parent=11 // pred_check
          %p710 = pneg %p304
        $region50: #{tpu_custom_call.1} parent=11 // pred_check_branch
          %712 = sbr.rel (%p710) target = $region52
        $region51: #{tpu_custom_call.1} parent=11 // pred_region
          %s714 = ssub.s32 16, 16
          %715 = vsyncadd [#allocation13], %s714
          %s717 = sshll.u32 [#allocation12], 4
          %s718 = int_to_ptr.vmem [resolvable:$true] %s717
          %720 = dma.hbm_to_vmem [thread:$0]  %s11, 16, %s718, [#allocation13]
        $region52: #{tpu_custom_call.1} parent=11 // pred_fallthru
          _
        // Predicated region
        $region53: #{tpu_custom_call.1} parent=11 // pred_check
          %p721 = pneg %p325
        $region54: #{tpu_custom_call.1} parent=11 // pred_check_branch
          %723 = sbr.rel (%p721) target = $region56
        $region55: #{tpu_custom_call.1} parent=11 // pred_region
          _
        $region56: #{tpu_custom_call.1} parent=11 // pred_fallthru
          _
        // Predicated region
        $region57: #{tpu_custom_call.1} parent=11 // pred_check
          %p724 = pneg %p346
        $region58: #{tpu_custom_call.1} parent=11 // pred_check_branch
          %726 = sbr.rel (%p724) target = $region60
        $region59: #{tpu_custom_call.1} parent=11 // pred_region
          _
        $region60: #{tpu_custom_call.1} parent=11 // pred_fallthru
          _
        // Predicated region
        $region61: #{tpu_custom_call.1} parent=11 // pred_check
          %p727 = pneg %p367
        $region62: #{tpu_custom_call.1} parent=11 // pred_check_branch
          %729 = sbr.rel (%p727) target = $region64
        $region63: #{tpu_custom_call.1} parent=11 // pred_region
          _
        $region64: #{tpu_custom_call.1} parent=11 // pred_fallthru
          _
        // Predicated region
        $region65: #{tpu_custom_call.1} parent=11 // pred_check
          %p730 = pneg %p388
        $region66: #{tpu_custom_call.1} parent=11 // pred_check_branch
          %732 = sbr.rel (%p730) target = $region68
        $region67: #{tpu_custom_call.1} parent=11 // pred_region
          _
        $region68: #{tpu_custom_call.1} parent=11 // pred_fallthru
          _
        // Predicated region
        $region69: #{tpu_custom_call.1} parent=11 // pred_check
          %p733 = pneg %p409
        $region70: #{tpu_custom_call.1} parent=11 // pred_check_branch
          %735 = sbr.rel (%p733) target = $region72
        $region71: #{tpu_custom_call.1} parent=11 // pred_region
          _
        $region72: #{tpu_custom_call.1} parent=11 // pred_fallthru
          _
        // Predicated region
        $region73: #{tpu_custom_call.1} parent=11 // pred_check
          %p736 = pneg %p430
        $region74: #{tpu_custom_call.1} parent=11 // pred_check_branch
          %738 = sbr.rel (%p736) target = $region76
        $region75: #{tpu_custom_call.1} parent=11 // pred_region
          _
        $region76: #{tpu_custom_call.1} parent=11 // pred_fallthru
          _
        // Predicated region
        $region77: #{tpu_custom_call.1} parent=11 // pred_check
          %p739 = pneg %p451
        $region78: #{tpu_custom_call.1} parent=11 // pred_check_branch
          %741 = sbr.rel (%p739) target = $region80
        $region79: #{tpu_custom_call.1} parent=11 // pred_region
          _
        $region80: #{tpu_custom_call.1} parent=11 // pred_fallthru
          _
        // Predicated region
        $region81: #{tpu_custom_call.1} parent=11 // pred_check
          %p742 = pneg %p472
        $region82: #{tpu_custom_call.1} parent=11 // pred_check_branch
          %744 = sbr.rel (%p742) target = $region84
        $region83: #{tpu_custom_call.1} parent=11 // pred_region
          _
        $region84: #{tpu_custom_call.1} parent=11 // pred_fallthru
          _
        // Predicated region
        $region85: #{tpu_custom_call.1} parent=11 // pred_check
          %p745 = pneg %p493
        $region86: #{tpu_custom_call.1} parent=11 // pred_check_branch
          %747 = sbr.rel (%p745) target = $region88
        $region87: #{tpu_custom_call.1} parent=11 // pred_region
          _
        $region88: #{tpu_custom_call.1} parent=11 // pred_fallthru
          _
        // Predicated region
        $region89: #{tpu_custom_call.1} parent=11 // pred_check
          %p748 = pneg %p514
        $region90: #{tpu_custom_call.1} parent=11 // pred_check_branch
          %750 = sbr.rel (%p748) target = $region92
        $region91: #{tpu_custom_call.1} parent=11 // pred_region
          _
        $region92: #{tpu_custom_call.1} parent=11 // pred_fallthru
          _
        // Predicated region
        $region93: #{tpu_custom_call.1} parent=11 // pred_check
          %p751 = pneg %p535
        $region94: #{tpu_custom_call.1} parent=11 // pred_check_branch
          %753 = sbr.rel (%p751) target = $region96
        $region95: #{tpu_custom_call.1} parent=11 // pred_region
          _
        $region96: #{tpu_custom_call.1} parent=11 // pred_fallthru
          _
        // Predicated region
        $region97: #{tpu_custom_call.1} parent=11 // pred_check
          %p754 = pneg %p556
        $region98: #{tpu_custom_call.1} parent=11 // pred_check_branch
          %756 = sbr.rel (%p754) target = $region100
        $region99: #{tpu_custom_call.1} parent=11 // pred_region
          _
        $region100: #{tpu_custom_call.1} parent=11 // pred_fallthru
          _
        // Predicated region
        $region101: #{tpu_custom_call.1} parent=11 // pred_check
          %p757 = pneg %p577
        $region102: #{tpu_custom_call.1} parent=11 // pred_check_branch
          %759 = sbr.rel (%p757) target = $region104
        $region103: #{tpu_custom_call.1} parent=11 // pred_region
          _
        $region104: #{tpu_custom_call.1} parent=11 // pred_fallthru
          _
      $region12: #{tpu_custom_call.1} parent=5 // pred_fallthru
        _
      %p760 = scmp.lt.s32.totalorder %s42, 3
      // Predicated region
      $region105: #{tpu_custom_call.1} parent=5 // pred_check
        %p761 = pneg %p760
      $region106: #{tpu_custom_call.1} parent=5 // pred_check_branch
        %763 = sbr.rel (%p761) target = $region108
      $region107: #{tpu_custom_call.1} parent=5 // pred_region
        // Predicated region
        $region109: #{tpu_custom_call.1} parent=107 // pred_check
          %p764 = pneg %p62
        $region110: #{tpu_custom_call.1} parent=107 // pred_check_branch
          %766 = sbr.rel (%p764) target = $region112
        $region111: #{tpu_custom_call.1} parent=107 // pred_region
          %s767 = smul.u32 2, %s42
          %p768 = scmp.lt.s32.totalorder %s767, 5
          %s769 = scalar_select %p768, %s767, 5
          %s770 = smul.addr %s769, 4
          %s771 = scalar_lea.vmem %s0, %s770
          %s772 = smul.u32 2, %s42
        $region112: #{tpu_custom_call.1} parent=107 // pred_fallthru
          _
        // Predicated region
        $region113: #{tpu_custom_call.1} parent=107 // pred_check
          %p773 = pneg %p88
        $region114: #{tpu_custom_call.1} parent=107 // pred_check_branch
          %775 = sbr.rel (%p773) target = $region116
        $region115: #{tpu_custom_call.1} parent=107 // pred_region
          %s776 = smul.u32 2, %s42
          %p777 = scmp.lt.s32.totalorder %s776, 5
          %s778 = scalar_select %p777, %s776, 5
          %s779 = smul.addr %s778, 4
          %s780 = scalar_lea.vmem %s1, %s779
          %s781 = smul.u32 2, %s42
        $region116: #{tpu_custom_call.1} parent=107 // pred_fallthru
          _
      $region108: #{tpu_custom_call.1} parent=5 // pred_fallthru
        _
      %p782 = scmp.le.s32.totalorder 1, %s42
      %p783 = scmp.lt.s32.totalorder %s42, 4
      %p784 = pnand %p782, %p783
      %p785 = pneg %p784
      // Predicated region
      $region117: #{tpu_custom_call.1} parent=5 // pred_check
        _
      $region118: #{tpu_custom_call.1} parent=5 // pred_check_branch
        %787 = sbr.rel (%p784) target = $region120
      $region119: #{tpu_custom_call.1} parent=5 // pred_region
        %s788 = ssub.s32 %s42, 1
        // Predicated region
        $region121: #{tpu_custom_call.1} parent=119 // pred_check
          %p789 = pneg %p115
        $region122: #{tpu_custom_call.1} parent=119 // pred_check_branch
          %791 = sbr.rel (%p789) target = $region124
        $region123: #{tpu_custom_call.1} parent=119 // pred_region
          %792 = dma.done [#allocation7], 64
        $region124: #{tpu_custom_call.1} parent=119 // pred_fallthru
          _
        // Predicated region
        $region125: #{tpu_custom_call.1} parent=119 // pred_check
          %p793 = pneg %p136
        $region126: #{tpu_custom_call.1} parent=119 // pred_check_branch
          %795 = sbr.rel (%p793) target = $region128
        $region127: #{tpu_custom_call.1} parent=119 // pred_region
          %796 = dma.done [#allocation10], 384
        $region128: #{tpu_custom_call.1} parent=119 // pred_fallthru
          _
        // Predicated region
        $region129: #{tpu_custom_call.1} parent=119 // pred_check
          %p797 = pneg %p220
        $region130: #{tpu_custom_call.1} parent=119 // pred_check_branch
          %799 = sbr.rel (%p797) target = $region132
        $region131: #{tpu_custom_call.1} parent=119 // pred_region
          %800 = dma.done [#allocation10], 128
        $region132: #{tpu_custom_call.1} parent=119 // pred_fallthru
          _
        // Predicated region
        $region133: #{tpu_custom_call.1} parent=119 // pred_check
          %p801 = pneg %p304
        $region134: #{tpu_custom_call.1} parent=119 // pred_check_branch
          %803 = sbr.rel (%p801) target = $region136
        $region135: #{tpu_custom_call.1} parent=119 // pred_region
          %804 = dma.done [#allocation13], 16
        $region136: #{tpu_custom_call.1} parent=119 // pred_fallthru
          _
        %s805 = smul.u32 2, %s47
        %p806 = scmp.lt.s32.totalorder %s805, 5
        %s807 = scalar_select %p806, %s805, 5
        %s808 = smul.addr %s807, 4
        %s809 = scalar_lea.vmem %s0, %s808
        %p810 = pneg %p68
        %p811 = pneg %p65
        %s812 = smul.u32 2, %s47
        %p813 = scmp.lt.s32.totalorder %s812, 5
        %s814 = scalar_select %p813, %s812, 5
        %s815 = smul.addr %s814, 4
        %s816 = scalar_lea.vmem %s1, %s815
        %p817 = pneg %p94
        %p818 = pneg %p91
        %p819 = pneg %p115
        %p820 = pneg %p112
        %p821 = pneg %p136
        %p822 = pneg %p133
        %p823 = pneg %p157
        %p824 = pneg %p154
        %p825 = pneg %p178
        %p826 = pneg %p175
        %p827 = pneg %p199
        %p828 = pneg %p196
        %p829 = pneg %p220
        %p830 = pneg %p217
        %p831 = pneg %p241
        %p832 = pneg %p238
        %p833 = pneg %p262
        %p834 = pneg %p259
        %p835 = pneg %p283
        %p836 = pneg %p280
        %p837 = pneg %p304
        %p838 = pneg %p301
        %p839 = pneg %p325
        %p840 = pneg %p322
        %p841 = pneg %p346
        %p842 = pneg %p343
        %p843 = pneg %p367
        %p844 = pneg %p364
        %p845 = pneg %p388
        %p846 = pneg %p385
        %p847 = pneg %p409
        %p848 = pneg %p406
        %p849 = pneg %p430
        %p850 = pneg %p427
        %p851 = pneg %p451
        %p852 = pneg %p448
        %p853 = pneg %p472
        %p854 = pneg %p469
        %p855 = pneg %p493
        %p856 = pneg %p490
        %p857 = pneg %p514
        %p858 = pneg %p511
        %p859 = pneg %p535
        %p860 = pneg %p532
        %p861 = pneg %p556
        %p862 = pneg %p553
        %p863 = pneg %p577
        %p864 = pneg %p574
        %p865 = pneg %p598
        %p866 = pneg %p595
        %p867 = pneg %p619
        %p868 = pneg %p616
        %p869 = pneg %p640
        %p870 = pneg %p637
        %s871 = smul.u32 2, %s47
        %p872 = scmp.lt.s32.totalorder %s871, 5
        %s873 = scalar_select %p872, %s871, 5
        %s874 = smul.addr %s873, 4
        %s875 = scalar_lea.vmem %s0, %s874
        %s876 = smul.u32 2, %s47
        %s877 = smul.u32 2, %s47
        %p878 = scmp.lt.s32.totalorder %s877, 5
        %s879 = scalar_select %p878, %s877, 5
        %s880 = smul.addr %s879, 4
        %s881 = scalar_lea.vmem %s1, %s880
        %s882 = smul.u32 2, %s47
        %p884 = scmp.eq.s32.totalorder %s47, 0
        // Predicated region
        $region137: #{tpu_custom_call.1} parent=119 // pred_check
          %p885 = pneg %p884
        $region138: #{tpu_custom_call.1} parent=119 // pred_check_branch
          %887 = sbr.rel (%p885) target = $region140
        $region139: #{tpu_custom_call.1} parent=119 // pred_region
          %vm888 = vcmask 23552
          %889 = vst.msk [vmem:[#allocation2] sm:$0xff] %vm888, 0.0
          %890 = vst [vmem:[#allocation3] sm:$0xff] 0.0
          %891 = vst [vmem:[#allocation3 + $0x8] sm:$0xff] 0.0
          %892 = vst [vmem:[#allocation3 + $0x10] sm:$0xff] 0.0
        $region140: #{tpu_custom_call.1} parent=119 // pred_fallthru
          _
        %v893 = vld [vmem:[%s875] sm:$0xf]
        %v894 = vld [vmem:[%s875 + $0x4] sm:$0xf]
        %v895 = vld [vmem:[%s881] sm:$0xf]
        %v896 = vld [vmem:[%s881 + $0x4] sm:$0xf]
        %v897 = vld [vmem:[#allocation6] sm:$0xf]
        %v898 = vld [vmem:[#allocation11] sm:$0xf]
        %v899 = vld [vmem:[#allocation11 + $0x4] sm:$0xf]
        %v900 = vld [vmem:[%s8] sm:$0x1]
        %v901 = vld [vmem:[%s9] sm:$0x1]
        %v902 = vld [vmem:[%s10] sm:$0xf]
        %v903 = vld [vmem:[%s10 + $0x4] sm:$0xf]
        %v904 = vld [vmem:[%s10 + $0x8] sm:$0xf]
        %v905 = vld [vmem:[%s10 + $0xc] sm:$0xf]
        %v906 = vld [vmem:[%s10 + $0x10] sm:$0xf]
        %v907 = vld [vmem:[%s10 + $0x14] sm:$0xf]
        %v908 = vld [vmem:[%s10 + $0x18] sm:$0xf]
        %v909 = vld [vmem:[%s10 + $0x1c] sm:$0xf]
        %v910 = vld [vmem:[%s10 + $0x20] sm:$0xf]
        %v911 = vld [vmem:[%s10 + $0x24] sm:$0xf]
        %v912 = vld [vmem:[%s10 + $0x28] sm:$0xf]
        %v913 = vld [vmem:[%s10 + $0x2c] sm:$0xf]
        %v914 = vld [vmem:[%s10 + $0x30] sm:$0xf]
        %v915 = vld [vmem:[%s10 + $0x34] sm:$0xf]
        %v916 = vld [vmem:[%s10 + $0x38] sm:$0xf]
        %v917 = vld [vmem:[%s10 + $0x3c] sm:$0xf]
        %v918 = vld [vmem:[#allocation12] sm:$0x1]
        %v919 = vld [vmem:[%s12] sm:$0xf]
        %v920 = vld [vmem:[%s12 + $0x4] sm:$0xf]
        %v921 = vld [vmem:[%s12 + $0x8] sm:$0xf]
        %v922 = vld [vmem:[%s12 + $0xc] sm:$0xf]
        %v923 = vld [vmem:[%s12 + $0x10] sm:$0xf]
        %v924 = vld [vmem:[%s12 + $0x14] sm:$0xf]
        %v925 = vld [vmem:[%s12 + $0x18] sm:$0xf]
        %v926 = vld [vmem:[%s12 + $0x1c] sm:$0xf]
        %v927 = vld [vmem:[%s12 + $0x20] sm:$0xf]
        %v928 = vld [vmem:[%s12 + $0x24] sm:$0xf]
        %v929 = vld [vmem:[%s12 + $0x28] sm:$0xf]
        %v930 = vld [vmem:[%s12 + $0x2c] sm:$0xf]
        %v931 = vld [vmem:[%s12 + $0x30] sm:$0xf]
        %v932 = vld [vmem:[%s12 + $0x34] sm:$0xf]
        %v933 = vld [vmem:[%s12 + $0x38] sm:$0xf]
        %v934 = vld [vmem:[%s12 + $0x3c] sm:$0xf]
        %v935 = vld [vmem:[%s13] sm:$0x1]
        %v936 = vld [vmem:[%s14] sm:$0x1]
        %v937 = vld [vmem:[#allocation4] sm:$0x1]
        %v940 = vunpack.c.l.b16 %v895
        %v941 = vunpack.c.l.b16 %v896
        %v942 = vpack.c.b16 %v941, %v940
        %vm943 = vcmask 64512
        %v945 = vsel %vm943, %v942, 0
        %vm947 = vcmask 1043456
        %v949 = vsel %vm947, %v897, 0
        %951 = vmatprep.subr.bf16.mxu0 0
        %952 = vmatpush1.bf16.msra.mxu0 %v949
        %953 = vmatprep.subr.bf16.mxu0 0
        %954 = vmatpush1.bf16.msra.mxu0 0
        %955 = vmatprep.subr.bf16.mxu0 0
        %956 = vmatpush1.bf16.msra.mxu0 0
        %957 = vmatprep.subr.bf16.mxu0 0
        %958 = vmatpush1.bf16.msra.mxu0 0
        %959 = vmatprep.subr.bf16.mxu0 0
        %960 = vmatpush1.bf16.msra.mxu0 0
        %961 = vmatprep.subr.bf16.mxu0 0
        %962 = vmatpush1.bf16.msra.mxu0 0
        %963 = vmatprep.subr.bf16.mxu0 0
        %964 = vmatpush1.bf16.msra.mxu0 0
        %965 = vmatprep.subr.bf16.mxu0 0
        %966 = vmatpush1.bf16.msra.mxu0 0
        %967 = vmatprep.subr.bf16.mxu0 0
        %968 = vmatpush1.bf16.msra.mxu0 0
        %969 = vmatprep.subr.bf16.mxu0 0
        %970 = vmatpush1.bf16.msra.mxu0 0
        %971 = vmatprep.subr.bf16.mxu0 0
        %972 = vmatpush1.bf16.msra.mxu0 0
        %973 = vmatprep.subr.bf16.mxu0 0
        %974 = vmatpush1.bf16.msra.mxu0 0
        %975 = vmatprep.subr.bf16.mxu0 0
        %976 = vmatpush1.bf16.msra.mxu0 0
        %977 = vmatprep.subr.bf16.mxu0 0
        %978 = vmatpush1.bf16.msra.mxu0 0
        %979 = vmatprep.subr.bf16.mxu0 0
        %980 = vmatpush1.bf16.msra.mxu0 0
        %981 = vmatprep.subr.bf16.mxu0 0
        %982 = vmatpush1.bf16.msra.mxu0 0
        %983 = vmatprep.mubr.bf16.mxu0 0
        %984 = vmatmul.mubr.bf16.gmra.mrb[0].mxu0 %v945
        %v985 = vpop.f32.mrb[0].mxu0
        %v986 = vadd.f32 0.0, %v985
        %v987 = vpop.f32.mrb[0].mxu0
        %v988 = vpop.f32.mrb[0].mxu0
        %v989 = vadd.f32 0.0, %v988
        %v990 = vpop.f32.mrb[0].mxu0
        %991 = vdwg.mxu0
        %v994 = vunpack.c.l.b16 %v893
        %v995 = vunpack.c.l.b16 %v894
        %v996 = vpack.c.b16 %v995, %v994
        %v998 = vsel %vm943, %v996, 0
        %1000 = vmatprep.subr.bf16.mxu0 0
        %1001 = vmatpush1.bf16.msra.mxu0 %v949
        %1002 = vmatprep.subr.bf16.mxu0 0
        %1003 = vmatpush1.bf16.msra.mxu0 0
        %1004 = vmatprep.subr.bf16.mxu0 0
        %1005 = vmatpush1.bf16.msra.mxu0 0
        %1006 = vmatprep.subr.bf16.mxu0 0
        %1007 = vmatpush1.bf16.msra.mxu0 0
        %1008 = vmatprep.subr.bf16.mxu0 0
        %1009 = vmatpush1.bf16.msra.mxu0 0
        %1010 = vmatprep.subr.bf16.mxu0 0
        %1011 = vmatpush1.bf16.msra.mxu0 0
        %1012 = vmatprep.subr.bf16.mxu0 0
        %1013 = vmatpush1.bf16.msra.mxu0 0
        %1014 = vmatprep.subr.bf16.mxu0 0
        %1015 = vmatpush1.bf16.msra.mxu0 0
        %1016 = vmatprep.subr.bf16.mxu0 0
        %1017 = vmatpush1.bf16.msra.mxu0 0
        %1018 = vmatprep.subr.bf16.mxu0 0
        %1019 = vmatpush1.bf16.msra.mxu0 0
        %1020 = vmatprep.subr.bf16.mxu0 0
        %1021 = vmatpush1.bf16.msra.mxu0 0
        %1022 = vmatprep.subr.bf16.mxu0 0
        %1023 = vmatpush1.bf16.msra.mxu0 0
        %1024 = vmatprep.subr.bf16.mxu0 0
        %1025 = vmatpush1.bf16.msra.mxu0 0
        %1026 = vmatprep.subr.bf16.mxu0 0
        %1027 = vmatpush1.bf16.msra.mxu0 0
        %1028 = vmatprep.subr.bf16.mxu0 0
        %1029 = vmatpush1.bf16.msra.mxu0 0
        %1030 = vmatprep.subr.bf16.mxu0 0
        %1031 = vmatpush1.bf16.msra.mxu0 0
        %1032 = vmatprep.mubr.bf16.mxu0 0
        %1033 = vmatmul.mubr.bf16.gmra.mrb[0].mxu0 %v998
        %v1034 = vpop.f32.mrb[0].mxu0
        %v1035 = vadd.f32 0.0, %v1034
        %v1036 = vpop.f32.mrb[0].mxu0
        %v1037 = vpop.f32.mrb[0].mxu0
        %v1038 = vadd.f32 0.0, %v1037
        %v1039 = vpop.f32.mrb[0].mxu0
        %1040 = vdwg.mxu0
        %v1041 = vsub.f32 %v986, %v1035
        %v1042 = vsub.f32 %v989, %v1038
        %v1043 = vmul.f32 %v1041, %v1041
        %v1044 = vmul.f32 %v1042, %v1042
        %vm1045 = vcmask 23552
        %v1046 = vsel %vm1045, %v1043, 0.0
        %1047 = vadd.xlane.f32.xlu0 %v1046
        %v1048 = vpop.xlane.xlu0 %1047
        %v1049 = vsel %vm1045, %v1044, 0.0
        %1050 = vadd.xlane.f32.xlu0 %v1049
        %v1051 = vpop.xlane.xlu0 %1050
        %1054 = vrot.lane.b32.xlu0 %v986, 125
        %v1055 = vpop.permute.xlu0 %1054
        %1056 = vrot.lane.b32.xlu0 %v989, 125
        %v1057 = vpop.permute.xlu0 %1056
        %1062 = vrot.lane.b32.xlu0 %v1035, 5
        %v1063 = vpop.permute.xlu0 %1062
        %1064 = vrot.lane.b32.xlu0 %v1038, 5
        %v1065 = vpop.permute.xlu0 %1064
        %v1068 = vsel %vm943, %v1055, %v1063
        %v1069 = vsel %vm943, %v1057, %v1065
        %1070 = vrot.lane.b32.xlu0 %v986, 117
        %v1071 = vpop.permute.xlu0 %1070
        %1072 = vrot.lane.b32.xlu0 %v989, 117
        %v1073 = vpop.permute.xlu0 %1072
        %1076 = vrot.lane.b32.xlu0 %v1035, 125
        %v1077 = vpop.permute.xlu0 %1076
        %1078 = vrot.lane.b32.xlu0 %v1038, 125
        %v1079 = vpop.permute.xlu0 %1078
        %v1082 = vsel %vm943, %v1071, %v1077
        %v1083 = vsel %vm943, %v1073, %v1079
        %1084 = vrot.lane.b32.xlu0 %v986, 109
        %v1085 = vpop.permute.xlu0 %1084
        %1086 = vrot.lane.b32.xlu0 %v989, 109
        %v1087 = vpop.permute.xlu0 %1086
        %1090 = vrot.lane.b32.xlu0 %v1035, 117
        %v1091 = vpop.permute.xlu0 %1090
        %1092 = vrot.lane.b32.xlu0 %v1038, 117
        %v1093 = vpop.permute.xlu0 %1092
        %v1096 = vsel %vm943, %v1085, %v1091
        %v1097 = vsel %vm943, %v1087, %v1093
        %v1098 = vpack.c.bf16 %v1069, %v1068
        %v1099 = vpack.c.bf16 %v1083, %v1082
        %v1100 = vpack.c.bf16 %v1097, %v1096
        %1102 = vset.pattern.permute.xlu0 0
        %1103 = vperm.xlu0 %1102, %v1048
        %v1104 = vpop.permute.xlu0 %1103
        %1107 = vset.pattern.permute.xlu0 0
        %1108 = vperm.xlu0 %1107, %v1051
        %v1109 = vpop.permute.xlu0 %1108
        %v1112 = vlaneseq
        %v1113 = vshrl.u32 %v1112, 7
        %v1114 = vsub.s32 0, %v1113
        %v1115 = vrot.slane %v900, %v1114
        %v1117 = vmul.f32 %v1104, %v1115
        %v1118 = vmul.f32 %v1109, %v1115
        %v1121 = vunpack.c.l.b16 %v898
        %v1122 = vunpack.c.l.b16 %v899
        %v1123 = vpack.c.b16 %v1122, %v1121
        %vm1125 = vcmask 130048
        %v1127 = vsel %vm1125, %v1098, 0
        %v1130 = vsel %vm1125, %v1099, 0
        %v1133 = vsel %vm1125, %v1100, 0
        %1135 = vmatprep.subr.bf16.mxu0 0
        %1136 = vmatpush1.bf16.msra.mxu0 %v1123
        %1137 = vmatprep.subr.bf16.mxu0 0
        %1138 = vmatpush1.bf16.msra.mxu0 0
        %1139 = vmatprep.subr.bf16.mxu0 0
        %1140 = vmatpush1.bf16.msra.mxu0 0
        %1141 = vmatprep.subr.bf16.mxu0 0
        %1142 = vmatpush1.bf16.msra.mxu0 0
        %1143 = vmatprep.subr.bf16.mxu0 0
        %1144 = vmatpush1.bf16.msra.mxu0 0
        %1145 = vmatprep.subr.bf16.mxu0 0
        %1146 = vmatpush1.bf16.msra.mxu0 0
        %1147 = vmatprep.subr.bf16.mxu0 0
        %1148 = vmatpush1.bf16.msra.mxu0 0
        %1149 = vmatprep.subr.bf16.mxu0 0
        %1150 = vmatpush1.bf16.msra.mxu0 0
        %1151 = vmatprep.subr.bf16.mxu0 0
        %1152 = vmatpush1.bf16.msra.mxu0 0
        %1153 = vmatprep.subr.bf16.mxu0 0
        %1154 = vmatpush1.bf16.msra.mxu0 0
        %1155 = vmatprep.subr.bf16.mxu0 0
        %1156 = vmatpush1.bf16.msra.mxu0 0
        %1157 = vmatprep.subr.bf16.mxu0 0
        %1158 = vmatpush1.bf16.msra.mxu0 0
        %1159 = vmatprep.subr.bf16.mxu0 0
        %1160 = vmatpush1.bf16.msra.mxu0 0
        %1161 = vmatprep.subr.bf16.mxu0 0
        %1162 = vmatpush1.bf16.msra.mxu0 0
        %1163 = vmatprep.subr.bf16.mxu0 0
        %1164 = vmatpush1.bf16.msra.mxu0 0
        %1165 = vmatprep.subr.bf16.mxu0 0
        %1166 = vmatpush1.bf16.msra.mxu0 0
        %1167 = vmatprep.mubr.bf16.mxu0 0
        %1168 = vmatmul.mubr.bf16.gmra.mrb[0].mxu0 %v1127
        %v1169 = vpop.f32.mrb[0].mxu0
        %v1170 = vadd.f32 %v1117, %v1169
        %v1171 = vpop.f32.mrb[0].mxu0
        %v1172 = vpop.f32.mrb[0].mxu0
        %v1173 = vadd.f32 %v1118, %v1172
        %v1174 = vpop.f32.mrb[0].mxu0
        %1175 = vmatprep.mubr.bf16.mxu0 0
        %1176 = vmatmul.mubr.bf16.gmra.mrb[0].mxu0 %v1130
        %v1177 = vpop.f32.mrb[0].mxu0
        %v1178 = vadd.f32 %v1117, %v1177
        %v1179 = vpop.f32.mrb[0].mxu0
        %v1180 = vpop.f32.mrb[0].mxu0
        %v1181 = vadd.f32 %v1118, %v1180
        %v1182 = vpop.f32.mrb[0].mxu0
        %1183 = vmatprep.mubr.bf16.mxu0 0
        %1184 = vmatmul.mubr.bf16.gmra.mrb[0].mxu0 %v1133
        %v1185 = vpop.f32.mrb[0].mxu0
        %v1186 = vadd.f32 %v1117, %v1185
        %v1187 = vpop.f32.mrb[0].mxu0
        %v1188 = vpop.f32.mrb[0].mxu0
        %v1189 = vadd.f32 %v1118, %v1188
        %v1190 = vpop.f32.mrb[0].mxu0
        %1191 = vdwg.mxu0
        %v1193 = vlaneseq
        %v1194 = vshrl.u32 %v1193, 7
        %v1195 = vsub.s32 0, %v1194
        %v1196 = vrot.slane %v901, %v1195
        %v1198 = vadd.f32 %v1170, %v1196
        %v1199 = vadd.f32 %v1173, %v1196
        %v1200 = vadd.f32 %v1178, %v1196
        %v1201 = vadd.f32 %v1181, %v1196
        %v1202 = vadd.f32 %v1186, %v1196
        %v1203 = vadd.f32 %v1189, %v1196
        %v1204 = vxor.u32 %v1198, 2147483648
        %v1205 = vxor.u32 %v1199, 2147483648
        %v1206 = vxor.u32 %v1200, 2147483648
        %v1207 = vxor.u32 %v1201, 2147483648
        %v1208 = vxor.u32 %v1202, 2147483648
        %v1209 = vxor.u32 %v1203, 2147483648
        %v1210 = vmul.f32 %v1204, 1.442695
        %v1211 = vpow.pop %v1210
        %v1212 = vmul.f32 %v1205, 1.442695
        %v1213 = vpow.pop %v1212
        %v1214 = vmul.f32 %v1206, 1.442695
        %v1215 = vpow.pop %v1214
        %v1216 = vmul.f32 %v1207, 1.442695
        %v1217 = vpow.pop %v1216
        %v1218 = vmul.f32 %v1208, 1.442695
        %v1219 = vpow.pop %v1218
        %v1220 = vmul.f32 %v1209, 1.442695
        %v1221 = vpow.pop %v1220
        %v1222 = vadd.f32 %v1211, 1.0
        %v1223 = vadd.f32 %v1213, 1.0
        %v1224 = vadd.f32 %v1215, 1.0
        %v1225 = vadd.f32 %v1217, 1.0
        %v1226 = vadd.f32 %v1219, 1.0
        %v1227 = vadd.f32 %v1221, 1.0
        %v1228 = vrcp.pop %v1222
        %v1229 = vmul.f32 1.0, %v1228
        %v1230 = vrcp.pop %v1223
        %v1231 = vmul.f32 1.0, %v1230
        %v1232 = vrcp.pop %v1224
        %v1233 = vmul.f32 1.0, %v1232
        %v1234 = vrcp.pop %v1225
        %v1235 = vmul.f32 1.0, %v1234
        %v1236 = vrcp.pop %v1226
        %v1237 = vmul.f32 1.0, %v1236
        %v1238 = vrcp.pop %v1227
        %v1239 = vmul.f32 1.0, %v1238
        %v1240 = vmul.f32 %v1198, %v1229
        %v1241 = vmul.f32 %v1199, %v1231
        %v1242 = vmul.f32 %v1200, %v1233
        %v1243 = vmul.f32 %v1201, %v1235
        %v1244 = vmul.f32 %v1202, %v1237
        %v1245 = vmul.f32 %v1203, %v1239
        %v1246 = vpack.c.bf16 %v1241, %v1240
        %v1247 = vpack.c.bf16 %v1243, %v1242
        %v1248 = vpack.c.bf16 %v1245, %v1244
        %v1250 = vlaneseq
        %v1251 = vshrl.u32 %v1250, 7
        %v1252 = vsub.s32 0, %v1251
        %v1253 = vrot.slane %v918, %v1252
        %v1271 = vunpack.c.l.b16 %v902
        %v1272 = vunpack.c.l.b16 %v903
        %v1273 = vunpack.c.l.b16 %v904
        %v1274 = vunpack.c.l.b16 %v905
        %v1275 = vunpack.c.l.b16 %v906
        %v1276 = vunpack.c.l.b16 %v907
        %v1277 = vunpack.c.l.b16 %v908
        %v1278 = vunpack.c.l.b16 %v909
        %v1279 = vunpack.c.l.b16 %v910
        %v1280 = vunpack.c.l.b16 %v911
        %v1281 = vunpack.c.l.b16 %v912
        %v1282 = vunpack.c.l.b16 %v913
        %v1283 = vunpack.c.l.b16 %v914
        %v1284 = vunpack.c.l.b16 %v915
        %v1285 = vunpack.c.l.b16 %v916
        %v1286 = vunpack.c.l.b16 %v917
        %v1287 = vpack.c.b16 %v1272, %v1271
        %v1288 = vpack.c.b16 %v1274, %v1273
        %v1289 = vpack.c.b16 %v1276, %v1275
        %v1290 = vpack.c.b16 %v1278, %v1277
        %v1291 = vpack.c.b16 %v1280, %v1279
        %v1292 = vpack.c.b16 %v1282, %v1281
        %v1293 = vpack.c.b16 %v1284, %v1283
        %v1294 = vpack.c.b16 %v1286, %v1285
        %1303 = vmatprep.subr.bf16.mxu0 0
        %1304 = vmatpush1.bf16.msra.mxu0 %v1287
        %1305 = vmatprep.subr.bf16.mxu0 0
        %1306 = vmatpush1.bf16.msra.mxu0 %v1288
        %1307 = vmatprep.subr.bf16.mxu0 0
        %1308 = vmatpush1.bf16.msra.mxu0 %v1289
        %1309 = vmatprep.subr.bf16.mxu0 0
        %1310 = vmatpush1.bf16.msra.mxu0 %v1290
        %1311 = vmatprep.subr.bf16.mxu0 0
        %1312 = vmatpush1.bf16.msra.mxu0 %v1291
        %1313 = vmatprep.subr.bf16.mxu0 0
        %1314 = vmatpush1.bf16.msra.mxu0 %v1292
        %1315 = vmatprep.subr.bf16.mxu0 0
        %1316 = vmatpush1.bf16.msra.mxu0 %v1293
        %1317 = vmatprep.subr.bf16.mxu0 0
        %1318 = vmatpush1.bf16.msra.mxu0 %v1294
        %1319 = vmatprep.subr.bf16.mxu0 0
        %1320 = vmatpush1.bf16.msra.mxu0 0
        %1321 = vmatprep.subr.bf16.mxu0 0
        %1322 = vmatpush1.bf16.msra.mxu0 0
        %1323 = vmatprep.subr.bf16.mxu0 0
        %1324 = vmatpush1.bf16.msra.mxu0 0
        %1325 = vmatprep.subr.bf16.mxu0 0
        %1326 = vmatpush1.bf16.msra.mxu0 0
        %1327 = vmatprep.subr.bf16.mxu0 0
        %1328 = vmatpush1.bf16.msra.mxu0 0
        %1329 = vmatprep.subr.bf16.mxu0 0
        %1330 = vmatpush1.bf16.msra.mxu0 0
        %1331 = vmatprep.subr.bf16.mxu0 0
        %1332 = vmatpush1.bf16.msra.mxu0 0
        %1333 = vmatprep.subr.bf16.mxu0 0
        %1334 = vmatpush1.bf16.msra.mxu0 0
        %1335 = vmatprep.mubr.bf16.mxu0 0
        %1336 = vmatmul.mubr.bf16.gmra.mrb[0].mxu0 %v1246
        %v1337 = vpop.f32.mrb[0].mxu0
        %v1338 = vadd.f32 %v1253, %v1337
        %v1339 = vpop.f32.mrb[0].mxu0
        %v1340 = vpop.f32.mrb[0].mxu0
        %v1341 = vadd.f32 %v1253, %v1340
        %v1342 = vpop.f32.mrb[0].mxu0
        %1343 = vmatprep.mubr.bf16.mxu0 0
        %1344 = vmatmul.mubr.bf16.gmra.mrb[0].mxu0 %v1247
        %v1345 = vpop.f32.mrb[0].mxu0
        %v1346 = vadd.f32 %v1253, %v1345
        %v1347 = vpop.f32.mrb[0].mxu0
        %v1348 = vpop.f32.mrb[0].mxu0
        %v1349 = vadd.f32 %v1253, %v1348
        %v1350 = vpop.f32.mrb[0].mxu0
        %1351 = vmatprep.mubr.bf16.mxu0 0
        %1352 = vmatmul.mubr.bf16.gmra.mrb[0].mxu0 %v1248
        %v1353 = vpop.f32.mrb[0].mxu0
        %v1354 = vadd.f32 %v1253, %v1353
        %v1355 = vpop.f32.mrb[0].mxu0
        %v1356 = vpop.f32.mrb[0].mxu0
        %v1357 = vadd.f32 %v1253, %v1356
        %v1358 = vpop.f32.mrb[0].mxu0
        %1359 = vdwg.mxu0
        %v1360 = vxor.u32 %v1338, 2147483648
        %v1361 = vxor.u32 %v1341, 2147483648
        %v1362 = vxor.u32 %v1346, 2147483648
        %v1363 = vxor.u32 %v1349, 2147483648
        %v1364 = vxor.u32 %v1354, 2147483648
        %v1365 = vxor.u32 %v1357, 2147483648
        %v1366 = vmul.f32 %v1360, 1.442695
        %v1367 = vpow.pop %v1366
        %v1368 = vmul.f32 %v1361, 1.442695
        %v1369 = vpow.pop %v1368
        %v1370 = vmul.f32 %v1362, 1.442695
        %v1371 = vpow.pop %v1370
        %v1372 = vmul.f32 %v1363, 1.442695
        %v1373 = vpow.pop %v1372
        %v1374 = vmul.f32 %v1364, 1.442695
        %v1375 = vpow.pop %v1374
        %v1376 = vmul.f32 %v1365, 1.442695
        %v1377 = vpow.pop %v1376
        %v1378 = vadd.f32 %v1367, 1.0
        %v1379 = vadd.f32 %v1369, 1.0
        %v1380 = vadd.f32 %v1371, 1.0
        %v1381 = vadd.f32 %v1373, 1.0
        %v1382 = vadd.f32 %v1375, 1.0
        %v1383 = vadd.f32 %v1377, 1.0
        %v1384 = vrcp.pop %v1378
        %v1385 = vmul.f32 1.0, %v1384
        %v1386 = vrcp.pop %v1379
        %v1387 = vmul.f32 1.0, %v1386
        %v1388 = vrcp.pop %v1380
        %v1389 = vmul.f32 1.0, %v1388
        %v1390 = vrcp.pop %v1381
        %v1391 = vmul.f32 1.0, %v1390
        %v1392 = vrcp.pop %v1382
        %v1393 = vmul.f32 1.0, %v1392
        %v1394 = vrcp.pop %v1383
        %v1395 = vmul.f32 1.0, %v1394
        %v1396 = vmul.f32 %v1338, %v1385
        %v1397 = vmul.f32 %v1341, %v1387
        %v1398 = vmul.f32 %v1346, %v1389
        %v1399 = vmul.f32 %v1349, %v1391
        %v1400 = vmul.f32 %v1354, %v1393
        %v1401 = vmul.f32 %v1357, %v1395
        %v1402 = vpack.c.bf16 %v1397, %v1396
        %v1403 = vpack.c.bf16 %v1399, %v1398
        %v1404 = vpack.c.bf16 %v1401, %v1400
        %v1406 = vlaneseq
        %v1407 = vshrl.u32 %v1406, 7
        %v1408 = vsub.s32 0, %v1407
        %v1409 = vrot.slane %v935, %v1408
        %v1427 = vunpack.c.l.b16 %v919
        %v1428 = vunpack.c.l.b16 %v920
        %v1429 = vunpack.c.l.b16 %v921
        %v1430 = vunpack.c.l.b16 %v922
        %v1431 = vunpack.c.l.b16 %v923
        %v1432 = vunpack.c.l.b16 %v924
        %v1433 = vunpack.c.l.b16 %v925
        %v1434 = vunpack.c.l.b16 %v926
        %v1435 = vunpack.c.l.b16 %v927
        %v1436 = vunpack.c.l.b16 %v928
        %v1437 = vunpack.c.l.b16 %v929
        %v1438 = vunpack.c.l.b16 %v930
        %v1439 = vunpack.c.l.b16 %v931
        %v1440 = vunpack.c.l.b16 %v932
        %v1441 = vunpack.c.l.b16 %v933
        %v1442 = vunpack.c.l.b16 %v934
        %v1443 = vpack.c.b16 %v1428, %v1427
        %v1444 = vpack.c.b16 %v1430, %v1429
        %v1445 = vpack.c.b16 %v1432, %v1431
        %v1446 = vpack.c.b16 %v1434, %v1433
        %v1447 = vpack.c.b16 %v1436, %v1435
        %v1448 = vpack.c.b16 %v1438, %v1437
        %v1449 = vpack.c.b16 %v1440, %v1439
        %v1450 = vpack.c.b16 %v1442, %v1441
        %1459 = vmatprep.subr.bf16.mxu0 0
        %1460 = vmatpush1.bf16.msra.mxu0 %v1443
        %1461 = vmatprep.subr.bf16.mxu0 0
        %1462 = vmatpush1.bf16.msra.mxu0 %v1444
        %1463 = vmatprep.subr.bf16.mxu0 0
        %1464 = vmatpush1.bf16.msra.mxu0 %v1445
        %1465 = vmatprep.subr.bf16.mxu0 0
        %1466 = vmatpush1.bf16.msra.mxu0 %v1446
        %1467 = vmatprep.subr.bf16.mxu0 0
        %1468 = vmatpush1.bf16.msra.mxu0 %v1447
        %1469 = vmatprep.subr.bf16.mxu0 0
        %1470 = vmatpush1.bf16.msra.mxu0 %v1448
        %1471 = vmatprep.subr.bf16.mxu0 0
        %1472 = vmatpush1.bf16.msra.mxu0 %v1449
        %1473 = vmatprep.subr.bf16.mxu0 0
        %1474 = vmatpush1.bf16.msra.mxu0 %v1450
        %1475 = vmatprep.subr.bf16.mxu0 0
        %1476 = vmatpush1.bf16.msra.mxu0 0
        %1477 = vmatprep.subr.bf16.mxu0 0
        %1478 = vmatpush1.bf16.msra.mxu0 0
        %1479 = vmatprep.subr.bf16.mxu0 0
        %1480 = vmatpush1.bf16.msra.mxu0 0
        %1481 = vmatprep.subr.bf16.mxu0 0
        %1482 = vmatpush1.bf16.msra.mxu0 0
        %1483 = vmatprep.subr.bf16.mxu0 0
        %1484 = vmatpush1.bf16.msra.mxu0 0
        %1485 = vmatprep.subr.bf16.mxu0 0
        %1486 = vmatpush1.bf16.msra.mxu0 0
        %1487 = vmatprep.subr.bf16.mxu0 0
        %1488 = vmatpush1.bf16.msra.mxu0 0
        %1489 = vmatprep.subr.bf16.mxu0 0
        %1490 = vmatpush1.bf16.msra.mxu0 0
        %1491 = vmatprep.mubr.bf16.mxu0 0
        %1492 = vmatmul.mubr.bf16.gmra.mrb[0].mxu0 %v1402
        %v1493 = vpop.f32.mrb[0].mxu0
        %v1494 = vadd.f32 %v1409, %v1493
        %v1495 = vpop.f32.mrb[0].mxu0
        %v1496 = vpop.f32.mrb[0].mxu0
        %v1497 = vadd.f32 %v1409, %v1496
        %v1498 = vpop.f32.mrb[0].mxu0
        %1499 = vmatprep.mubr.bf16.mxu0 0
        %1500 = vmatmul.mubr.bf16.gmra.mrb[0].mxu0 %v1403
        %v1501 = vpop.f32.mrb[0].mxu0
        %v1502 = vadd.f32 %v1409, %v1501
        %v1503 = vpop.f32.mrb[0].mxu0
        %v1504 = vpop.f32.mrb[0].mxu0
        %v1505 = vadd.f32 %v1409, %v1504
        %v1506 = vpop.f32.mrb[0].mxu0
        %1507 = vmatprep.mubr.bf16.mxu0 0
        %1508 = vmatmul.mubr.bf16.gmra.mrb[0].mxu0 %v1404
        %v1509 = vpop.f32.mrb[0].mxu0
        %v1510 = vadd.f32 %v1409, %v1509
        %v1511 = vpop.f32.mrb[0].mxu0
        %v1512 = vpop.f32.mrb[0].mxu0
        %v1513 = vadd.f32 %v1409, %v1512
        %v1514 = vpop.f32.mrb[0].mxu0
        %1515 = vdwg.mxu0
        %v1516 = vxor.u32 %v1494, 2147483648
        %v1517 = vxor.u32 %v1497, 2147483648
        %v1518 = vxor.u32 %v1502, 2147483648
        %v1519 = vxor.u32 %v1505, 2147483648
        %v1520 = vxor.u32 %v1510, 2147483648
        %v1521 = vxor.u32 %v1513, 2147483648
        %v1522 = vmul.f32 %v1516, 1.442695
        %v1523 = vpow.pop %v1522
        %v1524 = vmul.f32 %v1517, 1.442695
        %v1525 = vpow.pop %v1524
        %v1526 = vmul.f32 %v1518, 1.442695
        %v1527 = vpow.pop %v1526
        %v1528 = vmul.f32 %v1519, 1.442695
        %v1529 = vpow.pop %v1528
        %v1530 = vmul.f32 %v1520, 1.442695
        %v1531 = vpow.pop %v1530
        %v1532 = vmul.f32 %v1521, 1.442695
        %v1533 = vpow.pop %v1532
        %v1534 = vadd.f32 %v1523, 1.0
        %v1535 = vadd.f32 %v1525, 1.0
        %v1536 = vadd.f32 %v1527, 1.0
        %v1537 = vadd.f32 %v1529, 1.0
        %v1538 = vadd.f32 %v1531, 1.0
        %v1539 = vadd.f32 %v1533, 1.0
        %v1540 = vrcp.pop %v1534
        %v1541 = vmul.f32 1.0, %v1540
        %v1542 = vrcp.pop %v1535
        %v1543 = vmul.f32 1.0, %v1542
        %v1544 = vrcp.pop %v1536
        %v1545 = vmul.f32 1.0, %v1544
        %v1546 = vrcp.pop %v1537
        %v1547 = vmul.f32 1.0, %v1546
        %v1548 = vrcp.pop %v1538
        %v1549 = vmul.f32 1.0, %v1548
        %v1550 = vrcp.pop %v1539
        %v1551 = vmul.f32 1.0, %v1550
        %v1552 = vmul.f32 %v1494, %v1541
        %v1553 = vmul.f32 %v1497, %v1543
        %v1554 = vmul.f32 %v1502, %v1545
        %v1555 = vmul.f32 %v1505, %v1547
        %v1556 = vmul.f32 %v1510, %v1549
        %v1557 = vmul.f32 %v1513, %v1551
        %v1559 = vlaneseq
        %v1560 = vshrl.u32 %v1559, 7
        %v1561 = vsub.s32 0, %v1560
        %v1562 = vrot.slane %v936, %v1561
        %v1564 = vmul.f32 %v1552, %v1562
        %v1565 = vmul.f32 %v1553, %v1562
        %v1566 = vmul.f32 %v1554, %v1562
        %v1567 = vmul.f32 %v1555, %v1562
        %v1568 = vmul.f32 %v1556, %v1562
        %v1569 = vmul.f32 %v1557, %v1562
        %1570 = vadd.xlane.f32.xlu0 %v1564
        %v1571 = vpop.xlane.xlu0 %1570
        %1572 = vadd.xlane.f32.xlu0 %v1565
        %v1573 = vpop.xlane.xlu0 %1572
        %1574 = vadd.xlane.f32.xlu0 %v1566
        %v1575 = vpop.xlane.xlu0 %1574
        %1576 = vadd.xlane.f32.xlu0 %v1567
        %v1577 = vpop.xlane.xlu0 %1576
        %1578 = vadd.xlane.f32.xlu0 %v1568
        %v1579 = vpop.xlane.xlu0 %1578
        %1580 = vadd.xlane.f32.xlu0 %v1569
        %v1581 = vpop.xlane.xlu0 %1580
        %v1583 = vlaneseq
        %v1584 = vshrl.u32 %v1583, 7
        %v1585 = vsub.s32 0, %v1584
        %v1586 = vrot.slane %v937, %v1585
        %v1588 = vadd.f32 %v1571, %v1586
        %v1589 = vadd.f32 %v1573, %v1586
        %v1590 = vadd.f32 %v1575, %v1586
        %v1591 = vadd.f32 %v1577, %v1586
        %v1592 = vadd.f32 %v1579, %v1586
        %v1593 = vadd.f32 %v1581, %v1586
        %v1594 = vmul.f32 %v1041, %v1588
        %v1595 = vmul.f32 %v1042, %v1589
        %1598 = vrot.lane.b32.xlu0 %v1590, 1
        %v1599 = vpop.permute.xlu0 %1598
        %1600 = vrot.lane.b32.xlu0 %v1591, 1
        %v1601 = vpop.permute.xlu0 %1600
        %v1604 = vmul.f32 %v1041, %v1599
        %v1605 = vmul.f32 %v1042, %v1601
        %1608 = vrot.lane.b32.xlu0 %v1592, 2
        %v1609 = vpop.permute.xlu0 %1608
        %1610 = vrot.lane.b32.xlu0 %v1593, 2
        %v1611 = vpop.permute.xlu0 %1610
        %v1614 = vmul.f32 %v1041, %v1609
        %v1615 = vmul.f32 %v1042, %v1611
        %vm1616 = vcmask 7168
        %v1617 = vsel %vm1616, %v1594, %v1604
        %v1618 = vsel %vm1616, %v1595, %v1605
        %vm1619 = vcmask 15360
        %v1620 = vsel %vm1619, %v1617, %v1614
        %v1621 = vsel %vm1619, %v1618, %v1615
        %v1622 = vld [vmem:[#allocation2] sm:$0xff]
        %v1623 = vpack.c.bf16 %v1621, %v1620
        %1625 = vxpose.xlu0.c.b16.start [1/8] %v942, 128
        %1626 = vxpose.xlu0.c.b16.cont [2/8] 0, 128
        %1627 = vxpose.xlu0.c.b16.cont [3/8] 0, 128
        %1628 = vxpose.xlu0.c.b16.cont [4/8] 0, 128
        %1629 = vxpose.xlu0.c.b16.cont [5/8] 0, 128
        %1630 = vxpose.xlu0.c.b16.cont [6/8] 0, 128
        %1631 = vxpose.xlu0.c.b16.cont [7/8] 0, 128
        %1632 = vxpose.xlu0.c.b16.end [8/8] 0, 128
        %v1633 = vpop.trf.xlu0
        %v1634 = vpop.trf.xlu0
        %v1635 = vpop.trf.xlu0
        %v1636 = vpop.trf.xlu0
        %v1637 = vpop.trf.xlu0
        %v1638 = vpop.trf.xlu0
        %v1639 = vpop.trf.xlu0
        %v1640 = vpop.trf.xlu0
        %v1642 = vsel %vm1125, %v1633, 0
        %1644 = vmatprep.subr.bf16.mxu0 0
        %1645 = vmatpush1.bf16.msra.mxu0 %v1623
        %1646 = vmatprep.subr.bf16.mxu0 0
        %1647 = vmatpush1.bf16.msra.mxu0 0
        %1648 = vmatprep.subr.bf16.mxu0 0
        %1649 = vmatpush1.bf16.msra.mxu0 0
        %1650 = vmatprep.subr.bf16.mxu0 0
        %1651 = vmatpush1.bf16.msra.mxu0 0
        %1652 = vmatprep.subr.bf16.mxu0 0
        %1653 = vmatpush1.bf16.msra.mxu0 0
        %1654 = vmatprep.subr.bf16.mxu0 0
        %1655 = vmatpush1.bf16.msra.mxu0 0
        %1656 = vmatprep.subr.bf16.mxu0 0
        %1657 = vmatpush1.bf16.msra.mxu0 0
        %1658 = vmatprep.subr.bf16.mxu0 0
        %1659 = vmatpush1.bf16.msra.mxu0 0
        %1660 = vmatprep.subr.bf16.mxu0 0
        %1661 = vmatpush1.bf16.msra.mxu0 0
        %1662 = vmatprep.subr.bf16.mxu0 0
        %1663 = vmatpush1.bf16.msra.mxu0 0
        %1664 = vmatprep.subr.bf16.mxu0 0
        %1665 = vmatpush1.bf16.msra.mxu0 0
        %1666 = vmatprep.subr.bf16.mxu0 0
        %1667 = vmatpush1.bf16.msra.mxu0 0
        %1668 = vmatprep.subr.bf16.mxu0 0
        %1669 = vmatpush1.bf16.msra.mxu0 0
        %1670 = vmatprep.subr.bf16.mxu0 0
        %1671 = vmatpush1.bf16.msra.mxu0 0
        %1672 = vmatprep.subr.bf16.mxu0 0
        %1673 = vmatpush1.bf16.msra.mxu0 0
        %1674 = vmatprep.subr.bf16.mxu0 0
        %1675 = vmatpush1.bf16.msra.mxu0 0
        %1676 = vmatprep.mubr.bf16.mxu0 0
        %1677 = vmatmul.mubr.bf16.gmra.mrb[0].mxu0 %v1642
        %v1678 = vpop.f32.mrb[0].mxu0
        %v1679 = vadd.f32 0.0, %v1678
        %v1680 = vpop.f32.mrb[0].mxu0
        %v1681 = vpop.f32.mrb[0].mxu0
        %v1682 = vpop.f32.mrb[0].mxu0
        %1683 = vdwg.mxu0
        %v1684 = vadd.f32 %v1622, %v1679
        %1685 = vst.msk [vmem:[#allocation2] sm:$0xff] %vm1045, %v1684
        %v1686 = vld [vmem:[#allocation3] sm:$0xff]
        %v1687 = vld [vmem:[#allocation3 + $0x8] sm:$0xff]
        %v1688 = vld [vmem:[#allocation3 + $0x10] sm:$0xff]
        %1689 = vmatprep.subr.bf16.mxu0 %v1403
        %1690 = vmatpush1.bf16.msra.mxu0 %v1402
        %1691 = vmatprep.subr.bf16.mxu0 0
        %1692 = vmatpush1.bf16.msra.mxu0 0
        %1693 = vmatprep.subr.bf16.mxu0 0
        %1694 = vmatpush1.bf16.msra.mxu0 0
        %1695 = vmatprep.subr.bf16.mxu0 0
        %1696 = vmatpush1.bf16.msra.mxu0 0
        %1697 = vmatprep.subr.bf16.mxu0 0
        %1698 = vmatpush1.bf16.msra.mxu0 0
        %1699 = vmatprep.subr.bf16.mxu0 0
        %1700 = vmatpush1.bf16.msra.mxu0 0
        %1701 = vmatprep.subr.bf16.mxu0 0
        %1702 = vmatpush1.bf16.msra.mxu0 0
        %1703 = vmatprep.subr.bf16.mxu0 0
        %1704 = vmatpush1.bf16.msra.mxu0 0
        %1705 = vmatprep.subr.bf16.mxu0 0
        %1706 = vmatpush1.bf16.msra.mxu0 0
        %1707 = vmatprep.subr.bf16.mxu0 0
        %1708 = vmatpush1.bf16.msra.mxu0 0
        %1709 = vmatprep.subr.bf16.mxu0 0
        %1710 = vmatpush1.bf16.msra.mxu0 0
        %1711 = vmatprep.subr.bf16.mxu0 0
        %1712 = vmatpush1.bf16.msra.mxu0 0
        %1713 = vmatprep.subr.bf16.mxu0 0
        %1714 = vmatpush1.bf16.msra.mxu0 0
        %1715 = vmatprep.subr.bf16.mxu0 0
        %1716 = vmatpush1.bf16.msra.mxu0 0
        %1717 = vmatprep.subr.bf16.mxu0 0
        %1718 = vmatpush1.bf16.msra.mxu0 0
        %1719 = vmatprep.subr.bf16.mxu0 0
        %1720 = vmatpush1.bf16.msra.mxu0 0
        %1721 = vmatprep.mubr.bf16.mxu0 0
        %1722 = vmatmul.mubr.bf16.gmra.mrb[0].mxu0 %v1642
        %v1723 = vpop.f32.mrb[0].mxu0
        %v1724 = vadd.f32 0.0, %v1723
        %v1725 = vpop.f32.mrb[0].mxu0
        %v1726 = vadd.f32 0.0, %v1725
        %v1727 = vpop.f32.mrb[0].mxu0
        %v1728 = vpop.f32.mrb[0].mxu0
        %1729 = vdwg.mxu0
        %1730 = vmatprep.subr.bf16.mxu0 0
        %1731 = vmatpush1.bf16.msra.mxu0 %v1404
        %1732 = vmatprep.subr.bf16.mxu0 0
        %1733 = vmatpush1.bf16.msra.mxu0 0
        %1734 = vmatprep.subr.bf16.mxu0 0
        %1735 = vmatpush1.bf16.msra.mxu0 0
        %1736 = vmatprep.subr.bf16.mxu0 0
        %1737 = vmatpush1.bf16.msra.mxu0 0
        %1738 = vmatprep.subr.bf16.mxu0 0
        %1739 = vmatpush1.bf16.msra.mxu0 0
        %1740 = vmatprep.subr.bf16.mxu0 0
        %1741 = vmatpush1.bf16.msra.mxu0 0
        %1742 = vmatprep.subr.bf16.mxu0 0
        %1743 = vmatpush1.bf16.msra.mxu0 0
        %1744 = vmatprep.subr.bf16.mxu0 0
        %1745 = vmatpush1.bf16.msra.mxu0 0
        %1746 = vmatprep.subr.bf16.mxu0 0
        %1747 = vmatpush1.bf16.msra.mxu0 0
        %1748 = vmatprep.subr.bf16.mxu0 0
        %1749 = vmatpush1.bf16.msra.mxu0 0
        %1750 = vmatprep.subr.bf16.mxu0 0
        %1751 = vmatpush1.bf16.msra.mxu0 0
        %1752 = vmatprep.subr.bf16.mxu0 0
        %1753 = vmatpush1.bf16.msra.mxu0 0
        %1754 = vmatprep.subr.bf16.mxu0 0
        %1755 = vmatpush1.bf16.msra.mxu0 0
        %1756 = vmatprep.subr.bf16.mxu0 0
        %1757 = vmatpush1.bf16.msra.mxu0 0
        %1758 = vmatprep.subr.bf16.mxu0 0
        %1759 = vmatpush1.bf16.msra.mxu0 0
        %1760 = vmatprep.subr.bf16.mxu0 0
        %1761 = vmatpush1.bf16.msra.mxu0 0
        %1762 = vmatprep.mubr.bf16.mxu0 0
        %1763 = vmatmul.mubr.bf16.gmra.mrb[0].mxu0 %v1642
        %v1764 = vpop.f32.mrb[0].mxu0
        %v1765 = vadd.f32 0.0, %v1764
        %v1766 = vpop.f32.mrb[0].mxu0
        %v1767 = vpop.f32.mrb[0].mxu0
        %v1768 = vpop.f32.mrb[0].mxu0
        %1769 = vdwg.mxu0
        %v1770 = vadd.f32 %v1686, %v1724
        %v1771 = vadd.f32 %v1687, %v1726
        %v1772 = vadd.f32 %v1688, %v1765
        %1773 = vst [vmem:[#allocation3] sm:$0xff] %v1770
        %1774 = vst [vmem:[#allocation3 + $0x8] sm:$0xff] %v1771
        %1775 = vst [vmem:[#allocation3 + $0x10] sm:$0xff] %v1772
        %p1776 = scmp.eq.s32.totalorder %s47, 2
        // Predicated region
        $region141: #{tpu_custom_call.1} parent=119 // pred_check
          %p1777 = pneg %p1776
        $region142: #{tpu_custom_call.1} parent=119 // pred_check_branch
          %1779 = sbr.rel (%p1777) target = $region144
        $region143: #{tpu_custom_call.1} parent=119 // pred_region
          %v1780 = vld [vmem:[%s5] sm:$0xff]
          %v1781 = vld [vmem:[%s6] sm:$0xff]
          %v1782 = vld [vmem:[%s4] sm:$0xff]
          %v1783 = vld [vmem:[%s21] sm:$0xf]
          %v1784 = vld [vmem:[%s22] sm:$0x1]
          %v1785 = vld [vmem:[%s23] sm:$0x1]
          %v1786 = vld [vmem:[#allocation5] sm:$0x1]
          %v1787 = vld [vmem:[%s16] sm:$0xf]
          %v1788 = vld [vmem:[%s17] sm:$0xf]
          %v1789 = vld [vmem:[%s17 + $0x4] sm:$0xf]
          %v1790 = vld [vmem:[%s17 + $0x8] sm:$0xf]
          %v1791 = vld [vmem:[%s17 + $0xc] sm:$0xf]
          %v1792 = vld [vmem:[%s17 + $0x10] sm:$0xf]
          %v1793 = vld [vmem:[%s17 + $0x14] sm:$0xf]
          %v1794 = vld [vmem:[%s17 + $0x18] sm:$0xf]
          %v1795 = vld [vmem:[%s17 + $0x1c] sm:$0xf]
          %v1796 = vld [vmem:[%s17 + $0x20] sm:$0xf]
          %v1797 = vld [vmem:[%s17 + $0x24] sm:$0xf]
          %v1798 = vld [vmem:[%s17 + $0x28] sm:$0xf]
          %v1799 = vld [vmem:[%s17 + $0x2c] sm:$0xf]
          %v1800 = vld [vmem:[%s17 + $0x30] sm:$0xf]
          %v1801 = vld [vmem:[%s17 + $0x34] sm:$0xf]
          %v1802 = vld [vmem:[%s17 + $0x38] sm:$0xf]
          %v1803 = vld [vmem:[%s17 + $0x3c] sm:$0xf]
          %v1804 = vld [vmem:[%s18] sm:$0x1]
          %v1805 = vld [vmem:[%s19] sm:$0xf]
          %v1806 = vld [vmem:[%s19 + $0x4] sm:$0xf]
          %v1807 = vld [vmem:[%s19 + $0x8] sm:$0xf]
          %v1808 = vld [vmem:[%s19 + $0xc] sm:$0xf]
          %v1809 = vld [vmem:[%s19 + $0x10] sm:$0xf]
          %v1810 = vld [vmem:[%s19 + $0x14] sm:$0xf]
          %v1811 = vld [vmem:[%s19 + $0x18] sm:$0xf]
          %v1812 = vld [vmem:[%s19 + $0x1c] sm:$0xf]
          %v1813 = vld [vmem:[%s19 + $0x20] sm:$0xf]
          %v1814 = vld [vmem:[%s19 + $0x24] sm:$0xf]
          %v1815 = vld [vmem:[%s19 + $0x28] sm:$0xf]
          %v1816 = vld [vmem:[%s19 + $0x2c] sm:$0xf]
          %v1817 = vld [vmem:[%s19 + $0x30] sm:$0xf]
          %v1818 = vld [vmem:[%s19 + $0x34] sm:$0xf]
          %v1819 = vld [vmem:[%s19 + $0x38] sm:$0xf]
          %v1820 = vld [vmem:[%s19 + $0x3c] sm:$0xf]
          %v1821 = vld [vmem:[%s20] sm:$0x1]
          %v1822 = vld [vmem:[#allocation9] sm:$0xff]
          %v1823 = vpack.c.bf16 %v1822, %v1822
          %v1825 = vlaneseq
          %v1826 = vshrl.u32 %v1825, 7
          %v1827 = vsub.s32 0, %v1826
          %v1828 = vrot.slane %v1784, %v1827
          %v1831 = vsel %vm943, %v1823, 0
          %v1834 = vsel %vm947, %v1783, 0
          %1836 = vmatprep.subr.bf16.mxu0 0
          %1837 = vmatpush1.bf16.msra.mxu0 %v1834
          %1838 = vmatprep.subr.bf16.mxu0 0
          %1839 = vmatpush1.bf16.msra.mxu0 0
          %1840 = vmatprep.subr.bf16.mxu0 0
          %1841 = vmatpush1.bf16.msra.mxu0 0
          %1842 = vmatprep.subr.bf16.mxu0 0
          %1843 = vmatpush1.bf16.msra.mxu0 0
          %1844 = vmatprep.subr.bf16.mxu0 0
          %1845 = vmatpush1.bf16.msra.mxu0 0
          %1846 = vmatprep.subr.bf16.mxu0 0
          %1847 = vmatpush1.bf16.msra.mxu0 0
          %1848 = vmatprep.subr.bf16.mxu0 0
          %1849 = vmatpush1.bf16.msra.mxu0 0
          %1850 = vmatprep.subr.bf16.mxu0 0
          %1851 = vmatpush1.bf16.msra.mxu0 0
          %1852 = vmatprep.subr.bf16.mxu0 0
          %1853 = vmatpush1.bf16.msra.mxu0 0
          %1854 = vmatprep.subr.bf16.mxu0 0
          %1855 = vmatpush1.bf16.msra.mxu0 0
          %1856 = vmatprep.subr.bf16.mxu0 0
          %1857 = vmatpush1.bf16.msra.mxu0 0
          %1858 = vmatprep.subr.bf16.mxu0 0
          %1859 = vmatpush1.bf16.msra.mxu0 0
          %1860 = vmatprep.subr.bf16.mxu0 0
          %1861 = vmatpush1.bf16.msra.mxu0 0
          %1862 = vmatprep.subr.bf16.mxu0 0
          %1863 = vmatpush1.bf16.msra.mxu0 0
          %1864 = vmatprep.subr.bf16.mxu0 0
          %1865 = vmatpush1.bf16.msra.mxu0 0
          %1866 = vmatprep.subr.bf16.mxu0 0
          %1867 = vmatpush1.bf16.msra.mxu0 0
          %1868 = vmatprep.mubr.bf16.mxu0 0
          %1869 = vmatmul.mubr.bf16.gmra.mrb[0].mxu0 %v1831
          %v1870 = vpop.f32.mrb[0].mxu0
          %v1871 = vadd.f32 %v1828, %v1870
          %v1872 = vpop.f32.mrb[0].mxu0
          %v1873 = vpop.f32.mrb[0].mxu0
          %v1874 = vpop.f32.mrb[0].mxu0
          %1875 = vdwg.mxu0
          %v1876 = vxor.u32 %v1871, 2147483648
          %v1877 = vmul.f32 %v1876, 1.442695
          %v1878 = vpow.pop %v1877
          %v1879 = vadd.f32 %v1878, 1.0
          %v1880 = vrcp.pop %v1879
          %v1881 = vmul.f32 1.0, %v1880
          %v1882 = vmul.f32 %v1871, %v1881
          %v1884 = vlaneseq
          %v1885 = vshrl.u32 %v1884, 7
          %v1886 = vsub.s32 0, %v1885
          %v1887 = vrot.slane %v1785, %v1886
          %v1889 = vmul.f32 %v1882, %v1887
          %1890 = vadd.xlane.f32.xlu0 %v1889
          %v1891 = vpop.xlane.xlu0 %1890
          %v1893 = vlaneseq
          %v1894 = vshrl.u32 %v1893, 7
          %v1895 = vsub.s32 0, %v1894
          %v1896 = vrot.slane %v1786, %v1895
          %v1898 = vadd.f32 %v1891, %v1896
          %v1899 = vmul.f32 %v1780, %v1898
          %v1900 = vld [vmem:[#allocation3] sm:$0xff]
          %v1901 = vpack.c.bf16 %v1900, %v1900
          %v1918 = vunpack.c.l.b16 %v1788
          %v1919 = vunpack.c.l.b16 %v1789
          %v1920 = vunpack.c.l.b16 %v1790
          %v1921 = vunpack.c.l.b16 %v1791
          %v1922 = vunpack.c.l.b16 %v1792
          %v1923 = vunpack.c.l.b16 %v1793
          %v1924 = vunpack.c.l.b16 %v1794
          %v1925 = vunpack.c.l.b16 %v1795
          %v1926 = vunpack.c.l.b16 %v1796
          %v1927 = vunpack.c.l.b16 %v1797
          %v1928 = vunpack.c.l.b16 %v1798
          %v1929 = vunpack.c.l.b16 %v1799
          %v1930 = vunpack.c.l.b16 %v1800
          %v1931 = vunpack.c.l.b16 %v1801
          %v1932 = vunpack.c.l.b16 %v1802
          %v1933 = vunpack.c.l.b16 %v1803
          %v1934 = vpack.c.b16 %v1919, %v1918
          %v1935 = vpack.c.b16 %v1921, %v1920
          %v1936 = vpack.c.b16 %v1923, %v1922
          %v1937 = vpack.c.b16 %v1925, %v1924
          %v1938 = vpack.c.b16 %v1927, %v1926
          %v1939 = vpack.c.b16 %v1929, %v1928
          %v1940 = vpack.c.b16 %v1931, %v1930
          %v1941 = vpack.c.b16 %v1933, %v1932
          %1950 = vmatprep.subr.bf16.mxu0 0
          %1951 = vmatpush1.bf16.msra.mxu0 %v1934
          %1952 = vmatprep.subr.bf16.mxu0 0
          %1953 = vmatpush1.bf16.msra.mxu0 %v1935
          %1954 = vmatprep.subr.bf16.mxu0 0
          %1955 = vmatpush1.bf16.msra.mxu0 %v1936
          %1956 = vmatprep.subr.bf16.mxu0 0
          %1957 = vmatpush1.bf16.msra.mxu0 %v1937
          %1958 = vmatprep.subr.bf16.mxu0 0
          %1959 = vmatpush1.bf16.msra.mxu0 %v1938
          %1960 = vmatprep.subr.bf16.mxu0 0
          %1961 = vmatpush1.bf16.msra.mxu0 %v1939
          %1962 = vmatprep.subr.bf16.mxu0 0
          %1963 = vmatpush1.bf16.msra.mxu0 %v1940
          %1964 = vmatprep.subr.bf16.mxu0 0
          %1965 = vmatpush1.bf16.msra.mxu0 %v1941
          %1966 = vmatprep.subr.bf16.mxu0 0
          %1967 = vmatpush1.bf16.msra.mxu0 0
          %1968 = vmatprep.subr.bf16.mxu0 0
          %1969 = vmatpush1.bf16.msra.mxu0 0
          %1970 = vmatprep.subr.bf16.mxu0 0
          %1971 = vmatpush1.bf16.msra.mxu0 0
          %1972 = vmatprep.subr.bf16.mxu0 0
          %1973 = vmatpush1.bf16.msra.mxu0 0
          %1974 = vmatprep.subr.bf16.mxu0 0
          %1975 = vmatpush1.bf16.msra.mxu0 0
          %1976 = vmatprep.subr.bf16.mxu0 0
          %1977 = vmatpush1.bf16.msra.mxu0 0
          %1978 = vmatprep.subr.bf16.mxu0 0
          %1979 = vmatpush1.bf16.msra.mxu0 0
          %1980 = vmatprep.subr.bf16.mxu0 0
          %1981 = vmatpush1.bf16.msra.mxu0 0
          %1982 = vmatprep.mubr.bf16.mxu0 0
          %1983 = vmatmul.mubr.bf16.gmra.mrb[0].mxu0 %v1901
          %v1984 = vpop.f32.mrb[0].mxu0
          %v1985 = vadd.f32 0.0, %v1984
          %v1986 = vpop.f32.mrb[0].mxu0
          %v1987 = vpop.f32.mrb[0].mxu0
          %v1988 = vpop.f32.mrb[0].mxu0
          %1989 = vdwg.mxu0
          %v1991 = vsel %vm947, %v1787, 0
          %1993 = vmatprep.subr.bf16.mxu0 0
          %1994 = vmatpush1.bf16.msra.mxu0 %v1991
          %1995 = vmatprep.subr.bf16.mxu0 0
          %1996 = vmatpush1.bf16.msra.mxu0 0
          %1997 = vmatprep.subr.bf16.mxu0 0
          %1998 = vmatpush1.bf16.msra.mxu0 0
          %1999 = vmatprep.subr.bf16.mxu0 0
          %2000 = vmatpush1.bf16.msra.mxu0 0
          %2001 = vmatprep.subr.bf16.mxu0 0
          %2002 = vmatpush1.bf16.msra.mxu0 0
          %2003 = vmatprep.subr.bf16.mxu0 0
          %2004 = vmatpush1.bf16.msra.mxu0 0
          %2005 = vmatprep.subr.bf16.mxu0 0
          %2006 = vmatpush1.bf16.msra.mxu0 0
          %2007 = vmatprep.subr.bf16.mxu0 0
          %2008 = vmatpush1.bf16.msra.mxu0 0
          %2009 = vmatprep.subr.bf16.mxu0 0
          %2010 = vmatpush1.bf16.msra.mxu0 0
          %2011 = vmatprep.subr.bf16.mxu0 0
          %2012 = vmatpush1.bf16.msra.mxu0 0
          %2013 = vmatprep.subr.bf16.mxu0 0
          %2014 = vmatpush1.bf16.msra.mxu0 0
          %2015 = vmatprep.subr.bf16.mxu0 0
          %2016 = vmatpush1.bf16.msra.mxu0 0
          %2017 = vmatprep.subr.bf16.mxu0 0
          %2018 = vmatpush1.bf16.msra.mxu0 0
          %2019 = vmatprep.subr.bf16.mxu0 0
          %2020 = vmatpush1.bf16.msra.mxu0 0
          %2021 = vmatprep.subr.bf16.mxu0 0
          %2022 = vmatpush1.bf16.msra.mxu0 0
          %2023 = vmatprep.subr.bf16.mxu0 0
          %2024 = vmatpush1.bf16.msra.mxu0 0
          %2025 = vmatprep.mubr.bf16.mxu0 0
          %2026 = vmatmul.mubr.bf16.gmra.mrb[0].mxu0 %v1831
          %v2027 = vpop.f32.mrb[0].mxu0
          %v2028 = vadd.f32 %v1985, %v2027
          %v2029 = vpop.f32.mrb[0].mxu0
          %v2030 = vpop.f32.mrb[0].mxu0
          %v2031 = vpop.f32.mrb[0].mxu0
          %2032 = vdwg.mxu0
          %v2034 = vlaneseq
          %v2035 = vshrl.u32 %v2034, 7
          %v2036 = vsub.s32 0, %v2035
          %v2037 = vrot.slane %v1804, %v2036
          %v2039 = vadd.f32 %v2028, %v2037
          %v2040 = vxor.u32 %v2039, 2147483648
          %v2041 = vmul.f32 %v2040, 1.442695
          %v2042 = vpow.pop %v2041
          %v2043 = vadd.f32 %v2042, 1.0
          %v2044 = vrcp.pop %v2043
          %v2045 = vmul.f32 1.0, %v2044
          %v2046 = vmul.f32 %v2039, %v2045
          %v2047 = vpack.c.bf16 %v2046, %v2046
          %v2049 = vlaneseq
          %v2050 = vshrl.u32 %v2049, 7
          %v2051 = vsub.s32 0, %v2050
          %v2052 = vrot.slane %v1821, %v2051
          %v2070 = vunpack.c.l.b16 %v1805
          %v2071 = vunpack.c.l.b16 %v1806
          %v2072 = vunpack.c.l.b16 %v1807
          %v2073 = vunpack.c.l.b16 %v1808
          %v2074 = vunpack.c.l.b16 %v1809
          %v2075 = vunpack.c.l.b16 %v1810
          %v2076 = vunpack.c.l.b16 %v1811
          %v2077 = vunpack.c.l.b16 %v1812
          %v2078 = vunpack.c.l.b16 %v1813
          %v2079 = vunpack.c.l.b16 %v1814
          %v2080 = vunpack.c.l.b16 %v1815
          %v2081 = vunpack.c.l.b16 %v1816
          %v2082 = vunpack.c.l.b16 %v1817
          %v2083 = vunpack.c.l.b16 %v1818
          %v2084 = vunpack.c.l.b16 %v1819
          %v2085 = vunpack.c.l.b16 %v1820
          %v2086 = vpack.c.b16 %v2071, %v2070
          %v2087 = vpack.c.b16 %v2073, %v2072
          %v2088 = vpack.c.b16 %v2075, %v2074
          %v2089 = vpack.c.b16 %v2077, %v2076
          %v2090 = vpack.c.b16 %v2079, %v2078
          %v2091 = vpack.c.b16 %v2081, %v2080
          %v2092 = vpack.c.b16 %v2083, %v2082
          %v2093 = vpack.c.b16 %v2085, %v2084
          %2102 = vmatprep.subr.bf16.mxu0 0
          %2103 = vmatpush1.bf16.msra.mxu0 %v2086
          %2104 = vmatprep.subr.bf16.mxu0 0
          %2105 = vmatpush1.bf16.msra.mxu0 %v2087
          %2106 = vmatprep.subr.bf16.mxu0 0
          %2107 = vmatpush1.bf16.msra.mxu0 %v2088
          %2108 = vmatprep.subr.bf16.mxu0 0
          %2109 = vmatpush1.bf16.msra.mxu0 %v2089
          %2110 = vmatprep.subr.bf16.mxu0 0
          %2111 = vmatpush1.bf16.msra.mxu0 %v2090
          %2112 = vmatprep.subr.bf16.mxu0 0
          %2113 = vmatpush1.bf16.msra.mxu0 %v2091
          %2114 = vmatprep.subr.bf16.mxu0 0
          %2115 = vmatpush1.bf16.msra.mxu0 %v2092
          %2116 = vmatprep.subr.bf16.mxu0 0
          %2117 = vmatpush1.bf16.msra.mxu0 %v2093
          %2118 = vmatprep.subr.bf16.mxu0 0
          %2119 = vmatpush1.bf16.msra.mxu0 0
          %2120 = vmatprep.subr.bf16.mxu0 0
          %2121 = vmatpush1.bf16.msra.mxu0 0
          %2122 = vmatprep.subr.bf16.mxu0 0
          %2123 = vmatpush1.bf16.msra.mxu0 0
          %2124 = vmatprep.subr.bf16.mxu0 0
          %2125 = vmatpush1.bf16.msra.mxu0 0
          %2126 = vmatprep.subr.bf16.mxu0 0
          %2127 = vmatpush1.bf16.msra.mxu0 0
          %2128 = vmatprep.subr.bf16.mxu0 0
          %2129 = vmatpush1.bf16.msra.mxu0 0
          %2130 = vmatprep.subr.bf16.mxu0 0
          %2131 = vmatpush1.bf16.msra.mxu0 0
          %2132 = vmatprep.subr.bf16.mxu0 0
          %2133 = vmatpush1.bf16.msra.mxu0 0
          %2134 = vmatprep.mubr.bf16.mxu0 0
          %2135 = vmatmul.mubr.bf16.gmra.mrb[0].mxu0 %v2047
          %v2136 = vpop.f32.mrb[0].mxu0
          %v2137 = vadd.f32 %v2052, %v2136
          %v2138 = vpop.f32.mrb[0].mxu0
          %v2139 = vpop.f32.mrb[0].mxu0
          %v2140 = vpop.f32.mrb[0].mxu0
          %2141 = vdwg.mxu0
          %v2142 = vadd.f32 %v1822, %v2137
          %2143 = vst.msk [vmem:[#allocation14] sm:$0xff] %vm943, %v2142
          %s2144 = scalar_lea.vmem [#allocation9], 8
          %v2145 = vld [vmem:[%s2144] sm:$0xff]
          %v2146 = vpack.c.bf16 %v2145, %v2145
          %v2148 = vsel %vm943, %v2146, 0
          %2150 = vmatprep.subr.bf16.mxu0 0
          %2151 = vmatpush1.bf16.msra.mxu0 %v1834
          %2152 = vmatprep.subr.bf16.mxu0 0
          %2153 = vmatpush1.bf16.msra.mxu0 0
          %2154 = vmatprep.subr.bf16.mxu0 0
          %2155 = vmatpush1.bf16.msra.mxu0 0
          %2156 = vmatprep.subr.bf16.mxu0 0
          %2157 = vmatpush1.bf16.msra.mxu0 0
          %2158 = vmatprep.subr.bf16.mxu0 0
          %2159 = vmatpush1.bf16.msra.mxu0 0
          %2160 = vmatprep.subr.bf16.mxu0 0
          %2161 = vmatpush1.bf16.msra.mxu0 0
          %2162 = vmatprep.subr.bf16.mxu0 0
          %2163 = vmatpush1.bf16.msra.mxu0 0
          %2164 = vmatprep.subr.bf16.mxu0 0
          %2165 = vmatpush1.bf16.msra.mxu0 0
          %2166 = vmatprep.subr.bf16.mxu0 0
          %2167 = vmatpush1.bf16.msra.mxu0 0
          %2168 = vmatprep.subr.bf16.mxu0 0
          %2169 = vmatpush1.bf16.msra.mxu0 0
          %2170 = vmatprep.subr.bf16.mxu0 0
          %2171 = vmatpush1.bf16.msra.mxu0 0
          %2172 = vmatprep.subr.bf16.mxu0 0
          %2173 = vmatpush1.bf16.msra.mxu0 0
          %2174 = vmatprep.subr.bf16.mxu0 0
          %2175 = vmatpush1.bf16.msra.mxu0 0
          %2176 = vmatprep.subr.bf16.mxu0 0
          %2177 = vmatpush1.bf16.msra.mxu0 0
          %2178 = vmatprep.subr.bf16.mxu0 0
          %2179 = vmatpush1.bf16.msra.mxu0 0
          %2180 = vmatprep.subr.bf16.mxu0 0
          %2181 = vmatpush1.bf16.msra.mxu0 0
          %2182 = vmatprep.mubr.bf16.mxu0 0
          %2183 = vmatmul.mubr.bf16.gmra.mrb[0].mxu0 %v2148
          %v2184 = vpop.f32.mrb[0].mxu0
          %v2185 = vadd.f32 %v1828, %v2184
          %v2186 = vpop.f32.mrb[0].mxu0
          %v2187 = vpop.f32.mrb[0].mxu0
          %v2188 = vpop.f32.mrb[0].mxu0
          %2189 = vdwg.mxu0
          %v2190 = vxor.u32 %v2185, 2147483648
          %v2191 = vmul.f32 %v2190, 1.442695
          %v2192 = vpow.pop %v2191
          %v2193 = vadd.f32 %v2192, 1.0
          %v2194 = vrcp.pop %v2193
          %v2195 = vmul.f32 1.0, %v2194
          %v2196 = vmul.f32 %v2185, %v2195
          %v2197 = vmul.f32 %v2196, %v1887
          %2198 = vadd.xlane.f32.xlu0 %v2197
          %v2199 = vpop.xlane.xlu0 %2198
          %v2200 = vadd.f32 %v2199, %v1896
          %2202 = vrot.lane.b32.xlu0 %v2200, 1
          %v2203 = vpop.permute.xlu0 %2202
          %v2205 = vmul.f32 %v1780, %v2203
          %v2206 = vld [vmem:[#allocation3 + $0x8] sm:$0xff]
          %v2207 = vpack.c.bf16 %v2206, %v2206
          %2208 = vmatprep.subr.bf16.mxu0 0
          %2209 = vmatpush1.bf16.msra.mxu0 %v1934
          %2210 = vmatprep.subr.bf16.mxu0 0
          %2211 = vmatpush1.bf16.msra.mxu0 %v1935
          %2212 = vmatprep.subr.bf16.mxu0 0
          %2213 = vmatpush1.bf16.msra.mxu0 %v1936
          %2214 = vmatprep.subr.bf16.mxu0 0
          %2215 = vmatpush1.bf16.msra.mxu0 %v1937
          %2216 = vmatprep.subr.bf16.mxu0 0
          %2217 = vmatpush1.bf16.msra.mxu0 %v1938
          %2218 = vmatprep.subr.bf16.mxu0 0
          %2219 = vmatpush1.bf16.msra.mxu0 %v1939
          %2220 = vmatprep.subr.bf16.mxu0 0
          %2221 = vmatpush1.bf16.msra.mxu0 %v1940
          %2222 = vmatprep.subr.bf16.mxu0 0
          %2223 = vmatpush1.bf16.msra.mxu0 %v1941
          %2224 = vmatprep.subr.bf16.mxu0 0
          %2225 = vmatpush1.bf16.msra.mxu0 0
          %2226 = vmatprep.subr.bf16.mxu0 0
          %2227 = vmatpush1.bf16.msra.mxu0 0
          %2228 = vmatprep.subr.bf16.mxu0 0
          %2229 = vmatpush1.bf16.msra.mxu0 0
          %2230 = vmatprep.subr.bf16.mxu0 0
          %2231 = vmatpush1.bf16.msra.mxu0 0
          %2232 = vmatprep.subr.bf16.mxu0 0
          %2233 = vmatpush1.bf16.msra.mxu0 0
          %2234 = vmatprep.subr.bf16.mxu0 0
          %2235 = vmatpush1.bf16.msra.mxu0 0
          %2236 = vmatprep.subr.bf16.mxu0 0
          %2237 = vmatpush1.bf16.msra.mxu0 0
          %2238 = vmatprep.subr.bf16.mxu0 0
          %2239 = vmatpush1.bf16.msra.mxu0 0
          %2240 = vmatprep.mubr.bf16.mxu0 0
          %2241 = vmatmul.mubr.bf16.gmra.mrb[0].mxu0 %v2207
          %v2242 = vpop.f32.mrb[0].mxu0
          %v2243 = vadd.f32 0.0, %v2242
          %v2244 = vpop.f32.mrb[0].mxu0
          %v2245 = vpop.f32.mrb[0].mxu0
          %v2246 = vpop.f32.mrb[0].mxu0
          %2247 = vdwg.mxu0
          %2248 = vmatprep.subr.bf16.mxu0 0
          %2249 = vmatpush1.bf16.msra.mxu0 %v1991
          %2250 = vmatprep.subr.bf16.mxu0 0
          %2251 = vmatpush1.bf16.msra.mxu0 0
          %2252 = vmatprep.subr.bf16.mxu0 0
          %2253 = vmatpush1.bf16.msra.mxu0 0
          %2254 = vmatprep.subr.bf16.mxu0 0
          %2255 = vmatpush1.bf16.msra.mxu0 0
          %2256 = vmatprep.subr.bf16.mxu0 0
          %2257 = vmatpush1.bf16.msra.mxu0 0
          %2258 = vmatprep.subr.bf16.mxu0 0
          %2259 = vmatpush1.bf16.msra.mxu0 0
          %2260 = vmatprep.subr.bf16.mxu0 0
          %2261 = vmatpush1.bf16.msra.mxu0 0
          %2262 = vmatprep.subr.bf16.mxu0 0
          %2263 = vmatpush1.bf16.msra.mxu0 0
          %2264 = vmatprep.subr.bf16.mxu0 0
          %2265 = vmatpush1.bf16.msra.mxu0 0
          %2266 = vmatprep.subr.bf16.mxu0 0
          %2267 = vmatpush1.bf16.msra.mxu0 0
          %2268 = vmatprep.subr.bf16.mxu0 0
          %2269 = vmatpush1.bf16.msra.mxu0 0
          %2270 = vmatprep.subr.bf16.mxu0 0
          %2271 = vmatpush1.bf16.msra.mxu0 0
          %2272 = vmatprep.subr.bf16.mxu0 0
          %2273 = vmatpush1.bf16.msra.mxu0 0
          %2274 = vmatprep.subr.bf16.mxu0 0
          %2275 = vmatpush1.bf16.msra.mxu0 0
          %2276 = vmatprep.subr.bf16.mxu0 0
          %2277 = vmatpush1.bf16.msra.mxu0 0
          %2278 = vmatprep.subr.bf16.mxu0 0
          %2279 = vmatpush1.bf16.msra.mxu0 0
          %2280 = vmatprep.mubr.bf16.mxu0 0
          %2281 = vmatmul.mubr.bf16.gmra.mrb[0].mxu0 %v2148
          %v2282 = vpop.f32.mrb[0].mxu0
          %v2283 = vadd.f32 %v2243, %v2282
          %v2284 = vpop.f32.mrb[0].mxu0
          %v2285 = vpop.f32.mrb[0].mxu0
          %v2286 = vpop.f32.mrb[0].mxu0
          %2287 = vdwg.mxu0
          %v2288 = vadd.f32 %v2283, %v2037
          %v2289 = vxor.u32 %v2288, 2147483648
          %v2290 = vmul.f32 %v2289, 1.442695
          %v2291 = vpow.pop %v2290
          %v2292 = vadd.f32 %v2291, 1.0
          %v2293 = vrcp.pop %v2292
          %v2294 = vmul.f32 1.0, %v2293
          %v2295 = vmul.f32 %v2288, %v2294
          %v2296 = vpack.c.bf16 %v2295, %v2295
          %2297 = vmatprep.subr.bf16.mxu0 0
          %2298 = vmatpush1.bf16.msra.mxu0 %v2086
          %2299 = vmatprep.subr.bf16.mxu0 0
          %2300 = vmatpush1.bf16.msra.mxu0 %v2087
          %2301 = vmatprep.subr.bf16.mxu0 0
          %2302 = vmatpush1.bf16.msra.mxu0 %v2088
          %2303 = vmatprep.subr.bf16.mxu0 0
          %2304 = vmatpush1.bf16.msra.mxu0 %v2089
          %2305 = vmatprep.subr.bf16.mxu0 0
          %2306 = vmatpush1.bf16.msra.mxu0 %v2090
          %2307 = vmatprep.subr.bf16.mxu0 0
          %2308 = vmatpush1.bf16.msra.mxu0 %v2091
          %2309 = vmatprep.subr.bf16.mxu0 0
          %2310 = vmatpush1.bf16.msra.mxu0 %v2092
          %2311 = vmatprep.subr.bf16.mxu0 0
          %2312 = vmatpush1.bf16.msra.mxu0 %v2093
          %2313 = vmatprep.subr.bf16.mxu0 0
          %2314 = vmatpush1.bf16.msra.mxu0 0
          %2315 = vmatprep.subr.bf16.mxu0 0
          %2316 = vmatpush1.bf16.msra.mxu0 0
          %2317 = vmatprep.subr.bf16.mxu0 0
          %2318 = vmatpush1.bf16.msra.mxu0 0
          %2319 = vmatprep.subr.bf16.mxu0 0
          %2320 = vmatpush1.bf16.msra.mxu0 0
          %2321 = vmatprep.subr.bf16.mxu0 0
          %2322 = vmatpush1.bf16.msra.mxu0 0
          %2323 = vmatprep.subr.bf16.mxu0 0
          %2324 = vmatpush1.bf16.msra.mxu0 0
          %2325 = vmatprep.subr.bf16.mxu0 0
          %2326 = vmatpush1.bf16.msra.mxu0 0
          %2327 = vmatprep.subr.bf16.mxu0 0
          %2328 = vmatpush1.bf16.msra.mxu0 0
          %2329 = vmatprep.mubr.bf16.mxu0 0
          %2330 = vmatmul.mubr.bf16.gmra.mrb[0].mxu0 %v2296
          %v2331 = vpop.f32.mrb[0].mxu0
          %v2332 = vadd.f32 %v2052, %v2331
          %v2333 = vpop.f32.mrb[0].mxu0
          %v2334 = vpop.f32.mrb[0].mxu0
          %v2335 = vpop.f32.mrb[0].mxu0
          %2336 = vdwg.mxu0
          %v2337 = vadd.f32 %v2145, %v2332
          %s2338 = scalar_lea.vmem [#allocation14], 8
          %2339 = vst.msk [vmem:[%s2338] sm:$0xff] %vm943, %v2337
          %s2340 = scalar_lea.vmem [#allocation9], 16
          %v2341 = vld [vmem:[%s2340] sm:$0xff]
          %v2342 = vpack.c.bf16 %v2341, %v2341
          %v2344 = vsel %vm943, %v2342, 0
          %2346 = vmatprep.subr.bf16.mxu0 0
          %2347 = vmatpush1.bf16.msra.mxu0 %v1834
          %2348 = vmatprep.subr.bf16.mxu0 0
          %2349 = vmatpush1.bf16.msra.mxu0 0
          %2350 = vmatprep.subr.bf16.mxu0 0
          %2351 = vmatpush1.bf16.msra.mxu0 0
          %2352 = vmatprep.subr.bf16.mxu0 0
          %2353 = vmatpush1.bf16.msra.mxu0 0
          %2354 = vmatprep.subr.bf16.mxu0 0
          %2355 = vmatpush1.bf16.msra.mxu0 0
          %2356 = vmatprep.subr.bf16.mxu0 0
          %2357 = vmatpush1.bf16.msra.mxu0 0
          %2358 = vmatprep.subr.bf16.mxu0 0
          %2359 = vmatpush1.bf16.msra.mxu0 0
          %2360 = vmatprep.subr.bf16.mxu0 0
          %2361 = vmatpush1.bf16.msra.mxu0 0
          %2362 = vmatprep.subr.bf16.mxu0 0
          %2363 = vmatpush1.bf16.msra.mxu0 0
          %2364 = vmatprep.subr.bf16.mxu0 0
          %2365 = vmatpush1.bf16.msra.mxu0 0
          %2366 = vmatprep.subr.bf16.mxu0 0
          %2367 = vmatpush1.bf16.msra.mxu0 0
          %2368 = vmatprep.subr.bf16.mxu0 0
          %2369 = vmatpush1.bf16.msra.mxu0 0
          %2370 = vmatprep.subr.bf16.mxu0 0
          %2371 = vmatpush1.bf16.msra.mxu0 0
          %2372 = vmatprep.subr.bf16.mxu0 0
          %2373 = vmatpush1.bf16.msra.mxu0 0
          %2374 = vmatprep.subr.bf16.mxu0 0
          %2375 = vmatpush1.bf16.msra.mxu0 0
          %2376 = vmatprep.subr.bf16.mxu0 0
          %2377 = vmatpush1.bf16.msra.mxu0 0
          %2378 = vmatprep.mubr.bf16.mxu0 0
          %2379 = vmatmul.mubr.bf16.gmra.mrb[0].mxu0 %v2344
          %v2380 = vpop.f32.mrb[0].mxu0
          %v2381 = vadd.f32 %v1828, %v2380
          %v2382 = vpop.f32.mrb[0].mxu0
          %v2383 = vpop.f32.mrb[0].mxu0
          %v2384 = vpop.f32.mrb[0].mxu0
          %2385 = vdwg.mxu0
          %v2386 = vxor.u32 %v2381, 2147483648
          %v2387 = vmul.f32 %v2386, 1.442695
          %v2388 = vpow.pop %v2387
          %v2389 = vadd.f32 %v2388, 1.0
          %v2390 = vrcp.pop %v2389
          %v2391 = vmul.f32 1.0, %v2390
          %v2392 = vmul.f32 %v2381, %v2391
          %v2393 = vmul.f32 %v2392, %v1887
          %2394 = vadd.xlane.f32.xlu0 %v2393
          %v2395 = vpop.xlane.xlu0 %2394
          %v2396 = vadd.f32 %v2395, %v1896
          %2398 = vrot.lane.b32.xlu0 %v2396, 2
          %v2399 = vpop.permute.xlu0 %2398
          %v2401 = vmul.f32 %v1780, %v2399
          %v2402 = vld [vmem:[#allocation3 + $0x10] sm:$0xff]
          %v2403 = vpack.c.bf16 %v2402, %v2402
          %2404 = vmatprep.subr.bf16.mxu0 0
          %2405 = vmatpush1.bf16.msra.mxu0 %v1934
          %2406 = vmatprep.subr.bf16.mxu0 0
          %2407 = vmatpush1.bf16.msra.mxu0 %v1935
          %2408 = vmatprep.subr.bf16.mxu0 0
          %2409 = vmatpush1.bf16.msra.mxu0 %v1936
          %2410 = vmatprep.subr.bf16.mxu0 0
          %2411 = vmatpush1.bf16.msra.mxu0 %v1937
          %2412 = vmatprep.subr.bf16.mxu0 0
          %2413 = vmatpush1.bf16.msra.mxu0 %v1938
          %2414 = vmatprep.subr.bf16.mxu0 0
          %2415 = vmatpush1.bf16.msra.mxu0 %v1939
          %2416 = vmatprep.subr.bf16.mxu0 0
          %2417 = vmatpush1.bf16.msra.mxu0 %v1940
          %2418 = vmatprep.subr.bf16.mxu0 0
          %2419 = vmatpush1.bf16.msra.mxu0 %v1941
          %2420 = vmatprep.subr.bf16.mxu0 0
          %2421 = vmatpush1.bf16.msra.mxu0 0
          %2422 = vmatprep.subr.bf16.mxu0 0
          %2423 = vmatpush1.bf16.msra.mxu0 0
          %2424 = vmatprep.subr.bf16.mxu0 0
          %2425 = vmatpush1.bf16.msra.mxu0 0
          %2426 = vmatprep.subr.bf16.mxu0 0
          %2427 = vmatpush1.bf16.msra.mxu0 0
          %2428 = vmatprep.subr.bf16.mxu0 0
          %2429 = vmatpush1.bf16.msra.mxu0 0
          %2430 = vmatprep.subr.bf16.mxu0 0
          %2431 = vmatpush1.bf16.msra.mxu0 0
          %2432 = vmatprep.subr.bf16.mxu0 0
          %2433 = vmatpush1.bf16.msra.mxu0 0
          %2434 = vmatprep.subr.bf16.mxu0 0
          %2435 = vmatpush1.bf16.msra.mxu0 0
          %2436 = vmatprep.mubr.bf16.mxu0 0
          %2437 = vmatmul.mubr.bf16.gmra.mrb[0].mxu0 %v2403
          %v2438 = vpop.f32.mrb[0].mxu0
          %v2439 = vadd.f32 0.0, %v2438
          %v2440 = vpop.f32.mrb[0].mxu0
          %v2441 = vpop.f32.mrb[0].mxu0
          %v2442 = vpop.f32.mrb[0].mxu0
          %2443 = vdwg.mxu0
          %2444 = vmatprep.subr.bf16.mxu0 0
          %2445 = vmatpush1.bf16.msra.mxu0 %v1991
          %2446 = vmatprep.subr.bf16.mxu0 0
          %2447 = vmatpush1.bf16.msra.mxu0 0
          %2448 = vmatprep.subr.bf16.mxu0 0
          %2449 = vmatpush1.bf16.msra.mxu0 0
          %2450 = vmatprep.subr.bf16.mxu0 0
          %2451 = vmatpush1.bf16.msra.mxu0 0
          %2452 = vmatprep.subr.bf16.mxu0 0
          %2453 = vmatpush1.bf16.msra.mxu0 0
          %2454 = vmatprep.subr.bf16.mxu0 0
          %2455 = vmatpush1.bf16.msra.mxu0 0
          %2456 = vmatprep.subr.bf16.mxu0 0
          %2457 = vmatpush1.bf16.msra.mxu0 0
          %2458 = vmatprep.subr.bf16.mxu0 0
          %2459 = vmatpush1.bf16.msra.mxu0 0
          %2460 = vmatprep.subr.bf16.mxu0 0
          %2461 = vmatpush1.bf16.msra.mxu0 0
          %2462 = vmatprep.subr.bf16.mxu0 0
          %2463 = vmatpush1.bf16.msra.mxu0 0
          %2464 = vmatprep.subr.bf16.mxu0 0
          %2465 = vmatpush1.bf16.msra.mxu0 0
          %2466 = vmatprep.subr.bf16.mxu0 0
          %2467 = vmatpush1.bf16.msra.mxu0 0
          %2468 = vmatprep.subr.bf16.mxu0 0
          %2469 = vmatpush1.bf16.msra.mxu0 0
          %2470 = vmatprep.subr.bf16.mxu0 0
          %2471 = vmatpush1.bf16.msra.mxu0 0
          %2472 = vmatprep.subr.bf16.mxu0 0
          %2473 = vmatpush1.bf16.msra.mxu0 0
          %2474 = vmatprep.subr.bf16.mxu0 0
          %2475 = vmatpush1.bf16.msra.mxu0 0
          %2476 = vmatprep.mubr.bf16.mxu0 0
          %2477 = vmatmul.mubr.bf16.gmra.mrb[0].mxu0 %v2344
          %v2478 = vpop.f32.mrb[0].mxu0
          %v2479 = vadd.f32 %v2439, %v2478
          %v2480 = vpop.f32.mrb[0].mxu0
          %v2481 = vpop.f32.mrb[0].mxu0
          %v2482 = vpop.f32.mrb[0].mxu0
          %2483 = vdwg.mxu0
          %v2484 = vadd.f32 %v2479, %v2037
          %v2485 = vxor.u32 %v2484, 2147483648
          %v2486 = vmul.f32 %v2485, 1.442695
          %v2487 = vpow.pop %v2486
          %v2488 = vadd.f32 %v2487, 1.0
          %v2489 = vrcp.pop %v2488
          %v2490 = vmul.f32 1.0, %v2489
          %v2491 = vmul.f32 %v2484, %v2490
          %v2492 = vpack.c.bf16 %v2491, %v2491
          %2493 = vmatprep.subr.bf16.mxu0 0
          %2494 = vmatpush1.bf16.msra.mxu0 %v2086
          %2495 = vmatprep.subr.bf16.mxu0 0
          %2496 = vmatpush1.bf16.msra.mxu0 %v2087
          %2497 = vmatprep.subr.bf16.mxu0 0
          %2498 = vmatpush1.bf16.msra.mxu0 %v2088
          %2499 = vmatprep.subr.bf16.mxu0 0
          %2500 = vmatpush1.bf16.msra.mxu0 %v2089
          %2501 = vmatprep.subr.bf16.mxu0 0
          %2502 = vmatpush1.bf16.msra.mxu0 %v2090
          %2503 = vmatprep.subr.bf16.mxu0 0
          %2504 = vmatpush1.bf16.msra.mxu0 %v2091
          %2505 = vmatprep.subr.bf16.mxu0 0
          %2506 = vmatpush1.bf16.msra.mxu0 %v2092
          %2507 = vmatprep.subr.bf16.mxu0 0
          %2508 = vmatpush1.bf16.msra.mxu0 %v2093
          %2509 = vmatprep.subr.bf16.mxu0 0
          %2510 = vmatpush1.bf16.msra.mxu0 0
          %2511 = vmatprep.subr.bf16.mxu0 0
          %2512 = vmatpush1.bf16.msra.mxu0 0
          %2513 = vmatprep.subr.bf16.mxu0 0
          %2514 = vmatpush1.bf16.msra.mxu0 0
          %2515 = vmatprep.subr.bf16.mxu0 0
          %2516 = vmatpush1.bf16.msra.mxu0 0
          %2517 = vmatprep.subr.bf16.mxu0 0
          %2518 = vmatpush1.bf16.msra.mxu0 0
          %2519 = vmatprep.subr.bf16.mxu0 0
          %2520 = vmatpush1.bf16.msra.mxu0 0
          %2521 = vmatprep.subr.bf16.mxu0 0
          %2522 = vmatpush1.bf16.msra.mxu0 0
          %2523 = vmatprep.subr.bf16.mxu0 0
          %2524 = vmatpush1.bf16.msra.mxu0 0
          %2525 = vmatprep.mubr.bf16.mxu0 0
          %2526 = vmatmul.mubr.bf16.gmra.mrb[0].mxu0 %v2492
          %v2527 = vpop.f32.mrb[0].mxu0
          %v2528 = vadd.f32 %v2052, %v2527
          %v2529 = vpop.f32.mrb[0].mxu0
          %v2530 = vpop.f32.mrb[0].mxu0
          %v2531 = vpop.f32.mrb[0].mxu0
          %2532 = vdwg.mxu0
          %v2533 = vadd.f32 %v2341, %v2528
          %s2534 = scalar_lea.vmem [#allocation14], 16
          %2535 = vst.msk [vmem:[%s2534] sm:$0xff] %vm943, %v2533
          %v2536 = vsel %vm1616, %v1899, %v2205
          %v2537 = vsel %vm1619, %v2536, %v2401
          %v2538 = vld [vmem:[#allocation2] sm:$0xff]
          %2540 = vset.pattern.permute.xlu0 0
          %2541 = vperm.xlu0 %2540, %v1781
          %v2542 = vpop.permute.xlu0 %2541
          %v2544 = vmul.f32 %v2542, %v2538
          %v2545 = vadd.f32 %v1782, %v2544
          %v2546 = vadd.f32 %v2545, %v2537
          %2547 = vst.msk [vmem:[%s25] sm:$0xff] %vm1045, %v2546
          %2548 = vst.msk [vmem:[%s27] sm:$0xff] %vm1045, %v2537
        $region144: #{tpu_custom_call.1} parent=119 // pred_fallthru
          _
        // Predicated region
        $region145: #{tpu_custom_call.1} parent=119 // pred_check
          %p2549 = pneg %p595
        $region146: #{tpu_custom_call.1} parent=119 // pred_check_branch
          %2551 = sbr.rel (%p2549) target = $region148
        $region147: #{tpu_custom_call.1} parent=119 // pred_region
          _
        $region148: #{tpu_custom_call.1} parent=119 // pred_fallthru
          _
        // Predicated region
        $region149: #{tpu_custom_call.1} parent=119 // pred_check
          %p2552 = pneg %p616
        $region150: #{tpu_custom_call.1} parent=119 // pred_check_branch
          %2554 = sbr.rel (%p2552) target = $region152
        $region151: #{tpu_custom_call.1} parent=119 // pred_region
          %s2556 = ssub.s32 384, 384
          %2557 = vsyncadd [#allocation8], %s2556
          %s2558 = sshll.u32 [#allocation14], 4
          %s2559 = int_to_ptr.vmem [resolvable:$true] %s2558
          %2564 = dma.vmem_to_hbm [thread:$0]  %s2559, 384, %s26, [#allocation8], 128, 128, 8
        $region152: #{tpu_custom_call.1} parent=119 // pred_fallthru
          _
        // Predicated region
        $region153: #{tpu_custom_call.1} parent=119 // pred_check
          %p2565 = pneg %p637
        $region154: #{tpu_custom_call.1} parent=119 // pred_check_branch
          %2567 = sbr.rel (%p2565) target = $region156
        $region155: #{tpu_custom_call.1} parent=119 // pred_region
          _
        $region156: #{tpu_custom_call.1} parent=119 // pred_fallthru
          _
        // Predicated region
        $region157: #{tpu_custom_call.1} parent=119 // pred_check
          %p2568 = pneg %p595
        $region158: #{tpu_custom_call.1} parent=119 // pred_check_branch
          %2570 = sbr.rel (%p2568) target = $region160
        $region159: #{tpu_custom_call.1} parent=119 // pred_region
          _
        $region160: #{tpu_custom_call.1} parent=119 // pred_fallthru
          _
        // Predicated region
        $region161: #{tpu_custom_call.1} parent=119 // pred_check
          %p2571 = pneg %p616
        $region162: #{tpu_custom_call.1} parent=119 // pred_check_branch
          %2573 = sbr.rel (%p2571) target = $region164
        $region163: #{tpu_custom_call.1} parent=119 // pred_region
          %2574 = dma.done [#allocation8], 384
        $region164: #{tpu_custom_call.1} parent=119 // pred_fallthru
          _
        // Predicated region
        $region165: #{tpu_custom_call.1} parent=119 // pred_check
          %p2575 = pneg %p637
        $region166: #{tpu_custom_call.1} parent=119 // pred_check_branch
          %2577 = sbr.rel (%p2575) target = $region168
        $region167: #{tpu_custom_call.1} parent=119 // pred_region
          _
        $region168: #{tpu_custom_call.1} parent=119 // pred_fallthru
          _
      $region120: #{tpu_custom_call.1} parent=5 // pred_fallthru
        _
      %p2578 = scmp.le.s32.totalorder 2, %s42
      // Predicated region
      $region169: #{tpu_custom_call.1} parent=5 // pred_check
        %p2579 = pneg %p2578
      $region170: #{tpu_custom_call.1} parent=5 // pred_check_branch
        %2581 = sbr.rel (%p2579) target = $region172
      $region171: #{tpu_custom_call.1} parent=5 // pred_region
        %s2582 = ssub.s32 %s42, 2
      $region172: #{tpu_custom_call.1} parent=5 // pred_fallthru
        _
    $region6: #{tpu_custom_call.1} parent=1 // loop_footer
      %s46 = sadd.s32 1, %s42
    $region7: #{tpu_custom_call.1} parent=1 // loop_footer_branch
      %41 = sbr.rel target = $region3
    $region8: #{tpu_custom_call.1} parent=1 // loop_exit
      _
    %2583 = vsyncpa [#allocation7], 1
    %s2584 = scalar_lea.sflag [#allocation7], 1
    %2585 = vsyncpa %s2584, 1
    %2586 = vsyncpa [#allocation10], 1
    %2587 = vsyncpa [#allocation13], 1
    %2588 = vsyncpa [#allocation8], 1
    %s2589 = scalar_lea.sflag [#allocation8], 1
    %2590 = vsyncpa %s2589, 1

</llo_original>
